<compile_context>
chip_gen: v7x
topology: tpu7x:2x2x1
jax: 0.10.0
libtpu: 0.0.40
codegen_flags: <defaults>
</compile_context>

<pallas_src>
import functools

import jax
import jax.numpy as jnp
import numpy as np
from jax.experimental import pallas as pl
from jax.experimental.pallas import tpu as pltpu

# ---------------------------------------------------------------------------
# Model geometry
# ---------------------------------------------------------------------------
CP = 128                    # lane-padded channel width used by both stages
C1, C2 = 32, 64             # true channel widths of stage 1 / stage 2
CH1, CH2 = 4 * C1, 4 * C2   # MLP hidden widths (128 / 256, already lane-dense)
NUM_CLASSES = 30
STEM_KPAD = 256             # im2col K of the stem (7*7*3 = 147) padded to 256
IMG = 32                    # input resolution used by this script
H1 = W1 = (IMG + 2 * 2 - 7) // 4 + 1      # 8   (stem: 7x7 / s4 / p2)
S1 = H1 * W1                              # 64
H2 = W2 = (H1 + 2 * 1 - 3) // 2 + 1       # 4   (downsample: 3x3 / s2 / p1)
S2 = H2 * W2                              # 16
# The shift-add pooling below assumes W1 / W2 are powers of two (8 / 4 here).


# ---------------------------------------------------------------------------
# In-kernel helpers (traced inside the Pallas kernel)
# ---------------------------------------------------------------------------
def _group_norm(x, c_true, gamma, beta, eps=1e-5):
    """GroupNorm(num_groups=1) for one sample on a (tokens, CP) slab.

    Channels >= c_true are exactly zero by construction, so sums over the full
    lane-padded slab equal sums over the true channels; dividing by the true
    element count gives exact statistics. Single pass (sum + sum-of-squares),
    rsqrt goes to the otherwise idle EUP slot.
    """
    inv = 1.0 / float(x.shape[0] * c_true)
    mean = jnp.sum(x, keepdims=True) * inv
    ex2 = jnp.sum(x * x, keepdims=True) * inv
    var = ex2 - mean * mean
    xn = (x - mean) * jax.lax.rsqrt(var + eps)
    return xn * gamma + beta


def _avg_pool_3x3(x, h, w, buf):
    """AvgPool2d(3, stride=1, padding=1, count_include_pad=False) on a flat
    (h*w, CP) token slab (tokens row-major, p = i*w + j).

    Pure f32 VPU shift-adds through a zero-padded VMEM scratch: separable
    vertical 3-sum (zero padding handles the image-top/bottom edges) followed
    by a horizontal 3-sum with the row-wrap positions masked out; divide by
    the valid-neighbour count.  No MXU, no bf16 casts.  Requires w = 2^k.
    """
    s = h * w
    buf[...] = jnp.zeros_like(buf)
    buf[w:w + s, :] = x
    # vertical (image-row) 3-sum
    rows = x + buf[0:s, :] + buf[2 * w:2 * w + s, :]
    # horizontal 3-sum: reuse the buffer; pad rows w-1 / w+s are still zero.
    buf[w:w + s, :] = rows
    left = buf[w - 1:w - 1 + s, :]
    right = buf[w + 1:w + 1 + s, :]

    p = jax.lax.broadcasted_iota(jnp.int32, (s, CP), 0)
    j = p & (w - 1)
    total = (rows
             + jnp.where(j > 0, left, 0.0)
             + jnp.where(j < w - 1, right, 0.0))
    # count_include_pad=False divisor: number of valid neighbours per position.
    ch = 3 - (p < w).astype(jnp.int32) - (p >= s - w).astype(jnp.int32)
    cw = 3 - (j == 0).astype(jnp.int32) - (j == w - 1).astype(jnp.int32)
    return total / (ch * cw).astype(jnp.float32)


def _block(x, h, w, c_true, vec, w1, b1, w2, pool_buf):
    """One PoolFormer block on a per-sample (h*w, CP) activation slab.

    vec rows: 0 emb_bias  1 g1w  2 g1b  3 ls1  4 g2w  5 g2b  6 ls2  7 mlp_b2.
    """
    g1w, g1b, ls1 = vec[1:2], vec[2:3], vec[3:4]
    g2w, g2b, ls2 = vec[4:5], vec[5:6], vec[6:7]
    b2 = vec[7:8]

    # token mixer: AvgPool3x3(stride 1, pad 1, count_include_pad=False) - id
    xn = _group_norm(x, c_true, g1w, g1b)
    pooled = _avg_pool_3x3(xn, h, w, pool_buf)
    x = x + ls1 * (pooled - xn)

    # channel MLP (1x1 convs): C -> 4C -> C
    xn = _group_norm(x, c_true, g2w, g2b)
    hdn = jnp.dot(xn.astype(jnp.bfloat16), w1,
                  preferred_element_type=jnp.float32) + b1
    # TODO(synk): nn.GELU defaults to erf-exact; tanh approximation used here.
    hdn = jax.nn.gelu(hdn, approximate=True)
    y = jnp.dot(hdn.astype(jnp.bfloat16), w2,
                preferred_element_type=jnp.float32) + b2
    return x + ls2 * y


# ---------------------------------------------------------------------------
# Fused Pallas kernel: one grid step == one sample (parallel over batch)
# ---------------------------------------------------------------------------
def _poolformer_kernel(h1, w1, h2, w2,
                       patches_ref, stem_w_ref, vec1_ref, w11_ref, b11_ref,
                       w21_ref, sel_ref, dwn_w_ref, vec2_ref, w12_ref,
                       b12_ref, w22_ref, fc_w_ref, o_ref, pool_buf):
    s1, s2 = h1 * w1, h2 * w2
    vec1 = vec1_ref[...]
    vec2 = vec2_ref[...]

    # --- stage 1: patch embed (7x7 / s4 conv as host im2col + matmul) -------
    # TODO(synk): at larger resolutions fuse the stem im2col into the kernel
    #             too (pl.ds windows) instead of materialising patches in HBM.
    x = jnp.dot(patches_ref[0], stem_w_ref[...],
                preferred_element_type=jnp.float32) + vec1[0:1]
    x = _block(x, h1, w1, C1, vec1,
               w11_ref[...], b11_ref[...], w21_ref[...], pool_buf)

    # --- downsample: 3x3 / s2 / p1 conv, entirely in VMEM -------------------
    # Constant 0/1 selection matmul gathers the 9 spatial taps from the flat
    # stage-1 slab, then 9 per-tap channel matmuls with K densified to the
    # true C1 columns (no 96/128 zero lanes in the contraction).
    x1c = x[:, :C1].astype(jnp.bfloat16)                     # (s1, C1)
    taps = jnp.dot(sel_ref[...], x1c,
                   preferred_element_type=jnp.float32)       # (9*s2, C1)
    dw = dwn_w_ref[...]                                      # (9*C1, CP)
    y = jnp.zeros((s2, CP), jnp.float32)
    for t in range(9):
        p_t = taps[t * s2:(t + 1) * s2].astype(jnp.bfloat16)
        y = y + jnp.dot(p_t, dw[t * C1:(t + 1) * C1],
                        preferred_element_type=jnp.float32)
    x = y + vec2[0:1]

    # --- stage 2 block -------------------------------------------------------
    x = _block(x, h2, w2, C2, vec2,
               w12_ref[...], b12_ref[...], w22_ref[...], pool_buf)

    # --- head: GroupNorm -> global token mean -> Linear(30) ------------------
    xn = _group_norm(x, C2, vec2[8:9], vec2[9:10])
    pooled = jnp.mean(xn, axis=0, keepdims=True)             # (1, CP)
    logits = jnp.dot(pooled.astype(jnp.bfloat16), fc_w_ref[...],
                     preferred_element_type=jnp.float32) + vec2[10:11]
    # lane- and sublane-dense store (8, 128); row 0 holds the logits.
    o_ref[0] = jnp.broadcast_to(logits, (8, CP))


# ---------------------------------------------------------------------------
# Plain-JAX glue (host side)
# ---------------------------------------------------------------------------
def _im2col(x, kh, kw, stride, pad):
    """x: (N, H, W, C) -> (N, Ho, Wo, kh*kw*C) patches (stem only)."""
    xp = jnp.pad(x, ((0, 0), (pad, pad), (pad, pad), (0, 0)))
    _, hp, wp, _ = xp.shape
    ho = (hp - kh) // stride + 1
    wo = (wp - kw) // stride + 1
    cols = []
    for i in range(kh):
        for j in range(kw):
            cols.append(xp[:, i:i + stride * (ho - 1) + 1:stride,
                              j:j + stride * (wo - 1) + 1:stride, :])
    return jnp.concatenate(cols, axis=-1), ho, wo


def _downsample_select():
    """Constant 0/1 gather operator (9*S2, S1): row (t, o) selects the stage-1
    token hit by tap t of the 3x3/s2/p1 conv at output position o (zero row
    when the tap falls on padding)."""
    sel = np.zeros((9 * S2, S1), np.float32)
    t = 0
    for di in range(3):
        for dj in range(3):
            for oi in range(H2):
                for oj in range(W2):
                    ii = 2 * oi - 1 + di
                    jj = 2 * oj - 1 + dj
                    if 0 <= ii < H1 and 0 <= jj < W1:
                        sel[t * S2 + oi * W2 + oj, ii * W1 + jj] = 1.0
            t += 1
    return jnp.asarray(sel, jnp.bfloat16)


# ---------------------------------------------------------------------------
# Parameters (deterministic, synthetic; lane-padded layouts built at init)
# ---------------------------------------------------------------------------
def init_params(key):
    ks = iter(jax.random.split(key, 8))

    def nrm(shape):
        return 0.02 * jax.random.normal(next(ks), shape, jnp.float32)

    def padded(true, rows, cols):
        out = jnp.zeros((rows, cols), jnp.float32)
        return out.at[:true.shape[0], :true.shape[1]].set(true)

    def lane_vec(vals, c_true):
        return jnp.zeros((1, CP), jnp.float32).at[0, :c_true].set(vals)

    def block_rows(c_true):
        ones = lane_vec(jnp.ones((c_true,), jnp.float32), c_true)
        zeros = jnp.zeros((1, CP), jnp.float32)
        ls = lane_vec(jnp.full((c_true,), 1e-5, jnp.float32), c_true)
        # rows: g1w g1b ls1 g2w g2b ls2 mlp_b2
        return [ones, zeros, ls, ones, zeros, ls, zeros]

    zrow = jnp.zeros((1, CP), jnp.float32)

    # ---- stage 1 -------------------------------------------------------------
    stem_w = padded(nrm((7 * 7 * 3, C1)), STEM_KPAD, CP).astype(jnp.bfloat16)
    vec1 = jnp.concatenate([zrow] + block_rows(C1), axis=0)            # (8, CP)
    w1_1 = padded(nrm((C1, CH1)), CP, CH1).astype(jnp.bfloat16)
    b1_1 = jnp.zeros((1, CH1), jnp.float32)
    w2_1 = padded(nrm((CH1, C1)), CH1, CP).astype(jnp.bfloat16)

    # ---- downsample (3x3 / s2): K densified to the true C1 channels per tap -
    dwn_w = padded(nrm((9 * C1, C2)), 9 * C1, CP).astype(jnp.bfloat16)
    sel = _downsample_select()                                          # (144, 64)

    # ---- stage 2 + head ------------------------------------------------------
    head_nw = lane_vec(jnp.ones((C2,), jnp.float32), C2)
    vec2 = jnp.concatenate(
        [zrow] + block_rows(C2) + [head_nw, zrow, zrow] + [zrow] * 5, axis=0)
    # (16, CP): 0 emb_bias, 1-7 block vecs, 8 head norm w, 9 head norm b,
    # 10 fc bias, 11-15 unused padding.
    w1_2 = padded(nrm((C2, CH2)), CP, CH2).astype(jnp.bfloat16)
    b1_2 = jnp.zeros((1, CH2), jnp.float32)
    w2_2 = padded(nrm((CH2, C2)), CH2, CP).astype(jnp.bfloat16)
    fc_w = padded(nrm((C2, NUM_CLASSES)), CP, CP).astype(jnp.bfloat16)

    return dict(stem_w=stem_w, vec1=vec1, w1_1=w1_1, b1_1=b1_1, w2_1=w2_1,
                sel=sel, dwn_w=dwn_w, vec2=vec2, w1_2=w1_2, b1_2=b1_2,
                w2_2=w2_2, fc_w=fc_w)


# ---------------------------------------------------------------------------
# Forward pass (NCHW in, (N, 30) logits out) — exactly ONE pallas_call
# ---------------------------------------------------------------------------
def poolformer_forward(x_nchw, p):
    n = x_nchw.shape[0]
    x = jnp.transpose(x_nchw, (0, 2, 3, 1)).astype(jnp.float32)

    # stem im2col (7x7 / s4 / p2) on the host; K padded to 256 lanes.
    patches, h1, w1 = _im2col(x, 7, 7, 4, 2)                 # (N, 8, 8, 147)
    assert (h1, w1) == (H1, W1)
    k = patches.shape[-1]
    patches = jnp.pad(patches, ((0, 0), (0, 0), (0, 0), (0, STEM_KPAD - k)))
    patches = patches.reshape(n, S1, STEM_KPAD).astype(jnp.bfloat16)

    kernel = functools.partial(_poolformer_kernel, H1, W1, H2, W2)
    const = lambda b: (0, 0)                                  # shared weights
    out = pl.pallas_call(
        kernel,
        out_shape=jax.ShapeDtypeStruct((n, 8, CP), jnp.float32),
        grid_spec=pltpu.PrefetchScalarGridSpec(
            num_scalar_prefetch=0,
            grid=(n,),
            in_specs=[
                pl.BlockSpec((1, S1, STEM_KPAD), lambda b: (b, 0, 0)),
                pl.BlockSpec((STEM_KPAD, CP), const),        # stem_w
                pl.BlockSpec((8, CP), const),                # vec1
                pl.BlockSpec((CP, CH1), const),              # w1_1
                pl.BlockSpec((1, CH1), const),               # b1_1
                pl.BlockSpec((CH1, CP), const),              # w2_1
                pl.BlockSpec((9 * S2, S1), const),           # sel
                pl.BlockSpec((9 * C1, CP), const),           # dwn_w
                pl.BlockSpec((16, CP), const),               # vec2
                pl.BlockSpec((CP, CH2), const),              # w1_2
                pl.BlockSpec((1, CH2), const),               # b1_2
                pl.BlockSpec((CH2, CP), const),              # w2_2
                pl.BlockSpec((CP, CP), const),               # fc_w
            ],
            out_specs=pl.BlockSpec((1, 8, CP), lambda b: (b, 0, 0)),
            scratch_shapes=[pltpu.VMEM((S1 + 2 * W1, CP), jnp.float32)],
        ),
        compiler_params=pltpu.CompilerParams(
            dimension_semantics=("parallel",)),
    )(patches, p["stem_w"], p["vec1"], p["w1_1"], p["b1_1"], p["w2_1"],
      p["sel"], p["dwn_w"], p["vec2"], p["w1_2"], p["b1_2"], p["w2_2"],
      p["fc_w"])

    return out[:, 0, :NUM_CLASSES]


# ---------------------------------------------------------------------------
if __name__ == "__main__":
    key = jax.random.PRNGKey(0)
    pkey, xkey = jax.random.split(key)
    params = init_params(pkey)

    # Small NCHW input consistent with the module's image-classifier forward.
    x = jax.random.normal(xkey, (2, 3, IMG, IMG), jnp.float32)

    logits = jax.jit(poolformer_forward)(x, params)
    jax.block_until_ready(logits)
    assert logits.shape == (2, NUM_CLASSES) and logits.dtype == jnp.float32
    print("KERNEL_OK")
</pallas_src>

<mosaic_0001>
module attributes {stable_mosaic.version = 11 : i64} {
  func.func @_poolformer_kernel(%arg0: i32, %arg1: memref<1x64x256xbf16, #tpu.memory_space<vmem>>, %arg2: memref<256x128xbf16, #tpu.memory_space<vmem>>, %arg3: memref<8x128xf32, #tpu.memory_space<vmem>>, %arg4: memref<128x128xbf16, #tpu.memory_space<vmem>>, %arg5: memref<1x128xf32, #tpu.memory_space<vmem>>, %arg6: memref<128x128xbf16, #tpu.memory_space<vmem>>, %arg7: memref<144x64xbf16, #tpu.memory_space<vmem>>, %arg8: memref<288x128xbf16, #tpu.memory_space<vmem>>, %arg9: memref<16x128xf32, #tpu.memory_space<vmem>>, %arg10: memref<128x256xbf16, #tpu.memory_space<vmem>>, %arg11: memref<1x256xf32, #tpu.memory_space<vmem>>, %arg12: memref<256x128xbf16, #tpu.memory_space<vmem>>, %arg13: memref<128x128xbf16, #tpu.memory_space<vmem>>, %arg14: memref<1x8x128xf32, #tpu.memory_space<vmem>>, %arg15: memref<80x128xf32, #tpu.memory_space<vmem>>) attributes {dimension_semantics = [#tpu.dimension_semantics<parallel>], iteration_bounds = array<i64: 2>, scalar_prefetch = 0 : i64, scratch_operands = 1 : i64, tpu.core_type = #tpu.core_type<tc>, window_params = [{transform_indices = @transform_0, window_bounds = array<i64: 1, 64, 256>}, {pipeline_mode = #tpu.pipeline_mode<synchronous>, transform_indices = @transform_1, window_bounds = array<i64: 256, 128>}, {pipeline_mode = #tpu.pipeline_mode<synchronous>, transform_indices = @transform_2, window_bounds = array<i64: 8, 128>}, {pipeline_mode = #tpu.pipeline_mode<synchronous>, transform_indices = @transform_3, window_bounds = array<i64: 128, 128>}, {pipeline_mode = #tpu.pipeline_mode<synchronous>, transform_indices = @transform_4, window_bounds = array<i64: 1, 128>}, {pipeline_mode = #tpu.pipeline_mode<synchronous>, transform_indices = @transform_5, window_bounds = array<i64: 128, 128>}, {pipeline_mode = #tpu.pipeline_mode<synchronous>, transform_indices = @transform_6, window_bounds = array<i64: 144, 64>}, {pipeline_mode = #tpu.pipeline_mode<synchronous>, transform_indices = @transform_7, window_bounds = array<i64: 288, 128>}, {pipeline_mode = #tpu.pipeline_mode<synchronous>, transform_indices = @transform_8, window_bounds = array<i64: 16, 128>}, {pipeline_mode = #tpu.pipeline_mode<synchronous>, transform_indices = @transform_9, window_bounds = array<i64: 128, 256>}, {pipeline_mode = #tpu.pipeline_mode<synchronous>, transform_indices = @transform_10, window_bounds = array<i64: 1, 256>}, {pipeline_mode = #tpu.pipeline_mode<synchronous>, transform_indices = @transform_11, window_bounds = array<i64: 256, 128>}, {pipeline_mode = #tpu.pipeline_mode<synchronous>, transform_indices = @transform_12, window_bounds = array<i64: 128, 128>}, {transform_indices = @transform_13, window_bounds = array<i64: 1, 8, 128>}]} {
    %c0 = arith.constant 0 : index
    %c0_0 = arith.constant 0 : index
    %0 = vector.load %arg3[%c0, %c0_0] : memref<8x128xf32, #tpu.memory_space<vmem>>, vector<8x128xf32>
    %c0_1 = arith.constant 0 : index
    %c0_2 = arith.constant 0 : index
    %1 = vector.load %arg9[%c0_1, %c0_2] : memref<16x128xf32, #tpu.memory_space<vmem>>, vector<16x128xf32>
    %c0_3 = arith.constant 0 : index
    %c0_4 = arith.constant 0 : index
    %c0_5 = arith.constant 0 : index
    %2 = vector.load %arg1[%c0_3, %c0_4, %c0_5] : memref<1x64x256xbf16, #tpu.memory_space<vmem>>, vector<1x64x256xbf16>
    %3 = vector.shape_cast %2 : vector<1x64x256xbf16> to vector<64x256xbf16>
    %c0_6 = arith.constant 0 : index
    %c0_7 = arith.constant 0 : index
    %4 = vector.load %arg2[%c0_6, %c0_7] : memref<256x128xbf16, #tpu.memory_space<vmem>>, vector<256x128xbf16>
    %cst = arith.constant dense<0.000000e+00> : vector<64x128xf32>
    %5 = tpu.matmul %3, %4, %cst {dimension_numbers = #tpu.dot_dimension_numbers<[1], [0], [0], [1], [0, 0, 1, 1], [], []>} : vector<64x256xbf16>, vector<256x128xbf16>, vector<64x128xf32> -> vector<64x128xf32>
    %6 = vector.extract_strided_slice %0 {offsets = [0, 0], sizes = [1, 128], strides = [1, 1]} : vector<8x128xf32> to vector<1x128xf32>
    %7 = vector.broadcast %6 : vector<1x128xf32> to vector<64x128xf32>
    %8 = arith.addf %5, %7 : vector<64x128xf32>
    %c0_8 = arith.constant 0 : index
    %c0_9 = arith.constant 0 : index
    %9 = vector.load %arg4[%c0_8, %c0_9] : memref<128x128xbf16, #tpu.memory_space<vmem>>, vector<128x128xbf16>
    %c0_10 = arith.constant 0 : index
    %c0_11 = arith.constant 0 : index
    %10 = vector.load %arg5[%c0_10, %c0_11] : memref<1x128xf32, #tpu.memory_space<vmem>>, vector<1x128xf32>
    %c0_12 = arith.constant 0 : index
    %c0_13 = arith.constant 0 : index
    %11 = vector.load %arg6[%c0_12, %c0_13] : memref<128x128xbf16, #tpu.memory_space<vmem>>, vector<128x128xbf16>
    %12 = vector.extract_strided_slice %0 {offsets = [1, 0], sizes = [1, 128], strides = [1, 1]} : vector<8x128xf32> to vector<1x128xf32>
    %13 = vector.extract_strided_slice %0 {offsets = [2, 0], sizes = [1, 128], strides = [1, 1]} : vector<8x128xf32> to vector<1x128xf32>
    %14 = vector.extract_strided_slice %0 {offsets = [3, 0], sizes = [1, 128], strides = [1, 1]} : vector<8x128xf32> to vector<1x128xf32>
    %15 = vector.extract_strided_slice %0 {offsets = [4, 0], sizes = [1, 128], strides = [1, 1]} : vector<8x128xf32> to vector<1x128xf32>
    %16 = vector.extract_strided_slice %0 {offsets = [5, 0], sizes = [1, 128], strides = [1, 1]} : vector<8x128xf32> to vector<1x128xf32>
    %17 = vector.extract_strided_slice %0 {offsets = [6, 0], sizes = [1, 128], strides = [1, 1]} : vector<8x128xf32> to vector<1x128xf32>
    %18 = vector.extract_strided_slice %0 {offsets = [7, 0], sizes = [1, 128], strides = [1, 1]} : vector<8x128xf32> to vector<1x128xf32>
    %19 = vector.shape_cast %8 : vector<64x128xf32> to vector<1x64x128xf32>
    %cst_14 = arith.constant dense<0.000000e+00> : vector<1xf32>
    %20 = vector.multi_reduction <add>, %19, %cst_14 [1, 2] : vector<1x64x128xf32> to vector<1xf32>
    %21 = vector.shape_cast %20 : vector<1xf32> to vector<1x1x1xf32>
    %22 = vector.extract %21[0, 0, 0] : f32 from vector<1x1x1xf32>
    %23 = vector.broadcast %22 : f32 to vector<1x1xf32>
    %cst_15 = arith.constant 4.8828125E-4 : f32
    %24 = vector.broadcast %cst_15 : f32 to vector<1x1xf32>
    %25 = arith.mulf %23, %24 : vector<1x1xf32>
    %26 = arith.mulf %8, %8 : vector<64x128xf32>
    %27 = vector.shape_cast %26 : vector<64x128xf32> to vector<1x64x128xf32>
    %cst_16 = arith.constant dense<0.000000e+00> : vector<1xf32>
    %28 = vector.multi_reduction <add>, %27, %cst_16 [1, 2] : vector<1x64x128xf32> to vector<1xf32>
    %29 = vector.shape_cast %28 : vector<1xf32> to vector<1x1x1xf32>
    %30 = vector.extract %29[0, 0, 0] : f32 from vector<1x1x1xf32>
    %31 = vector.broadcast %30 : f32 to vector<1x1xf32>
    %cst_17 = arith.constant 4.8828125E-4 : f32
    %32 = vector.broadcast %cst_17 : f32 to vector<1x1xf32>
    %33 = arith.mulf %31, %32 : vector<1x1xf32>
    %34 = arith.mulf %25, %25 : vector<1x1xf32>
    %35 = arith.subf %33, %34 : vector<1x1xf32>
    %36 = vector.broadcast %25 : vector<1x1xf32> to vector<64x128xf32>
    %37 = arith.subf %8, %36 : vector<64x128xf32>
    %cst_18 = arith.constant 9.99999974E-6 : f32
    %38 = vector.broadcast %cst_18 : f32 to vector<1x1xf32>
    %39 = arith.addf %35, %38 : vector<1x1xf32>
    %40 = math.rsqrt %39 : vector<1x1xf32>
    %41 = vector.broadcast %40 : vector<1x1xf32> to vector<64x128xf32>
    %42 = arith.mulf %37, %41 : vector<64x128xf32>
    %43 = vector.broadcast %12 : vector<1x128xf32> to vector<64x128xf32>
    %44 = arith.mulf %42, %43 : vector<64x128xf32>
    %45 = vector.broadcast %13 : vector<1x128xf32> to vector<64x128xf32>
    %46 = arith.addf %44, %45 : vector<64x128xf32>
    %cst_19 = arith.constant 0.000000e+00 : f32
    %47 = vector.broadcast %cst_19 : f32 to vector<80x128xf32>
    %c0_20 = arith.constant 0 : index
    %c0_21 = arith.constant 0 : index
    %48 = vector.load %arg15[%c0_20, %c0_21] : memref<80x128xf32, #tpu.memory_space<vmem>>, vector<80x128xf32>
    tpu.vector_store %arg15[%c0_20, %c0_21], %47 {strides = array<i32>} : memref<80x128xf32, #tpu.memory_space<vmem>>, vector<80x128xf32>,
    %c8 = arith.constant 8 : index
    %c0_22 = arith.constant 0 : index
    %49 = vector.load %arg15[%c8, %c0_22] : memref<80x128xf32, #tpu.memory_space<vmem>>, vector<64x128xf32>
    tpu.vector_store %arg15[%c8, %c0_22], %46 {strides = array<i32>} : memref<80x128xf32, #tpu.memory_space<vmem>>, vector<64x128xf32>,
    %c0_23 = arith.constant 0 : index
    %c0_24 = arith.constant 0 : index
    %50 = vector.load %arg15[%c0_23, %c0_24] : memref<80x128xf32, #tpu.memory_space<vmem>>, vector<64x128xf32>
    %51 = arith.addf %46, %50 : vector<64x128xf32>
    %c16 = arith.constant 16 : index
    %c0_25 = arith.constant 0 : index
    %52 = vector.load %arg15[%c16, %c0_25] : memref<80x128xf32, #tpu.memory_space<vmem>>, vector<64x128xf32>
    %53 = arith.addf %51, %52 : vector<64x128xf32>
    %c8_26 = arith.constant 8 : index
    %c0_27 = arith.constant 0 : index
    %54 = vector.load %arg15[%c8_26, %c0_27] : memref<80x128xf32, #tpu.memory_space<vmem>>, vector<64x128xf32>
    tpu.vector_store %arg15[%c8_26, %c0_27], %53 {strides = array<i32>} : memref<80x128xf32, #tpu.memory_space<vmem>>, vector<64x128xf32>,
    %c7 = arith.constant 7 : index
    %c0_28 = arith.constant 0 : index
    %55 = vector.load %arg15[%c7, %c0_28] : memref<80x128xf32, #tpu.memory_space<vmem>>, vector<64x128xf32>
    %c9 = arith.constant 9 : index
    %c0_29 = arith.constant 0 : index
    %56 = vector.load %arg15[%c9, %c0_29] : memref<80x128xf32, #tpu.memory_space<vmem>>, vector<64x128xf32>
    %57 = tpu.iota {dimensions = array<i32: 0>} : vector<64x128xi32>
    %c7_i32 = arith.constant 7 : i32
    %58 = vector.broadcast %c7_i32 : i32 to vector<64x128xi32>
    %59 = arith.andi %57, %58 : vector<64x128xi32>
    %c0_i32 = arith.constant 0 : i32
    %60 = vector.broadcast %c0_i32 : i32 to vector<64x128xi32>
    %61 = arith.cmpi sgt, %59, %60 : vector<64x128xi32>
    %cst_30 = arith.constant 0.000000e+00 : f32
    %62 = vector.broadcast %cst_30 : f32 to vector<64x128xf32>
    %63 = arith.select %61, %55, %62 : vector<64x128xi1>, vector<64x128xf32>
    %64 = arith.addf %53, %63 : vector<64x128xf32>
    %c7_i32_31 = arith.constant 7 : i32
    %65 = vector.broadcast %c7_i32_31 : i32 to vector<64x128xi32>
    %66 = arith.cmpi slt, %59, %65 : vector<64x128xi32>
    %cst_32 = arith.constant 0.000000e+00 : f32
    %67 = vector.broadcast %cst_32 : f32 to vector<64x128xf32>
    %68 = arith.select %66, %56, %67 : vector<64x128xi1>, vector<64x128xf32>
    %69 = arith.addf %64, %68 : vector<64x128xf32>
    %c8_i32 = arith.constant 8 : i32
    %70 = vector.broadcast %c8_i32 : i32 to vector<64x128xi32>
    %71 = arith.cmpi slt, %57, %70 : vector<64x128xi32>
    %72 = arith.extui %71 : vector<64x128xi1> to vector<64x128xi32>
    %c3_i32 = arith.constant 3 : i32
    %73 = vector.broadcast %c3_i32 : i32 to vector<64x128xi32>
    %74 = arith.subi %73, %72 : vector<64x128xi32>
    %c56_i32 = arith.constant 56 : i32
    %75 = vector.broadcast %c56_i32 : i32 to vector<64x128xi32>
    %76 = arith.cmpi sge, %57, %75 : vector<64x128xi32>
    %77 = arith.extui %76 : vector<64x128xi1> to vector<64x128xi32>
    %78 = arith.subi %74, %77 : vector<64x128xi32>
    %c0_i32_33 = arith.constant 0 : i32
    %79 = vector.broadcast %c0_i32_33 : i32 to vector<64x128xi32>
    %80 = arith.cmpi eq, %59, %79 : vector<64x128xi32>
    %81 = arith.extui %80 : vector<64x128xi1> to vector<64x128xi32>
    %c3_i32_34 = arith.constant 3 : i32
    %82 = vector.broadcast %c3_i32_34 : i32 to vector<64x128xi32>
    %83 = arith.subi %82, %81 : vector<64x128xi32>
    %c7_i32_35 = arith.constant 7 : i32
    %84 = vector.broadcast %c7_i32_35 : i32 to vector<64x128xi32>
    %85 = arith.cmpi eq, %59, %84 : vector<64x128xi32>
    %86 = arith.extui %85 : vector<64x128xi1> to vector<64x128xi32>
    %87 = arith.subi %83, %86 : vector<64x128xi32>
    %88 = arith.muli %78, %87 : vector<64x128xi32>
    %89 = arith.sitofp %88 : vector<64x128xi32> to vector<64x128xf32>
    %90 = arith.divf %69, %89 : vector<64x128xf32>
    %91 = arith.subf %90, %46 : vector<64x128xf32>
    %92 = vector.broadcast %14 : vector<1x128xf32> to vector<64x128xf32>
    %93 = arith.mulf %92, %91 : vector<64x128xf32>
    %94 = arith.addf %8, %93 : vector<64x128xf32>
    %95 = vector.shape_cast %94 : vector<64x128xf32> to vector<1x64x128xf32>
    %cst_36 = arith.constant dense<0.000000e+00> : vector<1xf32>
    %96 = vector.multi_reduction <add>, %95, %cst_36 [1, 2] : vector<1x64x128xf32> to vector<1xf32>
    %97 = vector.shape_cast %96 : vector<1xf32> to vector<1x1x1xf32>
    %98 = vector.extract %97[0, 0, 0] : f32 from vector<1x1x1xf32>
    %99 = vector.broadcast %98 : f32 to vector<1x1xf32>
    %cst_37 = arith.constant 4.8828125E-4 : f32
    %100 = vector.broadcast %cst_37 : f32 to vector<1x1xf32>
    %101 = arith.mulf %99, %100 : vector<1x1xf32>
    %102 = arith.mulf %94, %94 : vector<64x128xf32>
    %103 = vector.shape_cast %102 : vector<64x128xf32> to vector<1x64x128xf32>
    %cst_38 = arith.constant dense<0.000000e+00> : vector<1xf32>
    %104 = vector.multi_reduction <add>, %103, %cst_38 [1, 2] : vector<1x64x128xf32> to vector<1xf32>
    %105 = vector.shape_cast %104 : vector<1xf32> to vector<1x1x1xf32>
    %106 = vector.extract %105[0, 0, 0] : f32 from vector<1x1x1xf32>
    %107 = vector.broadcast %106 : f32 to vector<1x1xf32>
    %cst_39 = arith.constant 4.8828125E-4 : f32
    %108 = vector.broadcast %cst_39 : f32 to vector<1x1xf32>
    %109 = arith.mulf %107, %108 : vector<1x1xf32>
    %110 = arith.mulf %101, %101 : vector<1x1xf32>
    %111 = arith.subf %109, %110 : vector<1x1xf32>
    %112 = vector.broadcast %101 : vector<1x1xf32> to vector<64x128xf32>
    %113 = arith.subf %94, %112 : vector<64x128xf32>
    %cst_40 = arith.constant 9.99999974E-6 : f32
    %114 = vector.broadcast %cst_40 : f32 to vector<1x1xf32>
    %115 = arith.addf %111, %114 : vector<1x1xf32>
    %116 = math.rsqrt %115 : vector<1x1xf32>
    %117 = vector.broadcast %116 : vector<1x1xf32> to vector<64x128xf32>
    %118 = arith.mulf %113, %117 : vector<64x128xf32>
    %119 = vector.broadcast %15 : vector<1x128xf32> to vector<64x128xf32>
    %120 = arith.mulf %118, %119 : vector<64x128xf32>
    %121 = vector.broadcast %16 : vector<1x128xf32> to vector<64x128xf32>
    %122 = arith.addf %120, %121 : vector<64x128xf32>
    %123 = arith.truncf %122 : vector<64x128xf32> to vector<64x128xbf16>
    %cst_41 = arith.constant dense<0.000000e+00> : vector<64x128xf32>
    %124 = tpu.matmul %123, %9, %cst_41 {dimension_numbers = #tpu.dot_dimension_numbers<[1], [0], [0], [1], [0, 0, 1, 1], [], []>} : vector<64x128xbf16>, vector<128x128xbf16>, vector<64x128xf32> -> vector<64x128xf32>
    %125 = vector.broadcast %10 : vector<1x128xf32> to vector<64x128xf32>
    %126 = arith.addf %124, %125 : vector<64x128xf32>
    %127 = arith.mulf %126, %126 : vector<64x128xf32>
    %128 = arith.mulf %126, %127 : vector<64x128xf32>
    %cst_42 = arith.constant 4.471500e-02 : f32
    %129 = vector.broadcast %cst_42 : f32 to vector<64x128xf32>
    %130 = arith.mulf %129, %128 : vector<64x128xf32>
    %131 = arith.addf %126, %130 : vector<64x128xf32>
    %cst_43 = arith.constant 0.797884583 : f32
    %132 = vector.broadcast %cst_43 : f32 to vector<64x128xf32>
    %133 = arith.mulf %132, %131 : vector<64x128xf32>
    %134 = math.tanh %133 : vector<64x128xf32>
    %cst_44 = arith.constant 1.000000e+00 : f32
    %135 = vector.broadcast %cst_44 : f32 to vector<64x128xf32>
    %136 = arith.addf %135, %134 : vector<64x128xf32>
    %cst_45 = arith.constant 5.000000e-01 : f32
    %137 = vector.broadcast %cst_45 : f32 to vector<64x128xf32>
    %138 = arith.mulf %137, %136 : vector<64x128xf32>
    %139 = arith.mulf %126, %138 : vector<64x128xf32>
    %140 = arith.truncf %139 : vector<64x128xf32> to vector<64x128xbf16>
    %cst_46 = arith.constant dense<0.000000e+00> : vector<64x128xf32>
    %141 = tpu.matmul %140, %11, %cst_46 {dimension_numbers = #tpu.dot_dimension_numbers<[1], [0], [0], [1], [0, 0, 1, 1], [], []>} : vector<64x128xbf16>, vector<128x128xbf16>, vector<64x128xf32> -> vector<64x128xf32>
    %142 = vector.broadcast %18 : vector<1x128xf32> to vector<64x128xf32>
    %143 = arith.addf %141, %142 : vector<64x128xf32>
    %144 = vector.broadcast %17 : vector<1x128xf32> to vector<64x128xf32>
    %145 = arith.mulf %144, %143 : vector<64x128xf32>
    %146 = arith.addf %94, %145 : vector<64x128xf32>
    %147 = vector.extract_strided_slice %146 {offsets = [0, 0], sizes = [64, 32], strides = [1, 1]} : vector<64x128xf32> to vector<64x32xf32>
    %148 = arith.truncf %147 : vector<64x32xf32> to vector<64x32xbf16>
    %c0_47 = arith.constant 0 : index
    %c0_48 = arith.constant 0 : index
    %149 = vector.load %arg7[%c0_47, %c0_48] : memref<144x64xbf16, #tpu.memory_space<vmem>>, vector<144x64xbf16>
    %cst_49 = arith.constant dense<0.000000e+00> : vector<144x32xf32>
    %150 = tpu.matmul %149, %148, %cst_49 {dimension_numbers = #tpu.dot_dimension_numbers<[1], [0], [0], [1], [0, 0, 1, 1], [], []>} : vector<144x64xbf16>, vector<64x32xbf16>, vector<144x32xf32> -> vector<144x32xf32>
    %c0_50 = arith.constant 0 : index
    %c0_51 = arith.constant 0 : index
    %151 = vector.load %arg8[%c0_50, %c0_51] : memref<288x128xbf16, #tpu.memory_space<vmem>>, vector<288x128xbf16>
    %cst_52 = arith.constant 0.000000e+00 : f32
    %152 = vector.broadcast %cst_52 : f32 to vector<16x128xf32>
    %153 = vector.extract_strided_slice %150 {offsets = [0, 0], sizes = [16, 32], strides = [1, 1]} : vector<144x32xf32> to vector<16x32xf32>
    %154 = arith.truncf %153 : vector<16x32xf32> to vector<16x32xbf16>
    %155 = vector.extract_strided_slice %151 {offsets = [0, 0], sizes = [32, 128], strides = [1, 1]} : vector<288x128xbf16> to vector<32x128xbf16>
    %cst_53 = arith.constant dense<0.000000e+00> : vector<16x128xf32>
    %156 = tpu.matmul %154, %155, %cst_53 {dimension_numbers = #tpu.dot_dimension_numbers<[1], [0], [0], [1], [0, 0, 1, 1], [], []>} : vector<16x32xbf16>, vector<32x128xbf16>, vector<16x128xf32> -> vector<16x128xf32>
    %157 = arith.addf %152, %156 : vector<16x128xf32>
    %158 = vector.extract_strided_slice %150 {offsets = [16, 0], sizes = [16, 32], strides = [1, 1]} : vector<144x32xf32> to vector<16x32xf32>
    %159 = arith.truncf %158 : vector<16x32xf32> to vector<16x32xbf16>
    %160 = vector.extract_strided_slice %151 {offsets = [32, 0], sizes = [32, 128], strides = [1, 1]} : vector<288x128xbf16> to vector<32x128xbf16>
    %cst_54 = arith.constant dense<0.000000e+00> : vector<16x128xf32>
    %161 = tpu.matmul %159, %160, %cst_54 {dimension_numbers = #tpu.dot_dimension_numbers<[1], [0], [0], [1], [0, 0, 1, 1], [], []>} : vector<16x32xbf16>, vector<32x128xbf16>, vector<16x128xf32> -> vector<16x128xf32>
    %162 = arith.addf %157, %161 : vector<16x128xf32>
    %163 = vector.extract_strided_slice %150 {offsets = [32, 0], sizes = [16, 32], strides = [1, 1]} : vector<144x32xf32> to vector<16x32xf32>
    %164 = arith.truncf %163 : vector<16x32xf32> to vector<16x32xbf16>
    %165 = vector.extract_strided_slice %151 {offsets = [64, 0], sizes = [32, 128], strides = [1, 1]} : vector<288x128xbf16> to vector<32x128xbf16>
    %cst_55 = arith.constant dense<0.000000e+00> : vector<16x128xf32>
    %166 = tpu.matmul %164, %165, %cst_55 {dimension_numbers = #tpu.dot_dimension_numbers<[1], [0], [0], [1], [0, 0, 1, 1], [], []>} : vector<16x32xbf16>, vector<32x128xbf16>, vector<16x128xf32> -> vector<16x128xf32>
    %167 = arith.addf %162, %166 : vector<16x128xf32>
    %168 = vector.extract_strided_slice %150 {offsets = [48, 0], sizes = [16, 32], strides = [1, 1]} : vector<144x32xf32> to vector<16x32xf32>
    %169 = arith.truncf %168 : vector<16x32xf32> to vector<16x32xbf16>
    %170 = vector.extract_strided_slice %151 {offsets = [96, 0], sizes = [32, 128], strides = [1, 1]} : vector<288x128xbf16> to vector<32x128xbf16>
    %cst_56 = arith.constant dense<0.000000e+00> : vector<16x128xf32>
    %171 = tpu.matmul %169, %170, %cst_56 {dimension_numbers = #tpu.dot_dimension_numbers<[1], [0], [0], [1], [0, 0, 1, 1], [], []>} : vector<16x32xbf16>, vector<32x128xbf16>, vector<16x128xf32> -> vector<16x128xf32>
    %172 = arith.addf %167, %171 : vector<16x128xf32>
    %173 = vector.extract_strided_slice %150 {offsets = [64, 0], sizes = [16, 32], strides = [1, 1]} : vector<144x32xf32> to vector<16x32xf32>
    %174 = arith.truncf %173 : vector<16x32xf32> to vector<16x32xbf16>
    %175 = vector.extract_strided_slice %151 {offsets = [128, 0], sizes = [32, 128], strides = [1, 1]} : vector<288x128xbf16> to vector<32x128xbf16>
    %cst_57 = arith.constant dense<0.000000e+00> : vector<16x128xf32>
    %176 = tpu.matmul %174, %175, %cst_57 {dimension_numbers = #tpu.dot_dimension_numbers<[1], [0], [0], [1], [0, 0, 1, 1], [], []>} : vector<16x32xbf16>, vector<32x128xbf16>, vector<16x128xf32> -> vector<16x128xf32>
    %177 = arith.addf %172, %176 : vector<16x128xf32>
    %178 = vector.extract_strided_slice %150 {offsets = [80, 0], sizes = [16, 32], strides = [1, 1]} : vector<144x32xf32> to vector<16x32xf32>
    %179 = arith.truncf %178 : vector<16x32xf32> to vector<16x32xbf16>
    %180 = vector.extract_strided_slice %151 {offsets = [160, 0], sizes = [32, 128], strides = [1, 1]} : vector<288x128xbf16> to vector<32x128xbf16>
    %cst_58 = arith.constant dense<0.000000e+00> : vector<16x128xf32>
    %181 = tpu.matmul %179, %180, %cst_58 {dimension_numbers = #tpu.dot_dimension_numbers<[1], [0], [0], [1], [0, 0, 1, 1], [], []>} : vector<16x32xbf16>, vector<32x128xbf16>, vector<16x128xf32> -> vector<16x128xf32>
    %182 = arith.addf %177, %181 : vector<16x128xf32>
    %183 = vector.extract_strided_slice %150 {offsets = [96, 0], sizes = [16, 32], strides = [1, 1]} : vector<144x32xf32> to vector<16x32xf32>
    %184 = arith.truncf %183 : vector<16x32xf32> to vector<16x32xbf16>
    %185 = vector.extract_strided_slice %151 {offsets = [192, 0], sizes = [32, 128], strides = [1, 1]} : vector<288x128xbf16> to vector<32x128xbf16>
    %cst_59 = arith.constant dense<0.000000e+00> : vector<16x128xf32>
    %186 = tpu.matmul %184, %185, %cst_59 {dimension_numbers = #tpu.dot_dimension_numbers<[1], [0], [0], [1], [0, 0, 1, 1], [], []>} : vector<16x32xbf16>, vector<32x128xbf16>, vector<16x128xf32> -> vector<16x128xf32>
    %187 = arith.addf %182, %186 : vector<16x128xf32>
    %188 = vector.extract_strided_slice %150 {offsets = [112, 0], sizes = [16, 32], strides = [1, 1]} : vector<144x32xf32> to vector<16x32xf32>
    %189 = arith.truncf %188 : vector<16x32xf32> to vector<16x32xbf16>
    %190 = vector.extract_strided_slice %151 {offsets = [224, 0], sizes = [32, 128], strides = [1, 1]} : vector<288x128xbf16> to vector<32x128xbf16>
    %cst_60 = arith.constant dense<0.000000e+00> : vector<16x128xf32>
    %191 = tpu.matmul %189, %190, %cst_60 {dimension_numbers = #tpu.dot_dimension_numbers<[1], [0], [0], [1], [0, 0, 1, 1], [], []>} : vector<16x32xbf16>, vector<32x128xbf16>, vector<16x128xf32> -> vector<16x128xf32>
    %192 = arith.addf %187, %191 : vector<16x128xf32>
    %193 = vector.extract_strided_slice %150 {offsets = [128, 0], sizes = [16, 32], strides = [1, 1]} : vector<144x32xf32> to vector<16x32xf32>
    %194 = arith.truncf %193 : vector<16x32xf32> to vector<16x32xbf16>
    %195 = vector.extract_strided_slice %151 {offsets = [256, 0], sizes = [32, 128], strides = [1, 1]} : vector<288x128xbf16> to vector<32x128xbf16>
    %cst_61 = arith.constant dense<0.000000e+00> : vector<16x128xf32>
    %196 = tpu.matmul %194, %195, %cst_61 {dimension_numbers = #tpu.dot_dimension_numbers<[1], [0], [0], [1], [0, 0, 1, 1], [], []>} : vector<16x32xbf16>, vector<32x128xbf16>, vector<16x128xf32> -> vector<16x128xf32>
    %197 = arith.addf %192, %196 : vector<16x128xf32>
    %198 = vector.extract_strided_slice %1 {offsets = [0, 0], sizes = [1, 128], strides = [1, 1]} : vector<16x128xf32> to vector<1x128xf32>
    %199 = vector.broadcast %198 : vector<1x128xf32> to vector<16x128xf32>
    %200 = arith.addf %197, %199 : vector<16x128xf32>
    %c0_62 = arith.constant 0 : index
    %c0_63 = arith.constant 0 : index
    %201 = vector.load %arg10[%c0_62, %c0_63] : memref<128x256xbf16, #tpu.memory_space<vmem>>, vector<128x256xbf16>
    %c0_64 = arith.constant 0 : index
    %c0_65 = arith.constant 0 : index
    %202 = vector.load %arg11[%c0_64, %c0_65] : memref<1x256xf32, #tpu.memory_space<vmem>>, vector<1x256xf32>
    %c0_66 = arith.constant 0 : index
    %c0_67 = arith.constant 0 : index
    %203 = vector.load %arg12[%c0_66, %c0_67] : memref<256x128xbf16, #tpu.memory_space<vmem>>, vector<256x128xbf16>
    %204 = vector.extract_strided_slice %1 {offsets = [1, 0], sizes = [1, 128], strides = [1, 1]} : vector<16x128xf32> to vector<1x128xf32>
    %205 = vector.extract_strided_slice %1 {offsets = [2, 0], sizes = [1, 128], strides = [1, 1]} : vector<16x128xf32> to vector<1x128xf32>
    %206 = vector.extract_strided_slice %1 {offsets = [3, 0], sizes = [1, 128], strides = [1, 1]} : vector<16x128xf32> to vector<1x128xf32>
    %207 = vector.extract_strided_slice %1 {offsets = [4, 0], sizes = [1, 128], strides = [1, 1]} : vector<16x128xf32> to vector<1x128xf32>
    %208 = vector.extract_strided_slice %1 {offsets = [5, 0], sizes = [1, 128], strides = [1, 1]} : vector<16x128xf32> to vector<1x128xf32>
    %209 = vector.extract_strided_slice %1 {offsets = [6, 0], sizes = [1, 128], strides = [1, 1]} : vector<16x128xf32> to vector<1x128xf32>
    %210 = vector.extract_strided_slice %1 {offsets = [7, 0], sizes = [1, 128], strides = [1, 1]} : vector<16x128xf32> to vector<1x128xf32>
    %211 = vector.shape_cast %200 : vector<16x128xf32> to vector<1x16x128xf32>
    %cst_68 = arith.constant dense<0.000000e+00> : vector<1xf32>
    %212 = vector.multi_reduction <add>, %211, %cst_68 [1, 2] : vector<1x16x128xf32> to vector<1xf32>
    %213 = vector.shape_cast %212 : vector<1xf32> to vector<1x1x1xf32>
    %214 = vector.extract %213[0, 0, 0] : f32 from vector<1x1x1xf32>
    %215 = vector.broadcast %214 : f32 to vector<1x1xf32>
    %cst_69 = arith.constant 9.765625E-4 : f32
    %216 = vector.broadcast %cst_69 : f32 to vector<1x1xf32>
    %217 = arith.mulf %215, %216 : vector<1x1xf32>
    %218 = arith.mulf %200, %200 : vector<16x128xf32>
    %219 = vector.shape_cast %218 : vector<16x128xf32> to vector<1x16x128xf32>
    %cst_70 = arith.constant dense<0.000000e+00> : vector<1xf32>
    %220 = vector.multi_reduction <add>, %219, %cst_70 [1, 2] : vector<1x16x128xf32> to vector<1xf32>
    %221 = vector.shape_cast %220 : vector<1xf32> to vector<1x1x1xf32>
    %222 = vector.extract %221[0, 0, 0] : f32 from vector<1x1x1xf32>
    %223 = vector.broadcast %222 : f32 to vector<1x1xf32>
    %cst_71 = arith.constant 9.765625E-4 : f32
    %224 = vector.broadcast %cst_71 : f32 to vector<1x1xf32>
    %225 = arith.mulf %223, %224 : vector<1x1xf32>
    %226 = arith.mulf %217, %217 : vector<1x1xf32>
    %227 = arith.subf %225, %226 : vector<1x1xf32>
    %228 = vector.broadcast %217 : vector<1x1xf32> to vector<16x128xf32>
    %229 = arith.subf %200, %228 : vector<16x128xf32>
    %cst_72 = arith.constant 9.99999974E-6 : f32
    %230 = vector.broadcast %cst_72 : f32 to vector<1x1xf32>
    %231 = arith.addf %227, %230 : vector<1x1xf32>
    %232 = math.rsqrt %231 : vector<1x1xf32>
    %233 = vector.broadcast %232 : vector<1x1xf32> to vector<16x128xf32>
    %234 = arith.mulf %229, %233 : vector<16x128xf32>
    %235 = vector.broadcast %204 : vector<1x128xf32> to vector<16x128xf32>
    %236 = arith.mulf %234, %235 : vector<16x128xf32>
    %237 = vector.broadcast %205 : vector<1x128xf32> to vector<16x128xf32>
    %238 = arith.addf %236, %237 : vector<16x128xf32>
    %cst_73 = arith.constant 0.000000e+00 : f32
    %239 = vector.broadcast %cst_73 : f32 to vector<80x128xf32>
    %c0_74 = arith.constant 0 : index
    %c0_75 = arith.constant 0 : index
    %240 = vector.load %arg15[%c0_74, %c0_75] : memref<80x128xf32, #tpu.memory_space<vmem>>, vector<80x128xf32>
    tpu.vector_store %arg15[%c0_74, %c0_75], %239 {strides = array<i32>} : memref<80x128xf32, #tpu.memory_space<vmem>>, vector<80x128xf32>,
    %c4 = arith.constant 4 : index
    %c0_76 = arith.constant 0 : index
    %241 = vector.load %arg15[%c4, %c0_76] : memref<80x128xf32, #tpu.memory_space<vmem>>, vector<16x128xf32>
    tpu.vector_store %arg15[%c4, %c0_76], %238 {strides = array<i32>} : memref<80x128xf32, #tpu.memory_space<vmem>>, vector<16x128xf32>,
    %c0_77 = arith.constant 0 : index
    %c0_78 = arith.constant 0 : index
    %242 = vector.load %arg15[%c0_77, %c0_78] : memref<80x128xf32, #tpu.memory_space<vmem>>, vector<16x128xf32>
    %243 = arith.addf %238, %242 : vector<16x128xf32>
    %c8_79 = arith.constant 8 : index
    %c0_80 = arith.constant 0 : index
    %244 = vector.load %arg15[%c8_79, %c0_80] : memref<80x128xf32, #tpu.memory_space<vmem>>, vector<16x128xf32>
    %245 = arith.addf %243, %244 : vector<16x128xf32>
    %c4_81 = arith.constant 4 : index
    %c0_82 = arith.constant 0 : index
    %246 = vector.load %arg15[%c4_81, %c0_82] : memref<80x128xf32, #tpu.memory_space<vmem>>, vector<16x128xf32>
    tpu.vector_store %arg15[%c4_81, %c0_82], %245 {strides = array<i32>} : memref<80x128xf32, #tpu.memory_space<vmem>>, vector<16x128xf32>,
    %c3 = arith.constant 3 : index
    %c0_83 = arith.constant 0 : index
    %247 = vector.load %arg15[%c3, %c0_83] : memref<80x128xf32, #tpu.memory_space<vmem>>, vector<16x128xf32>
    %c5 = arith.constant 5 : index
    %c0_84 = arith.constant 0 : index
    %248 = vector.load %arg15[%c5, %c0_84] : memref<80x128xf32, #tpu.memory_space<vmem>>, vector<16x128xf32>
    %249 = tpu.iota {dimensions = array<i32: 0>} : vector<16x128xi32>
    %c3_i32_85 = arith.constant 3 : i32
    %250 = vector.broadcast %c3_i32_85 : i32 to vector<16x128xi32>
    %251 = arith.andi %249, %250 : vector<16x128xi32>
    %c0_i32_86 = arith.constant 0 : i32
    %252 = vector.broadcast %c0_i32_86 : i32 to vector<16x128xi32>
    %253 = arith.cmpi sgt, %251, %252 : vector<16x128xi32>
    %cst_87 = arith.constant 0.000000e+00 : f32
    %254 = vector.broadcast %cst_87 : f32 to vector<16x128xf32>
    %255 = arith.select %253, %247, %254 : vector<16x128xi1>, vector<16x128xf32>
    %256 = arith.addf %245, %255 : vector<16x128xf32>
    %c3_i32_88 = arith.constant 3 : i32
    %257 = vector.broadcast %c3_i32_88 : i32 to vector<16x128xi32>
    %258 = arith.cmpi slt, %251, %257 : vector<16x128xi32>
    %cst_89 = arith.constant 0.000000e+00 : f32
    %259 = vector.broadcast %cst_89 : f32 to vector<16x128xf32>
    %260 = arith.select %258, %248, %259 : vector<16x128xi1>, vector<16x128xf32>
    %261 = arith.addf %256, %260 : vector<16x128xf32>
    %c4_i32 = arith.constant 4 : i32
    %262 = vector.broadcast %c4_i32 : i32 to vector<16x128xi32>
    %263 = arith.cmpi slt, %249, %262 : vector<16x128xi32>
    %264 = arith.extui %263 : vector<16x128xi1> to vector<16x128xi32>
    %c3_i32_90 = arith.constant 3 : i32
    %265 = vector.broadcast %c3_i32_90 : i32 to vector<16x128xi32>
    %266 = arith.subi %265, %264 : vector<16x128xi32>
    %c12_i32 = arith.constant 12 : i32
    %267 = vector.broadcast %c12_i32 : i32 to vector<16x128xi32>
    %268 = arith.cmpi sge, %249, %267 : vector<16x128xi32>
    %269 = arith.extui %268 : vector<16x128xi1> to vector<16x128xi32>
    %270 = arith.subi %266, %269 : vector<16x128xi32>
    %c0_i32_91 = arith.constant 0 : i32
    %271 = vector.broadcast %c0_i32_91 : i32 to vector<16x128xi32>
    %272 = arith.cmpi eq, %251, %271 : vector<16x128xi32>
    %273 = arith.extui %272 : vector<16x128xi1> to vector<16x128xi32>
    %c3_i32_92 = arith.constant 3 : i32
    %274 = vector.broadcast %c3_i32_92 : i32 to vector<16x128xi32>
    %275 = arith.subi %274, %273 : vector<16x128xi32>
    %c3_i32_93 = arith.constant 3 : i32
    %276 = vector.broadcast %c3_i32_93 : i32 to vector<16x128xi32>
    %277 = arith.cmpi eq, %251, %276 : vector<16x128xi32>
    %278 = arith.extui %277 : vector<16x128xi1> to vector<16x128xi32>
    %279 = arith.subi %275, %278 : vector<16x128xi32>
    %280 = arith.muli %270, %279 : vector<16x128xi32>
    %281 = arith.sitofp %280 : vector<16x128xi32> to vector<16x128xf32>
    %282 = arith.divf %261, %281 : vector<16x128xf32>
    %283 = arith.subf %282, %238 : vector<16x128xf32>
    %284 = vector.broadcast %206 : vector<1x128xf32> to vector<16x128xf32>
    %285 = arith.mulf %284, %283 : vector<16x128xf32>
    %286 = arith.addf %200, %285 : vector<16x128xf32>
    %287 = vector.shape_cast %286 : vector<16x128xf32> to vector<1x16x128xf32>
    %cst_94 = arith.constant dense<0.000000e+00> : vector<1xf32>
    %288 = vector.multi_reduction <add>, %287, %cst_94 [1, 2] : vector<1x16x128xf32> to vector<1xf32>
    %289 = vector.shape_cast %288 : vector<1xf32> to vector<1x1x1xf32>
    %290 = vector.extract %289[0, 0, 0] : f32 from vector<1x1x1xf32>
    %291 = vector.broadcast %290 : f32 to vector<1x1xf32>
    %cst_95 = arith.constant 9.765625E-4 : f32
    %292 = vector.broadcast %cst_95 : f32 to vector<1x1xf32>
    %293 = arith.mulf %291, %292 : vector<1x1xf32>
    %294 = arith.mulf %286, %286 : vector<16x128xf32>
    %295 = vector.shape_cast %294 : vector<16x128xf32> to vector<1x16x128xf32>
    %cst_96 = arith.constant dense<0.000000e+00> : vector<1xf32>
    %296 = vector.multi_reduction <add>, %295, %cst_96 [1, 2] : vector<1x16x128xf32> to vector<1xf32>
    %297 = vector.shape_cast %296 : vector<1xf32> to vector<1x1x1xf32>
    %298 = vector.extract %297[0, 0, 0] : f32 from vector<1x1x1xf32>
    %299 = vector.broadcast %298 : f32 to vector<1x1xf32>
    %cst_97 = arith.constant 9.765625E-4 : f32
    %300 = vector.broadcast %cst_97 : f32 to vector<1x1xf32>
    %301 = arith.mulf %299, %300 : vector<1x1xf32>
    %302 = arith.mulf %293, %293 : vector<1x1xf32>
    %303 = arith.subf %301, %302 : vector<1x1xf32>
    %304 = vector.broadcast %293 : vector<1x1xf32> to vector<16x128xf32>
    %305 = arith.subf %286, %304 : vector<16x128xf32>
    %cst_98 = arith.constant 9.99999974E-6 : f32
    %306 = vector.broadcast %cst_98 : f32 to vector<1x1xf32>
    %307 = arith.addf %303, %306 : vector<1x1xf32>
    %308 = math.rsqrt %307 : vector<1x1xf32>
    %309 = vector.broadcast %308 : vector<1x1xf32> to vector<16x128xf32>
    %310 = arith.mulf %305, %309 : vector<16x128xf32>
    %311 = vector.broadcast %207 : vector<1x128xf32> to vector<16x128xf32>
    %312 = arith.mulf %310, %311 : vector<16x128xf32>
    %313 = vector.broadcast %208 : vector<1x128xf32> to vector<16x128xf32>
    %314 = arith.addf %312, %313 : vector<16x128xf32>
    %315 = arith.truncf %314 : vector<16x128xf32> to vector<16x128xbf16>
    %cst_99 = arith.constant dense<0.000000e+00> : vector<16x256xf32>
    %316 = tpu.matmul %315, %201, %cst_99 {dimension_numbers = #tpu.dot_dimension_numbers<[1], [0], [0], [1], [0, 0, 1, 1], [], []>} : vector<16x128xbf16>, vector<128x256xbf16>, vector<16x256xf32> -> vector<16x256xf32>
    %317 = vector.broadcast %202 : vector<1x256xf32> to vector<16x256xf32>
    %318 = arith.addf %316, %317 : vector<16x256xf32>
    %319 = arith.mulf %318, %318 : vector<16x256xf32>
    %320 = arith.mulf %318, %319 : vector<16x256xf32>
    %cst_100 = arith.constant 4.471500e-02 : f32
    %321 = vector.broadcast %cst_100 : f32 to vector<16x256xf32>
    %322 = arith.mulf %321, %320 : vector<16x256xf32>
    %323 = arith.addf %318, %322 : vector<16x256xf32>
    %cst_101 = arith.constant 0.797884583 : f32
    %324 = vector.broadcast %cst_101 : f32 to vector<16x256xf32>
    %325 = arith.mulf %324, %323 : vector<16x256xf32>
    %326 = math.tanh %325 : vector<16x256xf32>
    %cst_102 = arith.constant 1.000000e+00 : f32
    %327 = vector.broadcast %cst_102 : f32 to vector<16x256xf32>
    %328 = arith.addf %327, %326 : vector<16x256xf32>
    %cst_103 = arith.constant 5.000000e-01 : f32
    %329 = vector.broadcast %cst_103 : f32 to vector<16x256xf32>
    %330 = arith.mulf %329, %328 : vector<16x256xf32>
    %331 = arith.mulf %318, %330 : vector<16x256xf32>
    %332 = arith.truncf %331 : vector<16x256xf32> to vector<16x256xbf16>
    %cst_104 = arith.constant dense<0.000000e+00> : vector<16x128xf32>
    %333 = tpu.matmul %332, %203, %cst_104 {dimension_numbers = #tpu.dot_dimension_numbers<[1], [0], [0], [1], [0, 0, 1, 1], [], []>} : vector<16x256xbf16>, vector<256x128xbf16>, vector<16x128xf32> -> vector<16x128xf32>
    %334 = vector.broadcast %210 : vector<1x128xf32> to vector<16x128xf32>
    %335 = arith.addf %333, %334 : vector<16x128xf32>
    %336 = vector.broadcast %209 : vector<1x128xf32> to vector<16x128xf32>
    %337 = arith.mulf %336, %335 : vector<16x128xf32>
    %338 = arith.addf %286, %337 : vector<16x128xf32>
    %339 = vector.extract_strided_slice %1 {offsets = [8, 0], sizes = [1, 128], strides = [1, 1]} : vector<16x128xf32> to vector<1x128xf32>
    %340 = vector.extract_strided_slice %1 {offsets = [9, 0], sizes = [1, 128], strides = [1, 1]} : vector<16x128xf32> to vector<1x128xf32>
    %341 = vector.shape_cast %338 : vector<16x128xf32> to vector<1x16x128xf32>
    %cst_105 = arith.constant dense<0.000000e+00> : vector<1xf32>
    %342 = vector.multi_reduction <add>, %341, %cst_105 [1, 2] : vector<1x16x128xf32> to vector<1xf32>
    %343 = vector.shape_cast %342 : vector<1xf32> to vector<1x1x1xf32>
    %344 = vector.extract %343[0, 0, 0] : f32 from vector<1x1x1xf32>
    %345 = vector.broadcast %344 : f32 to vector<1x1xf32>
    %cst_106 = arith.constant 9.765625E-4 : f32
    %346 = vector.broadcast %cst_106 : f32 to vector<1x1xf32>
    %347 = arith.mulf %345, %346 : vector<1x1xf32>
    %348 = arith.mulf %338, %338 : vector<16x128xf32>
    %349 = vector.shape_cast %348 : vector<16x128xf32> to vector<1x16x128xf32>
    %cst_107 = arith.constant dense<0.000000e+00> : vector<1xf32>
    %350 = vector.multi_reduction <add>, %349, %cst_107 [1, 2] : vector<1x16x128xf32> to vector<1xf32>
    %351 = vector.shape_cast %350 : vector<1xf32> to vector<1x1x1xf32>
    %352 = vector.extract %351[0, 0, 0] : f32 from vector<1x1x1xf32>
    %353 = vector.broadcast %352 : f32 to vector<1x1xf32>
    %cst_108 = arith.constant 9.765625E-4 : f32
    %354 = vector.broadcast %cst_108 : f32 to vector<1x1xf32>
    %355 = arith.mulf %353, %354 : vector<1x1xf32>
    %356 = arith.mulf %347, %347 : vector<1x1xf32>
    %357 = arith.subf %355, %356 : vector<1x1xf32>
    %358 = vector.broadcast %347 : vector<1x1xf32> to vector<16x128xf32>
    %359 = arith.subf %338, %358 : vector<16x128xf32>
    %cst_109 = arith.constant 9.99999974E-6 : f32
    %360 = vector.broadcast %cst_109 : f32 to vector<1x1xf32>
    %361 = arith.addf %357, %360 : vector<1x1xf32>
    %362 = math.rsqrt %361 : vector<1x1xf32>
    %363 = vector.broadcast %362 : vector<1x1xf32> to vector<16x128xf32>
    %364 = arith.mulf %359, %363 : vector<16x128xf32>
    %365 = vector.broadcast %339 : vector<1x128xf32> to vector<16x128xf32>
    %366 = arith.mulf %364, %365 : vector<16x128xf32>
    %367 = vector.broadcast %340 : vector<1x128xf32> to vector<16x128xf32>
    %368 = arith.addf %366, %367 : vector<16x128xf32>
    %cst_110 = arith.constant dense<0.000000e+00> : vector<128xf32>
    %369 = vector.multi_reduction <add>, %368, %cst_110 [0] : vector<16x128xf32> to vector<128xf32>
    %370 = vector.shape_cast %369 : vector<128xf32> to vector<1x128xf32>
    %cst_111 = arith.constant 1.600000e+01 : f32
    %371 = vector.broadcast %cst_111 : f32 to vector<1x128xf32>
    %372 = arith.divf %370, %371 : vector<1x128xf32>
    %373 = arith.truncf %372 : vector<1x128xf32> to vector<1x128xbf16>
    %c0_112 = arith.constant 0 : index
    %c0_113 = arith.constant 0 : index
    %374 = vector.load %arg13[%c0_112, %c0_113] : memref<128x128xbf16, #tpu.memory_space<vmem>>, vector<128x128xbf16>
    %cst_114 = arith.constant dense<0.000000e+00> : vector<1x128xf32>
    %375 = tpu.matmul %373, %374, %cst_114 {dimension_numbers = #tpu.dot_dimension_numbers<[1], [0], [0], [1], [0, 0, 1, 1], [], []>} : vector<1x128xbf16>, vector<128x128xbf16>, vector<1x128xf32> -> vector<1x128xf32>
    %376 = vector.extract_strided_slice %1 {offsets = [10, 0], sizes = [1, 128], strides = [1, 1]} : vector<16x128xf32> to vector<1x128xf32>
    %377 = arith.addf %375, %376 : vector<1x128xf32>
    %378 = vector.shape_cast %377 : vector<1x128xf32> to vector<1x128xf32>
    %379 = vector.broadcast %378 : vector<1x128xf32> to vector<8x128xf32>
    %c0_115 = arith.constant 0 : index
    %c0_116 = arith.constant 0 : index
    %c0_117 = arith.constant 0 : index
    %380 = vector.load %arg14[%c0_115, %c0_116, %c0_117] : memref<1x8x128xf32, #tpu.memory_space<vmem>>, vector<1x8x128xf32>
    %381 = vector.shape_cast %380 : vector<1x8x128xf32> to vector<8x128xf32>
    %382 = vector.shape_cast %379 : vector<8x128xf32> to vector<1x8x128xf32>
    tpu.vector_store %arg14[%c0_115, %c0_116, %c0_117], %382 {strides = array<i32>} : memref<1x8x128xf32, #tpu.memory_space<vmem>>, vector<1x8x128xf32>,
    return
  }
  func.func @transform_0(%arg0: i32) -> (i32, i32, i32) {
    %c0_i32 = arith.constant 0 : i32
    %c0_i32_0 = arith.constant 0 : i32
    %c0_i32_1 = arith.constant 0 : i32
    return %arg0, %c0_i32, %c0_i32_0 : i32, i32, i32
  }
  func.func @transform_1(%arg0: i32) -> (i32, i32) {
    %c0_i32 = arith.constant 0 : i32
    %c0_i32_0 = arith.constant 0 : i32
    %c0_i32_1 = arith.constant 0 : i32
    return %c0_i32, %c0_i32_0 : i32, i32
  }
  func.func @transform_2(%arg0: i32) -> (i32, i32) {
    %c0_i32 = arith.constant 0 : i32
    %c0_i32_0 = arith.constant 0 : i32
    %c0_i32_1 = arith.constant 0 : i32
    return %c0_i32, %c0_i32_0 : i32, i32
  }
  func.func @transform_3(%arg0: i32) -> (i32, i32) {
    %c0_i32 = arith.constant 0 : i32
    %c0_i32_0 = arith.constant 0 : i32
    %c0_i32_1 = arith.constant 0 : i32
    return %c0_i32, %c0_i32_0 : i32, i32
  }
  func.func @transform_4(%arg0: i32) -> (i32, i32) {
    %c0_i32 = arith.constant 0 : i32
    %c0_i32_0 = arith.constant 0 : i32
    %c0_i32_1 = arith.constant 0 : i32
    return %c0_i32, %c0_i32_0 : i32, i32
  }
  func.func @transform_5(%arg0: i32) -> (i32, i32) {
    %c0_i32 = arith.constant 0 : i32
    %c0_i32_0 = arith.constant 0 : i32
    %c0_i32_1 = arith.constant 0 : i32
    return %c0_i32, %c0_i32_0 : i32, i32
  }
  func.func @transform_6(%arg0: i32) -> (i32, i32) {
    %c0_i32 = arith.constant 0 : i32
    %c0_i32_0 = arith.constant 0 : i32
    %c0_i32_1 = arith.constant 0 : i32
    return %c0_i32, %c0_i32_0 : i32, i32
  }
  func.func @transform_7(%arg0: i32) -> (i32, i32) {
    %c0_i32 = arith.constant 0 : i32
    %c0_i32_0 = arith.constant 0 : i32
    %c0_i32_1 = arith.constant 0 : i32
    return %c0_i32, %c0_i32_0 : i32, i32
  }
  func.func @transform_8(%arg0: i32) -> (i32, i32) {
    %c0_i32 = arith.constant 0 : i32
    %c0_i32_0 = arith.constant 0 : i32
    %c0_i32_1 = arith.constant 0 : i32
    return %c0_i32, %c0_i32_0 : i32, i32
  }
  func.func @transform_9(%arg0: i32) -> (i32, i32) {
    %c0_i32 = arith.constant 0 : i32
    %c0_i32_0 = arith.constant 0 : i32
    %c0_i32_1 = arith.constant 0 : i32
    return %c0_i32, %c0_i32_0 : i32, i32
  }
  func.func @transform_10(%arg0: i32) -> (i32, i32) {
    %c0_i32 = arith.constant 0 : i32
    %c0_i32_0 = arith.constant 0 : i32
    %c0_i32_1 = arith.constant 0 : i32
    return %c0_i32, %c0_i32_0 : i32, i32
  }
  func.func @transform_11(%arg0: i32) -> (i32, i32) {
    %c0_i32 = arith.constant 0 : i32
    %c0_i32_0 = arith.constant 0 : i32
    %c0_i32_1 = arith.constant 0 : i32
    return %c0_i32, %c0_i32_0 : i32, i32
  }
  func.func @transform_12(%arg0: i32) -> (i32, i32) {
    %c0_i32 = arith.constant 0 : i32
    %c0_i32_0 = arith.constant 0 : i32
    %c0_i32_1 = arith.constant 0 : i32
    return %c0_i32, %c0_i32_0 : i32, i32
  }
  func.func @transform_13(%arg0: i32) -> (i32, i32, i32) {
    %c0_i32 = arith.constant 0 : i32
    %c0_i32_0 = arith.constant 0 : i32
    %c0_i32_1 = arith.constant 0 : i32
    return %arg0, %c0_i32, %c0_i32_0 : i32, i32, i32
  }
}

</mosaic_0001>

<llo_original>
// kernel: poolformer_forward.1
$region0: #{poolformer_forward.1}
  #allocation0 [shape = 'u32[]', space=smem, size = 0x4, offset = 0x4, fixed_abs, tag = 'smem constant byte address 0x4 - core index']
  #allocation1 [shape = 'u32[144,128]{1,0:T(1,128)}', space=vmem, size = 0x12000, scoped, tag = 'internal scratch']
  #allocation2 [shape = 'f32[80,128]{1,0:T(8,128)}', space=vmem, size = 0xa000, scoped, tag = 'scratch operand']
  %s0 = inlined_call_operand.vmem [shape: bf16[2,64,256], index: 0, kind: input, shape index: {}]
  %s1 = inlined_call_operand.vmem [shape: bf16[256,128], index: 1, kind: input, shape index: {}]
  %s2 = inlined_call_operand.vmem [shape: f32[8,128], index: 2, kind: input, shape index: {}]
  %s3 = inlined_call_operand.vmem [shape: bf16[128,128], index: 3, kind: input, shape index: {}]
  %s4 = inlined_call_operand.vmem [shape: f32[1,128], index: 4, kind: input, shape index: {}]
  %s5 = inlined_call_operand.vmem [shape: bf16[128,128], index: 5, kind: input, shape index: {}]
  %s6 = inlined_call_operand.vmem [shape: bf16[144,64], index: 6, kind: input, shape index: {}]
  %s7 = inlined_call_operand.vmem [shape: bf16[288,128], index: 7, kind: input, shape index: {}]
  %s8 = inlined_call_operand.vmem [shape: f32[16,128], index: 8, kind: input, shape index: {}]
  %s9 = inlined_call_operand.vmem [shape: bf16[128,256], index: 9, kind: input, shape index: {}]
  %s10 = inlined_call_operand.vmem [shape: f32[1,256], index: 10, kind: input, shape index: {}]
  %s11 = inlined_call_operand.vmem [shape: bf16[256,128], index: 11, kind: input, shape index: {}]
  %s12 = inlined_call_operand.vmem [shape: bf16[128,128], index: 12, kind: input, shape index: {}]
  %s13 = inlined_call_operand.vmem [shape: f32[2,8,128], index: 13, kind: output, shape index: {}]
  %s14 = sld [smem:[#allocation0]]
  $region85: #{poolformer_forward.1} parent=0
    _
  %s16 = ssub.s32 1, %s14
  %s17 = scalar_select 0, %s16, %s14
  loop: start=0, step=1, limit=4
  $region2: #{poolformer_forward.1} parent=0 // loop_pre_header
    _
  $region3: #{poolformer_forward.1} parent=0 // loop_header
    %s19 = sphi 0, %s23
    %p20 = scmp.ge.s32.totalorder %s19, 4
    %s29 = sphi 0, %s31
    %s32 = sphi 0, %s29
    %s33 = sphi 0, %s32
    %s49 = sphi 0, %s33
    %s53 = sphi 0, %s53
    %s55 = sphi 0, %s53
    %s56 = sphi 0, %s55
    %s70 = sphi 0, %s56
    %s74 = sphi 0, %s74
    %s76 = sphi 0, %s74
    %s77 = sphi 0, %s76
    %s91 = sphi 0, %s77
    %s95 = sphi 0, %s95
    %s97 = sphi 0, %s95
    %s98 = sphi 0, %s97
    %s112 = sphi 0, %s98
    %s116 = sphi 0, %s116
    %s118 = sphi 0, %s116
    %s119 = sphi 0, %s118
    %s133 = sphi 0, %s119
    %s137 = sphi 0, %s137
    %s139 = sphi 0, %s137
    %s140 = sphi 0, %s139
    %s154 = sphi 0, %s140
    %s158 = sphi 0, %s158
    %s160 = sphi 0, %s158
    %s161 = sphi 0, %s160
    %s175 = sphi 0, %s161
    %s179 = sphi 0, %s179
    %s181 = sphi 0, %s179
    %s182 = sphi 0, %s181
    %s196 = sphi 0, %s182
    %s200 = sphi 0, %s200
    %s202 = sphi 0, %s200
    %s203 = sphi 0, %s202
    %s217 = sphi 0, %s203
    %s221 = sphi 0, %s221
    %s223 = sphi 0, %s221
    %s224 = sphi 0, %s223
    %s238 = sphi 0, %s224
    %s242 = sphi 0, %s242
    %s244 = sphi 0, %s242
    %s245 = sphi 0, %s244
    %s259 = sphi 0, %s245
    %s263 = sphi 0, %s263
    %s265 = sphi 0, %s263
    %s266 = sphi 0, %s265
    %s280 = sphi 0, %s266
    %s284 = sphi 0, %s284
    %s286 = sphi 0, %s284
    %s287 = sphi 0, %s286
    %s301 = sphi 0, %s287
    %s307 = sphi 0, %s309
    %s310 = sphi 0, %s307
    %s311 = sphi 0, %s310
    %s327 = sphi 0, %s311
  $region4: #{poolformer_forward.1} parent=0 // loop_header_branch
    %22 = sbr.rel (%p20) target = $region8
  $region5: #{poolformer_forward.1} parent=0 // loop_body
    %s24 = ssub.s32 %s19, 1
    %s25 = ssub.s32 %s19, 2
    %s26 = sadd.s32 %s19, 1
    %s27 = ssub.s32 %s19, %s26
    %p28 = scmp.eq.s32.totalorder %s27, 0
    %s30 = sadd.s32 %s29, 1
    %s31 = scalar_select %p28, %s29, %s30
    %p34 = pneg %p28
    %p35 = scmp.eq.s32.totalorder %s19, 1
    %p36 = por %p34, %p35
    %p37 = scmp.ne.s32.totalorder %s29, %s32
    %p38 = scmp.eq.s32.totalorder %s19, 0
    %p39 = por %p37, %p38
    %p40 = scmp.ne.s32.totalorder %s29, %s32
    %p41 = scmp.eq.s32.totalorder %s24, 1
    %p42 = por %p40, %p41
    %p43 = scmp.ne.s32.totalorder %s32, %s33
    %p44 = scmp.eq.s32.totalorder %s24, 0
    %p45 = por %p43, %p44
    %p46 = scmp.ne.s32.totalorder %s32, %s33
    %p47 = scmp.eq.s32.totalorder %s25, 1
    %p48 = por %p46, %p47
    %p50 = scmp.ne.s32.totalorder %s33, %s49
    %p51 = scmp.eq.s32.totalorder %s25, 0
    %p52 = por %p50, %p51
    %s54 = sadd.s32 %s53, 1
    %p57 = scmp.eq.s32.totalorder %s19, 1
    %p58 = scmp.ne.s32.totalorder %s53, %s55
    %p59 = scmp.eq.s32.totalorder %s19, 0
    %p60 = por %p58, %p59
    %p61 = scmp.ne.s32.totalorder %s53, %s55
    %p62 = scmp.eq.s32.totalorder %s24, 1
    %p63 = por %p61, %p62
    %p64 = scmp.ne.s32.totalorder %s55, %s56
    %p65 = scmp.eq.s32.totalorder %s24, 0
    %p66 = por %p64, %p65
    %p67 = scmp.ne.s32.totalorder %s55, %s56
    %p68 = scmp.eq.s32.totalorder %s25, 1
    %p69 = por %p67, %p68
    %p71 = scmp.ne.s32.totalorder %s56, %s70
    %p72 = scmp.eq.s32.totalorder %s25, 0
    %p73 = por %p71, %p72
    %s75 = sadd.s32 %s74, 1
    %p78 = scmp.eq.s32.totalorder %s19, 1
    %p79 = scmp.ne.s32.totalorder %s74, %s76
    %p80 = scmp.eq.s32.totalorder %s19, 0
    %p81 = por %p79, %p80
    %p82 = scmp.ne.s32.totalorder %s74, %s76
    %p83 = scmp.eq.s32.totalorder %s24, 1
    %p84 = por %p82, %p83
    %p85 = scmp.ne.s32.totalorder %s76, %s77
    %p86 = scmp.eq.s32.totalorder %s24, 0
    %p87 = por %p85, %p86
    %p88 = scmp.ne.s32.totalorder %s76, %s77
    %p89 = scmp.eq.s32.totalorder %s25, 1
    %p90 = por %p88, %p89
    %p92 = scmp.ne.s32.totalorder %s77, %s91
    %p93 = scmp.eq.s32.totalorder %s25, 0
    %p94 = por %p92, %p93
    %s96 = sadd.s32 %s95, 1
    %p99 = scmp.eq.s32.totalorder %s19, 1
    %p100 = scmp.ne.s32.totalorder %s95, %s97
    %p101 = scmp.eq.s32.totalorder %s19, 0
    %p102 = por %p100, %p101
    %p103 = scmp.ne.s32.totalorder %s95, %s97
    %p104 = scmp.eq.s32.totalorder %s24, 1
    %p105 = por %p103, %p104
    %p106 = scmp.ne.s32.totalorder %s97, %s98
    %p107 = scmp.eq.s32.totalorder %s24, 0
    %p108 = por %p106, %p107
    %p109 = scmp.ne.s32.totalorder %s97, %s98
    %p110 = scmp.eq.s32.totalorder %s25, 1
    %p111 = por %p109, %p110
    %p113 = scmp.ne.s32.totalorder %s98, %s112
    %p114 = scmp.eq.s32.totalorder %s25, 0
    %p115 = por %p113, %p114
    %s117 = sadd.s32 %s116, 1
    %p120 = scmp.eq.s32.totalorder %s19, 1
    %p121 = scmp.ne.s32.totalorder %s116, %s118
    %p122 = scmp.eq.s32.totalorder %s19, 0
    %p123 = por %p121, %p122
    %p124 = scmp.ne.s32.totalorder %s116, %s118
    %p125 = scmp.eq.s32.totalorder %s24, 1
    %p126 = por %p124, %p125
    %p127 = scmp.ne.s32.totalorder %s118, %s119
    %p128 = scmp.eq.s32.totalorder %s24, 0
    %p129 = por %p127, %p128
    %p130 = scmp.ne.s32.totalorder %s118, %s119
    %p131 = scmp.eq.s32.totalorder %s25, 1
    %p132 = por %p130, %p131
    %p134 = scmp.ne.s32.totalorder %s119, %s133
    %p135 = scmp.eq.s32.totalorder %s25, 0
    %p136 = por %p134, %p135
    %s138 = sadd.s32 %s137, 1
    %p141 = scmp.eq.s32.totalorder %s19, 1
    %p142 = scmp.ne.s32.totalorder %s137, %s139
    %p143 = scmp.eq.s32.totalorder %s19, 0
    %p144 = por %p142, %p143
    %p145 = scmp.ne.s32.totalorder %s137, %s139
    %p146 = scmp.eq.s32.totalorder %s24, 1
    %p147 = por %p145, %p146
    %p148 = scmp.ne.s32.totalorder %s139, %s140
    %p149 = scmp.eq.s32.totalorder %s24, 0
    %p150 = por %p148, %p149
    %p151 = scmp.ne.s32.totalorder %s139, %s140
    %p152 = scmp.eq.s32.totalorder %s25, 1
    %p153 = por %p151, %p152
    %p155 = scmp.ne.s32.totalorder %s140, %s154
    %p156 = scmp.eq.s32.totalorder %s25, 0
    %p157 = por %p155, %p156
    %s159 = sadd.s32 %s158, 1
    %p162 = scmp.eq.s32.totalorder %s19, 1
    %p163 = scmp.ne.s32.totalorder %s158, %s160
    %p164 = scmp.eq.s32.totalorder %s19, 0
    %p165 = por %p163, %p164
    %p166 = scmp.ne.s32.totalorder %s158, %s160
    %p167 = scmp.eq.s32.totalorder %s24, 1
    %p168 = por %p166, %p167
    %p169 = scmp.ne.s32.totalorder %s160, %s161
    %p170 = scmp.eq.s32.totalorder %s24, 0
    %p171 = por %p169, %p170
    %p172 = scmp.ne.s32.totalorder %s160, %s161
    %p173 = scmp.eq.s32.totalorder %s25, 1
    %p174 = por %p172, %p173
    %p176 = scmp.ne.s32.totalorder %s161, %s175
    %p177 = scmp.eq.s32.totalorder %s25, 0
    %p178 = por %p176, %p177
    %s180 = sadd.s32 %s179, 1
    %p183 = scmp.eq.s32.totalorder %s19, 1
    %p184 = scmp.ne.s32.totalorder %s179, %s181
    %p185 = scmp.eq.s32.totalorder %s19, 0
    %p186 = por %p184, %p185
    %p187 = scmp.ne.s32.totalorder %s179, %s181
    %p188 = scmp.eq.s32.totalorder %s24, 1
    %p189 = por %p187, %p188
    %p190 = scmp.ne.s32.totalorder %s181, %s182
    %p191 = scmp.eq.s32.totalorder %s24, 0
    %p192 = por %p190, %p191
    %p193 = scmp.ne.s32.totalorder %s181, %s182
    %p194 = scmp.eq.s32.totalorder %s25, 1
    %p195 = por %p193, %p194
    %p197 = scmp.ne.s32.totalorder %s182, %s196
    %p198 = scmp.eq.s32.totalorder %s25, 0
    %p199 = por %p197, %p198
    %s201 = sadd.s32 %s200, 1
    %p204 = scmp.eq.s32.totalorder %s19, 1
    %p205 = scmp.ne.s32.totalorder %s200, %s202
    %p206 = scmp.eq.s32.totalorder %s19, 0
    %p207 = por %p205, %p206
    %p208 = scmp.ne.s32.totalorder %s200, %s202
    %p209 = scmp.eq.s32.totalorder %s24, 1
    %p210 = por %p208, %p209
    %p211 = scmp.ne.s32.totalorder %s202, %s203
    %p212 = scmp.eq.s32.totalorder %s24, 0
    %p213 = por %p211, %p212
    %p214 = scmp.ne.s32.totalorder %s202, %s203
    %p215 = scmp.eq.s32.totalorder %s25, 1
    %p216 = por %p214, %p215
    %p218 = scmp.ne.s32.totalorder %s203, %s217
    %p219 = scmp.eq.s32.totalorder %s25, 0
    %p220 = por %p218, %p219
    %s222 = sadd.s32 %s221, 1
    %p225 = scmp.eq.s32.totalorder %s19, 1
    %p226 = scmp.ne.s32.totalorder %s221, %s223
    %p227 = scmp.eq.s32.totalorder %s19, 0
    %p228 = por %p226, %p227
    %p229 = scmp.ne.s32.totalorder %s221, %s223
    %p230 = scmp.eq.s32.totalorder %s24, 1
    %p231 = por %p229, %p230
    %p232 = scmp.ne.s32.totalorder %s223, %s224
    %p233 = scmp.eq.s32.totalorder %s24, 0
    %p234 = por %p232, %p233
    %p235 = scmp.ne.s32.totalorder %s223, %s224
    %p236 = scmp.eq.s32.totalorder %s25, 1
    %p237 = por %p235, %p236
    %p239 = scmp.ne.s32.totalorder %s224, %s238
    %p240 = scmp.eq.s32.totalorder %s25, 0
    %p241 = por %p239, %p240
    %s243 = sadd.s32 %s242, 1
    %p246 = scmp.eq.s32.totalorder %s19, 1
    %p247 = scmp.ne.s32.totalorder %s242, %s244
    %p248 = scmp.eq.s32.totalorder %s19, 0
    %p249 = por %p247, %p248
    %p250 = scmp.ne.s32.totalorder %s242, %s244
    %p251 = scmp.eq.s32.totalorder %s24, 1
    %p252 = por %p250, %p251
    %p253 = scmp.ne.s32.totalorder %s244, %s245
    %p254 = scmp.eq.s32.totalorder %s24, 0
    %p255 = por %p253, %p254
    %p256 = scmp.ne.s32.totalorder %s244, %s245
    %p257 = scmp.eq.s32.totalorder %s25, 1
    %p258 = por %p256, %p257
    %p260 = scmp.ne.s32.totalorder %s245, %s259
    %p261 = scmp.eq.s32.totalorder %s25, 0
    %p262 = por %p260, %p261
    %s264 = sadd.s32 %s263, 1
    %p267 = scmp.eq.s32.totalorder %s19, 1
    %p268 = scmp.ne.s32.totalorder %s263, %s265
    %p269 = scmp.eq.s32.totalorder %s19, 0
    %p270 = por %p268, %p269
    %p271 = scmp.ne.s32.totalorder %s263, %s265
    %p272 = scmp.eq.s32.totalorder %s24, 1
    %p273 = por %p271, %p272
    %p274 = scmp.ne.s32.totalorder %s265, %s266
    %p275 = scmp.eq.s32.totalorder %s24, 0
    %p276 = por %p274, %p275
    %p277 = scmp.ne.s32.totalorder %s265, %s266
    %p278 = scmp.eq.s32.totalorder %s25, 1
    %p279 = por %p277, %p278
    %p281 = scmp.ne.s32.totalorder %s266, %s280
    %p282 = scmp.eq.s32.totalorder %s25, 0
    %p283 = por %p281, %p282
    %s285 = sadd.s32 %s284, 1
    %p288 = scmp.eq.s32.totalorder %s19, 1
    %p289 = scmp.ne.s32.totalorder %s284, %s286
    %p290 = scmp.eq.s32.totalorder %s19, 0
    %p291 = por %p289, %p290
    %p292 = scmp.ne.s32.totalorder %s284, %s286
    %p293 = scmp.eq.s32.totalorder %s24, 1
    %p294 = por %p292, %p293
    %p295 = scmp.ne.s32.totalorder %s286, %s287
    %p296 = scmp.eq.s32.totalorder %s24, 0
    %p297 = por %p295, %p296
    %p298 = scmp.ne.s32.totalorder %s286, %s287
    %p299 = scmp.eq.s32.totalorder %s25, 1
    %p300 = por %p298, %p299
    %p302 = scmp.ne.s32.totalorder %s287, %s301
    %p303 = scmp.eq.s32.totalorder %s25, 0
    %p304 = por %p302, %p303
    %s305 = ssub.s32 %s19, %s26
    %p306 = scmp.eq.s32.totalorder %s305, 0
    %s308 = sadd.s32 %s307, 1
    %s309 = scalar_select %p306, %s307, %s308
    %p312 = pneg %p306
    %p313 = scmp.eq.s32.totalorder %s19, 1
    %p314 = por %p312, %p313
    %p315 = scmp.ne.s32.totalorder %s307, %s310
    %p316 = scmp.eq.s32.totalorder %s19, 0
    %p317 = por %p315, %p316
    %p318 = scmp.ne.s32.totalorder %s307, %s310
    %p319 = scmp.eq.s32.totalorder %s24, 1
    %p320 = por %p318, %p319
    %p321 = scmp.ne.s32.totalorder %s310, %s311
    %p322 = scmp.eq.s32.totalorder %s24, 0
    %p323 = por %p321, %p322
    %p324 = scmp.ne.s32.totalorder %s310, %s311
    %p325 = scmp.eq.s32.totalorder %s25, 1
    %p326 = por %p324, %p325
    %p328 = scmp.ne.s32.totalorder %s311, %s327
    %p329 = scmp.eq.s32.totalorder %s25, 0
    %p330 = por %p328, %p329
    %p331 = scmp.le.s32.totalorder 1, %s19
    %p332 = scmp.lt.s32.totalorder %s19, 3
    %p333 = pnand %p331, %p332
    %p334 = pneg %p333
    // Predicated region
    $region9: #{poolformer_forward.1} parent=5 // pred_check
      _
    $region10: #{poolformer_forward.1} parent=5 // pred_check_branch
      %336 = sbr.rel (%p333) target = $region12
    $region11: #{poolformer_forward.1} parent=5 // pred_region
      %s337 = ssub.s32 %s19, 1
      // Predicated region
      $region13: #{poolformer_forward.1} parent=11 // pred_check
        %p338 = pneg %p66
      $region14: #{poolformer_forward.1} parent=11 // pred_check_branch
        %340 = sbr.rel (%p338) target = $region16
      $region15: #{poolformer_forward.1} parent=11 // pred_region
        _
      $region16: #{poolformer_forward.1} parent=11 // pred_fallthru
        _
      // Predicated region
      $region17: #{poolformer_forward.1} parent=11 // pred_check
        %p341 = pneg %p87
      $region18: #{poolformer_forward.1} parent=11 // pred_check_branch
        %343 = sbr.rel (%p341) target = $region20
      $region19: #{poolformer_forward.1} parent=11 // pred_region
        _
      $region20: #{poolformer_forward.1} parent=11 // pred_fallthru
        _
      // Predicated region
      $region21: #{poolformer_forward.1} parent=11 // pred_check
        %p344 = pneg %p108
      $region22: #{poolformer_forward.1} parent=11 // pred_check_branch
        %346 = sbr.rel (%p344) target = $region24
      $region23: #{poolformer_forward.1} parent=11 // pred_region
        _
      $region24: #{poolformer_forward.1} parent=11 // pred_fallthru
        _
      // Predicated region
      $region25: #{poolformer_forward.1} parent=11 // pred_check
        %p347 = pneg %p129
      $region26: #{poolformer_forward.1} parent=11 // pred_check_branch
        %349 = sbr.rel (%p347) target = $region28
      $region27: #{poolformer_forward.1} parent=11 // pred_region
        _
      $region28: #{poolformer_forward.1} parent=11 // pred_fallthru
        _
      // Predicated region
      $region29: #{poolformer_forward.1} parent=11 // pred_check
        %p350 = pneg %p150
      $region30: #{poolformer_forward.1} parent=11 // pred_check_branch
        %352 = sbr.rel (%p350) target = $region32
      $region31: #{poolformer_forward.1} parent=11 // pred_region
        _
      $region32: #{poolformer_forward.1} parent=11 // pred_fallthru
        _
      // Predicated region
      $region33: #{poolformer_forward.1} parent=11 // pred_check
        %p353 = pneg %p171
      $region34: #{poolformer_forward.1} parent=11 // pred_check_branch
        %355 = sbr.rel (%p353) target = $region36
      $region35: #{poolformer_forward.1} parent=11 // pred_region
        _
      $region36: #{poolformer_forward.1} parent=11 // pred_fallthru
        _
      // Predicated region
      $region37: #{poolformer_forward.1} parent=11 // pred_check
        %p356 = pneg %p192
      $region38: #{poolformer_forward.1} parent=11 // pred_check_branch
        %358 = sbr.rel (%p356) target = $region40
      $region39: #{poolformer_forward.1} parent=11 // pred_region
        _
      $region40: #{poolformer_forward.1} parent=11 // pred_fallthru
        _
      // Predicated region
      $region41: #{poolformer_forward.1} parent=11 // pred_check
        %p359 = pneg %p213
      $region42: #{poolformer_forward.1} parent=11 // pred_check_branch
        %361 = sbr.rel (%p359) target = $region44
      $region43: #{poolformer_forward.1} parent=11 // pred_region
        _
      $region44: #{poolformer_forward.1} parent=11 // pred_fallthru
        _
      // Predicated region
      $region45: #{poolformer_forward.1} parent=11 // pred_check
        %p362 = pneg %p234
      $region46: #{poolformer_forward.1} parent=11 // pred_check_branch
        %364 = sbr.rel (%p362) target = $region48
      $region47: #{poolformer_forward.1} parent=11 // pred_region
        _
      $region48: #{poolformer_forward.1} parent=11 // pred_fallthru
        _
      // Predicated region
      $region49: #{poolformer_forward.1} parent=11 // pred_check
        %p365 = pneg %p255
      $region50: #{poolformer_forward.1} parent=11 // pred_check_branch
        %367 = sbr.rel (%p365) target = $region52
      $region51: #{poolformer_forward.1} parent=11 // pred_region
        _
      $region52: #{poolformer_forward.1} parent=11 // pred_fallthru
        _
      // Predicated region
      $region53: #{poolformer_forward.1} parent=11 // pred_check
        %p368 = pneg %p276
      $region54: #{poolformer_forward.1} parent=11 // pred_check_branch
        %370 = sbr.rel (%p368) target = $region56
      $region55: #{poolformer_forward.1} parent=11 // pred_region
        _
      $region56: #{poolformer_forward.1} parent=11 // pred_fallthru
        _
      // Predicated region
      $region57: #{poolformer_forward.1} parent=11 // pred_check
        %p371 = pneg %p297
      $region58: #{poolformer_forward.1} parent=11 // pred_check_branch
        %373 = sbr.rel (%p371) target = $region60
      $region59: #{poolformer_forward.1} parent=11 // pred_region
        _
      $region60: #{poolformer_forward.1} parent=11 // pred_fallthru
        _
    $region12: #{poolformer_forward.1} parent=5 // pred_fallthru
      _
    %p374 = scmp.lt.s32.totalorder %s19, 2
    // Predicated region
    $region61: #{poolformer_forward.1} parent=5 // pred_check
      %p375 = pneg %p374
    $region62: #{poolformer_forward.1} parent=5 // pred_check_branch
      %377 = sbr.rel (%p375) target = $region64
    $region63: #{poolformer_forward.1} parent=5 // pred_region
      // Predicated region
      $region65: #{poolformer_forward.1} parent=63 // pred_check
        %p378 = pneg %p39
      $region66: #{poolformer_forward.1} parent=63 // pred_check_branch
        %380 = sbr.rel (%p378) target = $region68
      $region67: #{poolformer_forward.1} parent=63 // pred_region
        %p381 = scmp.lt.s32.totalorder %s19, 1
        %s382 = scalar_select %p381, %s19, 1
        %s383 = smul.addr %s382, 16
        %s384 = smul.addr %s383, 4
        %s385 = scalar_lea.vmem %s0, %s384
      $region68: #{poolformer_forward.1} parent=63 // pred_fallthru
        _
    $region64: #{poolformer_forward.1} parent=5 // pred_fallthru
      _
    %p386 = scmp.le.s32.totalorder 1, %s19
    %p387 = scmp.lt.s32.totalorder %s19, 3
    %p388 = pnand %p386, %p387
    %p389 = pneg %p388
    // Predicated region
    $region69: #{poolformer_forward.1} parent=5 // pred_check
      _
    $region70: #{poolformer_forward.1} parent=5 // pred_check_branch
      %391 = sbr.rel (%p388) target = $region72
    $region71: #{poolformer_forward.1} parent=5 // pred_region
      %s392 = ssub.s32 %s19, 1
      %p393 = scmp.lt.s32.totalorder %s24, 1
      %s394 = scalar_select %p393, %s24, 1
      %s395 = smul.addr %s394, 16
      %s396 = smul.addr %s395, 4
      %s397 = scalar_lea.vmem %s0, %s396
      %p398 = pneg %p45
      %p399 = pneg %p42
      %p400 = pneg %p66
      %p401 = pneg %p63
      %p402 = pneg %p87
      %p403 = pneg %p84
      %p404 = pneg %p108
      %p405 = pneg %p105
      %p406 = pneg %p129
      %p407 = pneg %p126
      %p408 = pneg %p150
      %p409 = pneg %p147
      %p410 = pneg %p171
      %p411 = pneg %p168
      %p412 = pneg %p192
      %p413 = pneg %p189
      %p414 = pneg %p213
      %p415 = pneg %p210
      %p416 = pneg %p234
      %p417 = pneg %p231
      %p418 = pneg %p255
      %p419 = pneg %p252
      %p420 = pneg %p276
      %p421 = pneg %p273
      %p422 = pneg %p297
      %p423 = pneg %p294
      %p424 = pneg %p323
      %p425 = pneg %p320
      %p426 = scmp.lt.s32.totalorder %s24, 1
      %s427 = scalar_select %p426, %s24, 1
      %s428 = smul.addr %s427, 8
      %s429 = scalar_lea.vmem %s13, %s428
      %p430 = scmp.lt.s32.totalorder %s24, 1
      %s431 = scalar_select %p430, %s24, 1
      %s432 = smul.addr %s431, 16
      %s433 = smul.addr %s432, 4
      %s434 = scalar_lea.vmem %s0, %s433
      %p435 = scmp.lt.s32.totalorder %s24, 1
      %s436 = scalar_select %p435, %s24, 1
      %s437 = smul.addr %s436, 8
      %s438 = scalar_lea.vmem %s13, %s437
      %v440 = vld [vmem:[%s2] sm:$0xff]
      %v441 = vld [vmem:[%s8] sm:$0xff]
      %v442 = vld [vmem:[%s8 + $0x8] sm:$0xff]
      %v443 = vld [vmem:[%s434] sm:$0xff]
      %v444 = vld [vmem:[%s434 + $0x8] sm:$0xff]
      %v445 = vld [vmem:[%s434 + $0x10] sm:$0xff]
      %v446 = vld [vmem:[%s434 + $0x18] sm:$0xff]
      %v447 = vld [vmem:[%s434 + $0x20] sm:$0xff]
      %v448 = vld [vmem:[%s434 + $0x28] sm:$0xff]
      %v449 = vld [vmem:[%s434 + $0x30] sm:$0xff]
      %v450 = vld [vmem:[%s434 + $0x38] sm:$0xff]
      %v451 = vld [vmem:[%s1] sm:$0xf]
      %v452 = vld [vmem:[%s1 + $0x4] sm:$0xf]
      %v453 = vld [vmem:[%s1 + $0x8] sm:$0xf]
      %v454 = vld [vmem:[%s1 + $0xc] sm:$0xf]
      %v455 = vld [vmem:[%s1 + $0x10] sm:$0xf]
      %v456 = vld [vmem:[%s1 + $0x14] sm:$0xf]
      %v457 = vld [vmem:[%s1 + $0x18] sm:$0xf]
      %v458 = vld [vmem:[%s1 + $0x1c] sm:$0xf]
      %v459 = vld [vmem:[%s1 + $0x20] sm:$0xf]
      %v460 = vld [vmem:[%s1 + $0x24] sm:$0xf]
      %v461 = vld [vmem:[%s1 + $0x28] sm:$0xf]
      %v462 = vld [vmem:[%s1 + $0x2c] sm:$0xf]
      %v463 = vld [vmem:[%s1 + $0x30] sm:$0xf]
      %v464 = vld [vmem:[%s1 + $0x34] sm:$0xf]
      %v465 = vld [vmem:[%s1 + $0x38] sm:$0xf]
      %v466 = vld [vmem:[%s1 + $0x3c] sm:$0xf]
      %v467 = vld [vmem:[%s1 + $0x40] sm:$0xf]
      %v468 = vld [vmem:[%s1 + $0x44] sm:$0xf]
      %v469 = vld [vmem:[%s1 + $0x48] sm:$0xf]
      %v470 = vld [vmem:[%s1 + $0x4c] sm:$0xf]
      %v471 = vld [vmem:[%s1 + $0x50] sm:$0xf]
      %v472 = vld [vmem:[%s1 + $0x54] sm:$0xf]
      %v473 = vld [vmem:[%s1 + $0x58] sm:$0xf]
      %v474 = vld [vmem:[%s1 + $0x5c] sm:$0xf]
      %v475 = vld [vmem:[%s1 + $0x60] sm:$0xf]
      %v476 = vld [vmem:[%s1 + $0x64] sm:$0xf]
      %v477 = vld [vmem:[%s1 + $0x68] sm:$0xf]
      %v478 = vld [vmem:[%s1 + $0x6c] sm:$0xf]
      %v479 = vld [vmem:[%s1 + $0x70] sm:$0xf]
      %v480 = vld [vmem:[%s1 + $0x74] sm:$0xf]
      %v481 = vld [vmem:[%s1 + $0x78] sm:$0xf]
      %v482 = vld [vmem:[%s1 + $0x7c] sm:$0xf]
      %v483 = vlaneseq
      %v484 = vshrl.u32 %v483, 7
      %v485 = vsub.s32 0, %v484
      %v486 = vrot.slane %v440, %v485
      %v495 = vunpack.c.l.b16 %v443
      %v496 = vunpack.c.h.b16 %v443
      %v497 = vunpack.c.l.b16 %v444
      %v498 = vunpack.c.h.b16 %v444
      %v499 = vunpack.c.l.b16 %v445
      %v500 = vunpack.c.h.b16 %v445
      %v501 = vunpack.c.l.b16 %v446
      %v502 = vunpack.c.h.b16 %v446
      %v503 = vunpack.c.l.b16 %v447
      %v504 = vunpack.c.h.b16 %v447
      %v505 = vunpack.c.l.b16 %v448
      %v506 = vunpack.c.h.b16 %v448
      %v507 = vunpack.c.l.b16 %v449
      %v508 = vunpack.c.h.b16 %v449
      %v509 = vunpack.c.l.b16 %v450
      %v510 = vunpack.c.h.b16 %v450
      %v511 = vpack.c.b16 %v497, %v495
      %v512 = vpack.c.b16 %v498, %v496
      %v513 = vpack.c.b16 %v501, %v499
      %v514 = vpack.c.b16 %v502, %v500
      %v515 = vpack.c.b16 %v505, %v503
      %v516 = vpack.c.b16 %v506, %v504
      %v517 = vpack.c.b16 %v509, %v507
      %v518 = vpack.c.b16 %v510, %v508
      %v559 = vunpack.c.l.b16 %v451
      %v560 = vunpack.c.l.b16 %v452
      %v561 = vunpack.c.l.b16 %v453
      %v562 = vunpack.c.l.b16 %v454
      %v563 = vunpack.c.l.b16 %v455
      %v564 = vunpack.c.l.b16 %v456
      %v565 = vunpack.c.l.b16 %v457
      %v566 = vunpack.c.l.b16 %v458
      %v567 = vunpack.c.l.b16 %v459
      %v568 = vunpack.c.l.b16 %v460
      %v569 = vunpack.c.l.b16 %v461
      %v570 = vunpack.c.l.b16 %v462
      %v571 = vunpack.c.l.b16 %v463
      %v572 = vunpack.c.l.b16 %v464
      %v573 = vunpack.c.l.b16 %v465
      %v574 = vunpack.c.l.b16 %v466
      %v575 = vunpack.c.l.b16 %v467
      %v576 = vunpack.c.l.b16 %v468
      %v577 = vunpack.c.l.b16 %v469
      %v578 = vunpack.c.l.b16 %v470
      %v579 = vunpack.c.l.b16 %v471
      %v580 = vunpack.c.l.b16 %v472
      %v581 = vunpack.c.l.b16 %v473
      %v582 = vunpack.c.l.b16 %v474
      %v583 = vunpack.c.l.b16 %v475
      %v584 = vunpack.c.l.b16 %v476
      %v585 = vunpack.c.l.b16 %v477
      %v586 = vunpack.c.l.b16 %v478
      %v587 = vunpack.c.l.b16 %v479
      %v588 = vunpack.c.l.b16 %v480
      %v589 = vunpack.c.l.b16 %v481
      %v590 = vunpack.c.l.b16 %v482
      %v591 = vpack.c.b16 %v560, %v559
      %v592 = vpack.c.b16 %v562, %v561
      %v593 = vpack.c.b16 %v564, %v563
      %v594 = vpack.c.b16 %v566, %v565
      %v595 = vpack.c.b16 %v568, %v567
      %v596 = vpack.c.b16 %v570, %v569
      %v597 = vpack.c.b16 %v572, %v571
      %v598 = vpack.c.b16 %v574, %v573
      %v599 = vpack.c.b16 %v576, %v575
      %v600 = vpack.c.b16 %v578, %v577
      %v601 = vpack.c.b16 %v580, %v579
      %v602 = vpack.c.b16 %v582, %v581
      %v603 = vpack.c.b16 %v584, %v583
      %v604 = vpack.c.b16 %v586, %v585
      %v605 = vpack.c.b16 %v588, %v587
      %v606 = vpack.c.b16 %v590, %v589
      %623 = vmatprep.subr.bf16.mxu0 0
      %624 = vmatpush1.bf16.msra.mxu0 %v591
      %625 = vmatprep.subr.bf16.mxu0 0
      %626 = vmatpush1.bf16.msra.mxu0 %v592
      %627 = vmatprep.subr.bf16.mxu0 0
      %628 = vmatpush1.bf16.msra.mxu0 %v593
      %629 = vmatprep.subr.bf16.mxu0 0
      %630 = vmatpush1.bf16.msra.mxu0 %v594
      %631 = vmatprep.subr.bf16.mxu0 0
      %632 = vmatpush1.bf16.msra.mxu0 %v595
      %633 = vmatprep.subr.bf16.mxu0 0
      %634 = vmatpush1.bf16.msra.mxu0 %v596
      %635 = vmatprep.subr.bf16.mxu0 0
      %636 = vmatpush1.bf16.msra.mxu0 %v597
      %637 = vmatprep.subr.bf16.mxu0 0
      %638 = vmatpush1.bf16.msra.mxu0 %v598
      %639 = vmatprep.subr.bf16.mxu0 0
      %640 = vmatpush1.bf16.msra.mxu0 %v599
      %641 = vmatprep.subr.bf16.mxu0 0
      %642 = vmatpush1.bf16.msra.mxu0 %v600
      %643 = vmatprep.subr.bf16.mxu0 0
      %644 = vmatpush1.bf16.msra.mxu0 %v601
      %645 = vmatprep.subr.bf16.mxu0 0
      %646 = vmatpush1.bf16.msra.mxu0 %v602
      %647 = vmatprep.subr.bf16.mxu0 0
      %648 = vmatpush1.bf16.msra.mxu0 %v603
      %649 = vmatprep.subr.bf16.mxu0 0
      %650 = vmatpush1.bf16.msra.mxu0 %v604
      %651 = vmatprep.subr.bf16.mxu0 0
      %652 = vmatpush1.bf16.msra.mxu0 %v605
      %653 = vmatprep.subr.bf16.mxu0 0
      %654 = vmatpush1.bf16.msra.mxu0 %v606
      %655 = vmatprep.mubr.bf16.mxu0 %v512
      %656 = vmatmul.mubr.bf16.gmra.mrb[0].mxu0 %v511
      %v657 = vpop.f32.mrb[0].mxu0
      %v658 = vadd.f32 %v486, %v657
      %v659 = vpop.f32.mrb[0].mxu0
      %v660 = vpop.f32.mrb[0].mxu0
      %v661 = vadd.f32 %v486, %v660
      %v662 = vpop.f32.mrb[0].mxu0
      %663 = vmatprep.mubr.bf16.mxu0 %v514
      %664 = vmatmul.mubr.bf16.gmra.mrb[0].mxu0 %v513
      %v665 = vpop.f32.mrb[0].mxu0
      %v666 = vadd.f32 %v486, %v665
      %v667 = vpop.f32.mrb[0].mxu0
      %v668 = vpop.f32.mrb[0].mxu0
      %v669 = vadd.f32 %v486, %v668
      %v670 = vpop.f32.mrb[0].mxu0
      %671 = vmatprep.mubr.bf16.mxu0 %v516
      %672 = vmatmul.mubr.bf16.gmra.mrb[0].mxu0 %v515
      %v673 = vpop.f32.mrb[0].mxu0
      %v674 = vadd.f32 %v486, %v673
      %v675 = vpop.f32.mrb[0].mxu0
      %v676 = vpop.f32.mrb[0].mxu0
      %v677 = vadd.f32 %v486, %v676
      %v678 = vpop.f32.mrb[0].mxu0
      %679 = vmatprep.mubr.bf16.mxu0 %v518
      %680 = vmatmul.mubr.bf16.gmra.mrb[0].mxu0 %v517
      %v681 = vpop.f32.mrb[0].mxu0
      %v682 = vadd.f32 %v486, %v681
      %v683 = vpop.f32.mrb[0].mxu0
      %v684 = vpop.f32.mrb[0].mxu0
      %v685 = vadd.f32 %v486, %v684
      %v686 = vpop.f32.mrb[0].mxu0
      %687 = vdwg.mxu0
      %v688 = vld [vmem:[%s3] sm:$0xf]
      %v689 = vld [vmem:[%s3 + $0x4] sm:$0xf]
      %v690 = vld [vmem:[%s3 + $0x8] sm:$0xf]
      %v691 = vld [vmem:[%s3 + $0xc] sm:$0xf]
      %v692 = vld [vmem:[%s3 + $0x10] sm:$0xf]
      %v693 = vld [vmem:[%s3 + $0x14] sm:$0xf]
      %v694 = vld [vmem:[%s3 + $0x18] sm:$0xf]
      %v695 = vld [vmem:[%s3 + $0x1c] sm:$0xf]
      %v696 = vld [vmem:[%s3 + $0x20] sm:$0xf]
      %v697 = vld [vmem:[%s3 + $0x24] sm:$0xf]
      %v698 = vld [vmem:[%s3 + $0x28] sm:$0xf]
      %v699 = vld [vmem:[%s3 + $0x2c] sm:$0xf]
      %v700 = vld [vmem:[%s3 + $0x30] sm:$0xf]
      %v701 = vld [vmem:[%s3 + $0x34] sm:$0xf]
      %v702 = vld [vmem:[%s3 + $0x38] sm:$0xf]
      %v703 = vld [vmem:[%s3 + $0x3c] sm:$0xf]
      %v704 = vld [vmem:[%s4] sm:$0x1]
      %v705 = vld [vmem:[%s5] sm:$0xf]
      %v706 = vld [vmem:[%s5 + $0x4] sm:$0xf]
      %v707 = vld [vmem:[%s5 + $0x8] sm:$0xf]
      %v708 = vld [vmem:[%s5 + $0xc] sm:$0xf]
      %v709 = vld [vmem:[%s5 + $0x10] sm:$0xf]
      %v710 = vld [vmem:[%s5 + $0x14] sm:$0xf]
      %v711 = vld [vmem:[%s5 + $0x18] sm:$0xf]
      %v712 = vld [vmem:[%s5 + $0x1c] sm:$0xf]
      %v713 = vld [vmem:[%s5 + $0x20] sm:$0xf]
      %v714 = vld [vmem:[%s5 + $0x24] sm:$0xf]
      %v715 = vld [vmem:[%s5 + $0x28] sm:$0xf]
      %v716 = vld [vmem:[%s5 + $0x2c] sm:$0xf]
      %v717 = vld [vmem:[%s5 + $0x30] sm:$0xf]
      %v718 = vld [vmem:[%s5 + $0x34] sm:$0xf]
      %v719 = vld [vmem:[%s5 + $0x38] sm:$0xf]
      %v720 = vld [vmem:[%s5 + $0x3c] sm:$0xf]
      %v721 = vadd.f32 %v658, %v661
      %v722 = vadd.f32 %v721, %v666
      %v723 = vadd.f32 %v722, %v669
      %v724 = vadd.f32 %v723, %v674
      %v725 = vadd.f32 %v724, %v677
      %v726 = vadd.f32 %v725, %v682
      %v727 = vadd.f32 %v726, %v685
      %728 = vadd.xlane.f32.xlu0 %v727
      %v729 = vpop.xlane.xlu0 %728
      %v730 = vrot.slane %v729, 4
      %v731 = vadd.f32 %v729, %v730
      %v732 = vrot.slane %v731, 2
      %v733 = vadd.f32 %v731, %v732
      %v734 = vrot.slane %v733, 1
      %v735 = vadd.f32 %v733, %v734
      %s736 = vtos %v735
      %v737 = vstv %s736
      %v738 = vmul.f32 %v737, 0.00048828125
      %v739 = vmul.f32 %v658, %v658
      %v740 = vmul.f32 %v661, %v661
      %v741 = vmul.f32 %v666, %v666
      %v742 = vmul.f32 %v669, %v669
      %v743 = vmul.f32 %v674, %v674
      %v744 = vmul.f32 %v677, %v677
      %v745 = vmul.f32 %v682, %v682
      %v746 = vmul.f32 %v685, %v685
      %v747 = vadd.f32 %v739, %v740
      %v748 = vadd.f32 %v747, %v741
      %v749 = vadd.f32 %v748, %v742
      %v750 = vadd.f32 %v749, %v743
      %v751 = vadd.f32 %v750, %v744
      %v752 = vadd.f32 %v751, %v745
      %v753 = vadd.f32 %v752, %v746
      %754 = vadd.xlane.f32.xlu0 %v753
      %v755 = vpop.xlane.xlu0 %754
      %v756 = vrot.slane %v755, 4
      %v757 = vadd.f32 %v755, %v756
      %v758 = vrot.slane %v757, 2
      %v759 = vadd.f32 %v757, %v758
      %v760 = vrot.slane %v759, 1
      %v761 = vadd.f32 %v759, %v760
      %s762 = vtos %v761
      %v763 = vstv %s762
      %v764 = vmul.f32 %v763, 0.00048828125
      %v765 = vmul.f32 %v738, %v738
      %v766 = vsub.f32 %v764, %v765
      %v767 = vsub.f32 %v658, %v738
      %v768 = vsub.f32 %v661, %v738
      %v769 = vsub.f32 %v666, %v738
      %v770 = vsub.f32 %v669, %v738
      %v771 = vsub.f32 %v674, %v738
      %v772 = vsub.f32 %v677, %v738
      %v773 = vsub.f32 %v682, %v738
      %v774 = vsub.f32 %v685, %v738
      %v775 = vadd.f32 %v766, 1e-05
      %v776 = vrsqrt.pop %v775
      %v777 = vmul.f32 %v767, %v776
      %v778 = vmul.f32 %v768, %v776
      %v779 = vmul.f32 %v769, %v776
      %v780 = vmul.f32 %v770, %v776
      %v781 = vmul.f32 %v771, %v776
      %v782 = vmul.f32 %v772, %v776
      %v783 = vmul.f32 %v773, %v776
      %v784 = vmul.f32 %v774, %v776
      %v785 = vlaneseq
      %v786 = vshrl.u32 %v785, 7
      %v787 = vsub.s32 1, %v786
      %v788 = vrot.slane %v440, %v787
      %v789 = vmul.f32 %v777, %v788
      %v790 = vmul.f32 %v778, %v788
      %v791 = vmul.f32 %v779, %v788
      %v792 = vmul.f32 %v780, %v788
      %v793 = vmul.f32 %v781, %v788
      %v794 = vmul.f32 %v782, %v788
      %v795 = vmul.f32 %v783, %v788
      %v796 = vmul.f32 %v784, %v788
      %v797 = vlaneseq
      %v798 = vshrl.u32 %v797, 7
      %v799 = vsub.s32 2, %v798
      %v800 = vrot.slane %v440, %v799
      %v801 = vadd.f32 %v789, %v800
      %v802 = vadd.f32 %v790, %v800
      %v803 = vadd.f32 %v791, %v800
      %v804 = vadd.f32 %v792, %v800
      %v805 = vadd.f32 %v793, %v800
      %v806 = vadd.f32 %v794, %v800
      %v807 = vadd.f32 %v795, %v800
      %v808 = vadd.f32 %v796, %v800
      %809 = vst [vmem:[#allocation2] sm:$0xff] 0.0
      %810 = vst [vmem:[#allocation2 + $0x8] sm:$0xff] 0.0
      %811 = vst [vmem:[#allocation2 + $0x10] sm:$0xff] 0.0
      %812 = vst [vmem:[#allocation2 + $0x18] sm:$0xff] 0.0
      %813 = vst [vmem:[#allocation2 + $0x20] sm:$0xff] 0.0
      %814 = vst [vmem:[#allocation2 + $0x28] sm:$0xff] 0.0
      %815 = vst [vmem:[#allocation2 + $0x30] sm:$0xff] 0.0
      %816 = vst [vmem:[#allocation2 + $0x38] sm:$0xff] 0.0
      %817 = vst [vmem:[#allocation2 + $0x40] sm:$0xff] 0.0
      %818 = vst [vmem:[#allocation2 + $0x48] sm:$0xff] 0.0
      %819 = vst [vmem:[#allocation2 + $0x8] sm:$0xff] %v801
      %820 = vst [vmem:[#allocation2 + $0x10] sm:$0xff] %v802
      %821 = vst [vmem:[#allocation2 + $0x18] sm:$0xff] %v803
      %822 = vst [vmem:[#allocation2 + $0x20] sm:$0xff] %v804
      %823 = vst [vmem:[#allocation2 + $0x28] sm:$0xff] %v805
      %824 = vst [vmem:[#allocation2 + $0x30] sm:$0xff] %v806
      %825 = vst [vmem:[#allocation2 + $0x38] sm:$0xff] %v807
      %826 = vst [vmem:[#allocation2 + $0x40] sm:$0xff] %v808
      %v827 = vld [vmem:[#allocation2] sm:$0xff]
      %v828 = vld [vmem:[#allocation2 + $0x8] sm:$0xff]
      %v829 = vld [vmem:[#allocation2 + $0x10] sm:$0xff]
      %v830 = vld [vmem:[#allocation2 + $0x18] sm:$0xff]
      %v831 = vld [vmem:[#allocation2 + $0x20] sm:$0xff]
      %v832 = vld [vmem:[#allocation2 + $0x28] sm:$0xff]
      %v833 = vld [vmem:[#allocation2 + $0x30] sm:$0xff]
      %v834 = vld [vmem:[#allocation2 + $0x38] sm:$0xff]
      %v835 = vadd.f32 %v801, %v827
      %v836 = vadd.f32 %v802, %v828
      %v837 = vadd.f32 %v803, %v829
      %v838 = vadd.f32 %v804, %v830
      %v839 = vadd.f32 %v805, %v831
      %v840 = vadd.f32 %v806, %v832
      %v841 = vadd.f32 %v807, %v833
      %v842 = vadd.f32 %v808, %v834
      %v843 = vld [vmem:[#allocation2 + $0x10] sm:$0xff]
      %v844 = vld [vmem:[#allocation2 + $0x18] sm:$0xff]
      %v845 = vld [vmem:[#allocation2 + $0x20] sm:$0xff]
      %v846 = vld [vmem:[#allocation2 + $0x28] sm:$0xff]
      %v847 = vld [vmem:[#allocation2 + $0x30] sm:$0xff]
      %v848 = vld [vmem:[#allocation2 + $0x38] sm:$0xff]
      %v849 = vld [vmem:[#allocation2 + $0x40] sm:$0xff]
      %v850 = vld [vmem:[#allocation2 + $0x48] sm:$0xff]
      %v851 = vadd.f32 %v835, %v843
      %v852 = vadd.f32 %v836, %v844
      %v853 = vadd.f32 %v837, %v845
      %v854 = vadd.f32 %v838, %v846
      %v855 = vadd.f32 %v839, %v847
      %v856 = vadd.f32 %v840, %v848
      %v857 = vadd.f32 %v841, %v849
      %v858 = vadd.f32 %v842, %v850
      %859 = vst [vmem:[#allocation2 + $0x8] sm:$0xff] %v851
      %860 = vst [vmem:[#allocation2 + $0x10] sm:$0xff] %v852
      %861 = vst [vmem:[#allocation2 + $0x18] sm:$0xff] %v853
      %862 = vst [vmem:[#allocation2 + $0x20] sm:$0xff] %v854
      %863 = vst [vmem:[#allocation2 + $0x28] sm:$0xff] %v855
      %864 = vst [vmem:[#allocation2 + $0x30] sm:$0xff] %v856
      %865 = vst [vmem:[#allocation2 + $0x38] sm:$0xff] %v857
      %866 = vst [vmem:[#allocation2 + $0x40] sm:$0xff] %v858
      %v867 = vld [vmem:[#allocation2 + $0x7] sm:$0xff]
      %v868 = vld [vmem:[#allocation2 + $0xf] sm:$0xff]
      %v869 = vld [vmem:[#allocation2 + $0x17] sm:$0xff]
      %v870 = vld [vmem:[#allocation2 + $0x1f] sm:$0xff]
      %v871 = vld [vmem:[#allocation2 + $0x27] sm:$0xff]
      %v872 = vld [vmem:[#allocation2 + $0x2f] sm:$0xff]
      %v873 = vld [vmem:[#allocation2 + $0x37] sm:$0xff]
      %v874 = vld [vmem:[#allocation2 + $0x3f] sm:$0xff]
      %v875 = vld [vmem:[#allocation2 + $0x9] sm:$0xff]
      %v876 = vld [vmem:[#allocation2 + $0x11] sm:$0xff]
      %v877 = vld [vmem:[#allocation2 + $0x19] sm:$0xff]
      %v878 = vld [vmem:[#allocation2 + $0x21] sm:$0xff]
      %v879 = vld [vmem:[#allocation2 + $0x29] sm:$0xff]
      %v880 = vld [vmem:[#allocation2 + $0x31] sm:$0xff]
      %v881 = vld [vmem:[#allocation2 + $0x39] sm:$0xff]
      %v882 = vld [vmem:[#allocation2 + $0x41] sm:$0xff]
      %v883 = vlaneseq
      %v884 = vshrl.u32 %v883, 7
      %v885 = vadd.s32 %v884, 8
      %v886 = vadd.s32 %v884, 16
      %v887 = vadd.s32 %v884, 24
      %v888 = vadd.s32 %v884, 32
      %v889 = vadd.s32 %v884, 40
      %v890 = vadd.s32 %v884, 48
      %v891 = vadd.s32 %v884, 56
      %v892 = vand.u32 %v884, 7
      %v893 = vand.u32 %v885, 7
      %v894 = vand.u32 %v886, 7
      %v895 = vand.u32 %v887, 7
      %v896 = vand.u32 %v888, 7
      %v897 = vand.u32 %v889, 7
      %v898 = vand.u32 %v890, 7
      %v899 = vand.u32 %v891, 7
      %vm900 = vcmp.gt.s32.totalorder %v892, 0
      %vm901 = vcmp.gt.s32.totalorder %v893, 0
      %vm902 = vcmp.gt.s32.totalorder %v894, 0
      %vm903 = vcmp.gt.s32.totalorder %v895, 0
      %vm904 = vcmp.gt.s32.totalorder %v896, 0
      %vm905 = vcmp.gt.s32.totalorder %v897, 0
      %vm906 = vcmp.gt.s32.totalorder %v898, 0
      %vm907 = vcmp.gt.s32.totalorder %v899, 0
      %v908 = vsel %vm900, %v867, 0.0
      %v909 = vsel %vm901, %v868, 0.0
      %v910 = vsel %vm902, %v869, 0.0
      %v911 = vsel %vm903, %v870, 0.0
      %v912 = vsel %vm904, %v871, 0.0
      %v913 = vsel %vm905, %v872, 0.0
      %v914 = vsel %vm906, %v873, 0.0
      %v915 = vsel %vm907, %v874, 0.0
      %v916 = vadd.f32 %v851, %v908
      %v917 = vadd.f32 %v852, %v909
      %v918 = vadd.f32 %v853, %v910
      %v919 = vadd.f32 %v854, %v911
      %v920 = vadd.f32 %v855, %v912
      %v921 = vadd.f32 %v856, %v913
      %v922 = vadd.f32 %v857, %v914
      %v923 = vadd.f32 %v858, %v915
      %vm924 = vcmp.lt.s32.totalorder %v892, 7
      %vm925 = vcmp.lt.s32.totalorder %v893, 7
      %vm926 = vcmp.lt.s32.totalorder %v894, 7
      %vm927 = vcmp.lt.s32.totalorder %v895, 7
      %vm928 = vcmp.lt.s32.totalorder %v896, 7
      %vm929 = vcmp.lt.s32.totalorder %v897, 7
      %vm930 = vcmp.lt.s32.totalorder %v898, 7
      %vm931 = vcmp.lt.s32.totalorder %v899, 7
      %v932 = vsel %vm924, %v875, 0.0
      %v933 = vsel %vm925, %v876, 0.0
      %v934 = vsel %vm926, %v877, 0.0
      %v935 = vsel %vm927, %v878, 0.0
      %v936 = vsel %vm928, %v879, 0.0
      %v937 = vsel %vm929, %v880, 0.0
      %v938 = vsel %vm930, %v881, 0.0
      %v939 = vsel %vm931, %v882, 0.0
      %v940 = vadd.f32 %v916, %v932
      %v941 = vadd.f32 %v917, %v933
      %v942 = vadd.f32 %v918, %v934
      %v943 = vadd.f32 %v919, %v935
      %v944 = vadd.f32 %v920, %v936
      %v945 = vadd.f32 %v921, %v937
      %v946 = vadd.f32 %v922, %v938
      %v947 = vadd.f32 %v923, %v939
      %vm948 = vcmp.lt.s32.totalorder %v884, 8
      %vm949 = vcmp.lt.s32.totalorder %v885, 8
      %vm950 = vcmp.lt.s32.totalorder %v886, 8
      %vm951 = vcmp.lt.s32.totalorder %v887, 8
      %vm952 = vcmp.lt.s32.totalorder %v888, 8
      %vm953 = vcmp.lt.s32.totalorder %v889, 8
      %vm954 = vcmp.lt.s32.totalorder %v890, 8
      %vm955 = vcmp.lt.s32.totalorder %v891, 8
      %v956 = vsel %vm948, 1, 0
      %v957 = vsel %vm949, 1, 0
      %v958 = vsel %vm950, 1, 0
      %v959 = vsel %vm951, 1, 0
      %v960 = vsel %vm952, 1, 0
      %v961 = vsel %vm953, 1, 0
      %v962 = vsel %vm954, 1, 0
      %v963 = vsel %vm955, 1, 0
      %v964 = vsub.s32 3, %v956
      %v965 = vsub.s32 3, %v957
      %v966 = vsub.s32 3, %v958
      %v967 = vsub.s32 3, %v959
      %v968 = vsub.s32 3, %v960
      %v969 = vsub.s32 3, %v961
      %v970 = vsub.s32 3, %v962
      %v971 = vsub.s32 3, %v963
      %vm972 = vcmp.ge.s32.totalorder %v884, 56
      %vm973 = vcmp.ge.s32.totalorder %v885, 56
      %vm974 = vcmp.ge.s32.totalorder %v886, 56
      %vm975 = vcmp.ge.s32.totalorder %v887, 56
      %vm976 = vcmp.ge.s32.totalorder %v888, 56
      %vm977 = vcmp.ge.s32.totalorder %v889, 56
      %vm978 = vcmp.ge.s32.totalorder %v890, 56
      %vm979 = vcmp.ge.s32.totalorder %v891, 56
      %v980 = vsel %vm972, 1, 0
      %v981 = vsel %vm973, 1, 0
      %v982 = vsel %vm974, 1, 0
      %v983 = vsel %vm975, 1, 0
      %v984 = vsel %vm976, 1, 0
      %v985 = vsel %vm977, 1, 0
      %v986 = vsel %vm978, 1, 0
      %v987 = vsel %vm979, 1, 0
      %v988 = vsub.s32 %v964, %v980
      %v989 = vsub.s32 %v965, %v981
      %v990 = vsub.s32 %v966, %v982
      %v991 = vsub.s32 %v967, %v983
      %v992 = vsub.s32 %v968, %v984
      %v993 = vsub.s32 %v969, %v985
      %v994 = vsub.s32 %v970, %v986
      %v995 = vsub.s32 %v971, %v987
      %vm996 = vcmp.eq.s32.totalorder %v892, 0
      %vm997 = vcmp.eq.s32.totalorder %v893, 0
      %vm998 = vcmp.eq.s32.totalorder %v894, 0
      %vm999 = vcmp.eq.s32.totalorder %v895, 0
      %vm1000 = vcmp.eq.s32.totalorder %v896, 0
      %vm1001 = vcmp.eq.s32.totalorder %v897, 0
      %vm1002 = vcmp.eq.s32.totalorder %v898, 0
      %vm1003 = vcmp.eq.s32.totalorder %v899, 0
      %v1004 = vsel %vm996, 1, 0
      %v1005 = vsel %vm997, 1, 0
      %v1006 = vsel %vm998, 1, 0
      %v1007 = vsel %vm999, 1, 0
      %v1008 = vsel %vm1000, 1, 0
      %v1009 = vsel %vm1001, 1, 0
      %v1010 = vsel %vm1002, 1, 0
      %v1011 = vsel %vm1003, 1, 0
      %v1012 = vsub.s32 3, %v1004
      %v1013 = vsub.s32 3, %v1005
      %v1014 = vsub.s32 3, %v1006
      %v1015 = vsub.s32 3, %v1007
      %v1016 = vsub.s32 3, %v1008
      %v1017 = vsub.s32 3, %v1009
      %v1018 = vsub.s32 3, %v1010
      %v1019 = vsub.s32 3, %v1011
      %vm1020 = vcmp.eq.s32.totalorder %v892, 7
      %vm1021 = vcmp.eq.s32.totalorder %v893, 7
      %vm1022 = vcmp.eq.s32.totalorder %v894, 7
      %vm1023 = vcmp.eq.s32.totalorder %v895, 7
      %vm1024 = vcmp.eq.s32.totalorder %v896, 7
      %vm1025 = vcmp.eq.s32.totalorder %v897, 7
      %vm1026 = vcmp.eq.s32.totalorder %v898, 7
      %vm1027 = vcmp.eq.s32.totalorder %v899, 7
      %v1028 = vsel %vm1020, 1, 0
      %v1029 = vsel %vm1021, 1, 0
      %v1030 = vsel %vm1022, 1, 0
      %v1031 = vsel %vm1023, 1, 0
      %v1032 = vsel %vm1024, 1, 0
      %v1033 = vsel %vm1025, 1, 0
      %v1034 = vsel %vm1026, 1, 0
      %v1035 = vsel %vm1027, 1, 0
      %v1036 = vsub.s32 %v1012, %v1028
      %v1037 = vsub.s32 %v1013, %v1029
      %v1038 = vsub.s32 %v1014, %v1030
      %v1039 = vsub.s32 %v1015, %v1031
      %v1040 = vsub.s32 %v1016, %v1032
      %v1041 = vsub.s32 %v1017, %v1033
      %v1042 = vsub.s32 %v1018, %v1034
      %v1043 = vsub.s32 %v1019, %v1035
      %v1044 = vmul.u32 %v988, %v1036
      %v1045 = vmul.u32 %v989, %v1037
      %v1046 = vmul.u32 %v990, %v1038
      %v1047 = vmul.u32 %v991, %v1039
      %v1048 = vmul.u32 %v992, %v1040
      %v1049 = vmul.u32 %v993, %v1041
      %v1050 = vmul.u32 %v994, %v1042
      %v1051 = vmul.u32 %v995, %v1043
      %v1052 = vcvt.s32.f32 %v1044
      %v1053 = vcvt.s32.f32 %v1045
      %v1054 = vcvt.s32.f32 %v1046
      %v1055 = vcvt.s32.f32 %v1047
      %v1056 = vcvt.s32.f32 %v1048
      %v1057 = vcvt.s32.f32 %v1049
      %v1058 = vcvt.s32.f32 %v1050
      %v1059 = vcvt.s32.f32 %v1051
      %v1060 = vrcp.pop %v1052
      %v1061 = vmul.f32 %v940, %v1060
      %v1062 = vrcp.pop %v1053
      %v1063 = vmul.f32 %v941, %v1062
      %v1064 = vrcp.pop %v1054
      %v1065 = vmul.f32 %v942, %v1064
      %v1066 = vrcp.pop %v1055
      %v1067 = vmul.f32 %v943, %v1066
      %v1068 = vrcp.pop %v1056
      %v1069 = vmul.f32 %v944, %v1068
      %v1070 = vrcp.pop %v1057
      %v1071 = vmul.f32 %v945, %v1070
      %v1072 = vrcp.pop %v1058
      %v1073 = vmul.f32 %v946, %v1072
      %v1074 = vrcp.pop %v1059
      %v1075 = vmul.f32 %v947, %v1074
      %v1076 = vsub.f32 %v1061, %v801
      %v1077 = vsub.f32 %v1063, %v802
      %v1078 = vsub.f32 %v1065, %v803
      %v1079 = vsub.f32 %v1067, %v804
      %v1080 = vsub.f32 %v1069, %v805
      %v1081 = vsub.f32 %v1071, %v806
      %v1082 = vsub.f32 %v1073, %v807
      %v1083 = vsub.f32 %v1075, %v808
      %v1084 = vlaneseq
      %v1085 = vshrl.u32 %v1084, 7
      %v1086 = vsub.s32 3, %v1085
      %v1087 = vrot.slane %v440, %v1086
      %v1088 = vmul.f32 %v1087, %v1076
      %v1089 = vmul.f32 %v1087, %v1077
      %v1090 = vmul.f32 %v1087, %v1078
      %v1091 = vmul.f32 %v1087, %v1079
      %v1092 = vmul.f32 %v1087, %v1080
      %v1093 = vmul.f32 %v1087, %v1081
      %v1094 = vmul.f32 %v1087, %v1082
      %v1095 = vmul.f32 %v1087, %v1083
      %v1096 = vadd.f32 %v658, %v1088
      %v1097 = vadd.f32 %v661, %v1089
      %v1098 = vadd.f32 %v666, %v1090
      %v1099 = vadd.f32 %v669, %v1091
      %v1100 = vadd.f32 %v674, %v1092
      %v1101 = vadd.f32 %v677, %v1093
      %v1102 = vadd.f32 %v682, %v1094
      %v1103 = vadd.f32 %v685, %v1095
      %v1104 = vadd.f32 %v1096, %v1097
      %v1105 = vadd.f32 %v1104, %v1098
      %v1106 = vadd.f32 %v1105, %v1099
      %v1107 = vadd.f32 %v1106, %v1100
      %v1108 = vadd.f32 %v1107, %v1101
      %v1109 = vadd.f32 %v1108, %v1102
      %v1110 = vadd.f32 %v1109, %v1103
      %1111 = vadd.xlane.f32.xlu0 %v1110
      %v1112 = vpop.xlane.xlu0 %1111
      %v1113 = vrot.slane %v1112, 4
      %v1114 = vadd.f32 %v1112, %v1113
      %v1115 = vrot.slane %v1114, 2
      %v1116 = vadd.f32 %v1114, %v1115
      %v1117 = vrot.slane %v1116, 1
      %v1118 = vadd.f32 %v1116, %v1117
      %s1119 = vtos %v1118
      %v1120 = vstv %s1119
      %v1121 = vmul.f32 %v1120, 0.00048828125
      %v1122 = vmul.f32 %v1096, %v1096
      %v1123 = vmul.f32 %v1097, %v1097
      %v1124 = vmul.f32 %v1098, %v1098
      %v1125 = vmul.f32 %v1099, %v1099
      %v1126 = vmul.f32 %v1100, %v1100
      %v1127 = vmul.f32 %v1101, %v1101
      %v1128 = vmul.f32 %v1102, %v1102
      %v1129 = vmul.f32 %v1103, %v1103
      %v1130 = vadd.f32 %v1122, %v1123
      %v1131 = vadd.f32 %v1130, %v1124
      %v1132 = vadd.f32 %v1131, %v1125
      %v1133 = vadd.f32 %v1132, %v1126
      %v1134 = vadd.f32 %v1133, %v1127
      %v1135 = vadd.f32 %v1134, %v1128
      %v1136 = vadd.f32 %v1135, %v1129
      %1137 = vadd.xlane.f32.xlu0 %v1136
      %v1138 = vpop.xlane.xlu0 %1137
      %v1139 = vrot.slane %v1138, 4
      %v1140 = vadd.f32 %v1138, %v1139
      %v1141 = vrot.slane %v1140, 2
      %v1142 = vadd.f32 %v1140, %v1141
      %v1143 = vrot.slane %v1142, 1
      %v1144 = vadd.f32 %v1142, %v1143
      %s1145 = vtos %v1144
      %v1146 = vstv %s1145
      %v1147 = vmul.f32 %v1146, 0.00048828125
      %v1148 = vmul.f32 %v1121, %v1121
      %v1149 = vsub.f32 %v1147, %v1148
      %v1150 = vsub.f32 %v1096, %v1121
      %v1151 = vsub.f32 %v1097, %v1121
      %v1152 = vsub.f32 %v1098, %v1121
      %v1153 = vsub.f32 %v1099, %v1121
      %v1154 = vsub.f32 %v1100, %v1121
      %v1155 = vsub.f32 %v1101, %v1121
      %v1156 = vsub.f32 %v1102, %v1121
      %v1157 = vsub.f32 %v1103, %v1121
      %v1158 = vadd.f32 %v1149, 1e-05
      %v1159 = vrsqrt.pop %v1158
      %v1160 = vmul.f32 %v1150, %v1159
      %v1161 = vmul.f32 %v1151, %v1159
      %v1162 = vmul.f32 %v1152, %v1159
      %v1163 = vmul.f32 %v1153, %v1159
      %v1164 = vmul.f32 %v1154, %v1159
      %v1165 = vmul.f32 %v1155, %v1159
      %v1166 = vmul.f32 %v1156, %v1159
      %v1167 = vmul.f32 %v1157, %v1159
      %v1168 = vlaneseq
      %v1169 = vshrl.u32 %v1168, 7
      %v1170 = vsub.s32 4, %v1169
      %v1171 = vrot.slane %v440, %v1170
      %v1172 = vmul.f32 %v1160, %v1171
      %v1173 = vmul.f32 %v1161, %v1171
      %v1174 = vmul.f32 %v1162, %v1171
      %v1175 = vmul.f32 %v1163, %v1171
      %v1176 = vmul.f32 %v1164, %v1171
      %v1177 = vmul.f32 %v1165, %v1171
      %v1178 = vmul.f32 %v1166, %v1171
      %v1179 = vmul.f32 %v1167, %v1171
      %v1180 = vlaneseq
      %v1181 = vshrl.u32 %v1180, 7
      %v1182 = vsub.s32 5, %v1181
      %v1183 = vrot.slane %v440, %v1182
      %v1184 = vadd.f32 %v1172, %v1183
      %v1185 = vadd.f32 %v1173, %v1183
      %v1186 = vadd.f32 %v1174, %v1183
      %v1187 = vadd.f32 %v1175, %v1183
      %v1188 = vadd.f32 %v1176, %v1183
      %v1189 = vadd.f32 %v1177, %v1183
      %v1190 = vadd.f32 %v1178, %v1183
      %v1191 = vadd.f32 %v1179, %v1183
      %v1192 = vpack.c.bf16 %v1185, %v1184
      %v1193 = vpack.c.bf16 %v1187, %v1186
      %v1194 = vpack.c.bf16 %v1189, %v1188
      %v1195 = vpack.c.bf16 %v1191, %v1190
      %v1197 = vlaneseq
      %v1198 = vshrl.u32 %v1197, 7
      %v1199 = vsub.s32 0, %v1198
      %v1200 = vrot.slane %v704, %v1199
      %v1218 = vunpack.c.l.b16 %v688
      %v1219 = vunpack.c.l.b16 %v689
      %v1220 = vunpack.c.l.b16 %v690
      %v1221 = vunpack.c.l.b16 %v691
      %v1222 = vunpack.c.l.b16 %v692
      %v1223 = vunpack.c.l.b16 %v693
      %v1224 = vunpack.c.l.b16 %v694
      %v1225 = vunpack.c.l.b16 %v695
      %v1226 = vunpack.c.l.b16 %v696
      %v1227 = vunpack.c.l.b16 %v697
      %v1228 = vunpack.c.l.b16 %v698
      %v1229 = vunpack.c.l.b16 %v699
      %v1230 = vunpack.c.l.b16 %v700
      %v1231 = vunpack.c.l.b16 %v701
      %v1232 = vunpack.c.l.b16 %v702
      %v1233 = vunpack.c.l.b16 %v703
      %v1234 = vpack.c.b16 %v1219, %v1218
      %v1235 = vpack.c.b16 %v1221, %v1220
      %v1236 = vpack.c.b16 %v1223, %v1222
      %v1237 = vpack.c.b16 %v1225, %v1224
      %v1238 = vpack.c.b16 %v1227, %v1226
      %v1239 = vpack.c.b16 %v1229, %v1228
      %v1240 = vpack.c.b16 %v1231, %v1230
      %v1241 = vpack.c.b16 %v1233, %v1232
      %1250 = vmatprep.subr.bf16.mxu0 0
      %1251 = vmatpush1.bf16.msra.mxu0 %v1234
      %1252 = vmatprep.subr.bf16.mxu0 0
      %1253 = vmatpush1.bf16.msra.mxu0 %v1235
      %1254 = vmatprep.subr.bf16.mxu0 0
      %1255 = vmatpush1.bf16.msra.mxu0 %v1236
      %1256 = vmatprep.subr.bf16.mxu0 0
      %1257 = vmatpush1.bf16.msra.mxu0 %v1237
      %1258 = vmatprep.subr.bf16.mxu0 0
      %1259 = vmatpush1.bf16.msra.mxu0 %v1238
      %1260 = vmatprep.subr.bf16.mxu0 0
      %1261 = vmatpush1.bf16.msra.mxu0 %v1239
      %1262 = vmatprep.subr.bf16.mxu0 0
      %1263 = vmatpush1.bf16.msra.mxu0 %v1240
      %1264 = vmatprep.subr.bf16.mxu0 0
      %1265 = vmatpush1.bf16.msra.mxu0 %v1241
      %1266 = vmatprep.subr.bf16.mxu0 0
      %1267 = vmatpush1.bf16.msra.mxu0 0
      %1268 = vmatprep.subr.bf16.mxu0 0
      %1269 = vmatpush1.bf16.msra.mxu0 0
      %1270 = vmatprep.subr.bf16.mxu0 0
      %1271 = vmatpush1.bf16.msra.mxu0 0
      %1272 = vmatprep.subr.bf16.mxu0 0
      %1273 = vmatpush1.bf16.msra.mxu0 0
      %1274 = vmatprep.subr.bf16.mxu0 0
      %1275 = vmatpush1.bf16.msra.mxu0 0
      %1276 = vmatprep.subr.bf16.mxu0 0
      %1277 = vmatpush1.bf16.msra.mxu0 0
      %1278 = vmatprep.subr.bf16.mxu0 0
      %1279 = vmatpush1.bf16.msra.mxu0 0
      %1280 = vmatprep.subr.bf16.mxu0 0
      %1281 = vmatpush1.bf16.msra.mxu0 0
      %1282 = vmatprep.mubr.bf16.mxu0 0
      %1283 = vmatmul.mubr.bf16.gmra.mrb[0].mxu0 %v1192
      %v1284 = vpop.f32.mrb[0].mxu0
      %v1285 = vadd.f32 %v1200, %v1284
      %v1286 = vpop.f32.mrb[0].mxu0
      %v1287 = vpop.f32.mrb[0].mxu0
      %v1288 = vadd.f32 %v1200, %v1287
      %v1289 = vpop.f32.mrb[0].mxu0
      %1290 = vmatprep.mubr.bf16.mxu0 0
      %1291 = vmatmul.mubr.bf16.gmra.mrb[0].mxu0 %v1193
      %v1292 = vpop.f32.mrb[0].mxu0
      %v1293 = vadd.f32 %v1200, %v1292
      %v1294 = vpop.f32.mrb[0].mxu0
      %v1295 = vpop.f32.mrb[0].mxu0
      %v1296 = vadd.f32 %v1200, %v1295
      %v1297 = vpop.f32.mrb[0].mxu0
      %1298 = vmatprep.mubr.bf16.mxu0 0
      %1299 = vmatmul.mubr.bf16.gmra.mrb[0].mxu0 %v1194
      %v1300 = vpop.f32.mrb[0].mxu0
      %v1301 = vadd.f32 %v1200, %v1300
      %v1302 = vpop.f32.mrb[0].mxu0
      %v1303 = vpop.f32.mrb[0].mxu0
      %v1304 = vadd.f32 %v1200, %v1303
      %v1305 = vpop.f32.mrb[0].mxu0
      %1306 = vmatprep.mubr.bf16.mxu0 0
      %1307 = vmatmul.mubr.bf16.gmra.mrb[0].mxu0 %v1195
      %v1308 = vpop.f32.mrb[0].mxu0
      %v1309 = vadd.f32 %v1200, %v1308
      %v1310 = vpop.f32.mrb[0].mxu0
      %v1311 = vpop.f32.mrb[0].mxu0
      %v1312 = vadd.f32 %v1200, %v1311
      %v1313 = vpop.f32.mrb[0].mxu0
      %1314 = vdwg.mxu0
      %v1315 = vmul.f32 %v1285, %v1285
      %v1316 = vmul.f32 %v1288, %v1288
      %v1317 = vmul.f32 %v1293, %v1293
      %v1318 = vmul.f32 %v1296, %v1296
      %v1319 = vmul.f32 %v1301, %v1301
      %v1320 = vmul.f32 %v1304, %v1304
      %v1321 = vmul.f32 %v1309, %v1309
      %v1322 = vmul.f32 %v1312, %v1312
      %v1323 = vmul.f32 %v1285, %v1315
      %v1324 = vmul.f32 %v1288, %v1316
      %v1325 = vmul.f32 %v1293, %v1317
      %v1326 = vmul.f32 %v1296, %v1318
      %v1327 = vmul.f32 %v1301, %v1319
      %v1328 = vmul.f32 %v1304, %v1320
      %v1329 = vmul.f32 %v1309, %v1321
      %v1330 = vmul.f32 %v1312, %v1322
      %v1331 = vmul.f32 %v1323, 0.044715
      %v1332 = vmul.f32 %v1324, 0.044715
      %v1333 = vmul.f32 %v1325, 0.044715
      %v1334 = vmul.f32 %v1326, 0.044715
      %v1335 = vmul.f32 %v1327, 0.044715
      %v1336 = vmul.f32 %v1328, 0.044715
      %v1337 = vmul.f32 %v1329, 0.044715
      %v1338 = vmul.f32 %v1330, 0.044715
      %v1339 = vadd.f32 %v1285, %v1331
      %v1340 = vadd.f32 %v1288, %v1332
      %v1341 = vadd.f32 %v1293, %v1333
      %v1342 = vadd.f32 %v1296, %v1334
      %v1343 = vadd.f32 %v1301, %v1335
      %v1344 = vadd.f32 %v1304, %v1336
      %v1345 = vadd.f32 %v1309, %v1337
      %v1346 = vadd.f32 %v1312, %v1338
      %v1347 = vmul.f32 %v1339, 0.7978846
      %v1348 = vmul.f32 %v1340, 0.7978846
      %v1349 = vmul.f32 %v1341, 0.7978846
      %v1350 = vmul.f32 %v1342, 0.7978846
      %v1351 = vmul.f32 %v1343, 0.7978846
      %v1352 = vmul.f32 %v1344, 0.7978846
      %v1353 = vmul.f32 %v1345, 0.7978846
      %v1354 = vmul.f32 %v1346, 0.7978846
      %v1355 = vtanh.pop %v1347
      %v1356 = vtanh.pop %v1348
      %v1357 = vtanh.pop %v1349
      %v1358 = vtanh.pop %v1350
      %v1359 = vtanh.pop %v1351
      %v1360 = vtanh.pop %v1352
      %v1361 = vtanh.pop %v1353
      %v1362 = vtanh.pop %v1354
      %v1363 = vadd.f32 %v1355, 1.0
      %v1364 = vadd.f32 %v1356, 1.0
      %v1365 = vadd.f32 %v1357, 1.0
      %v1366 = vadd.f32 %v1358, 1.0
      %v1367 = vadd.f32 %v1359, 1.0
      %v1368 = vadd.f32 %v1360, 1.0
      %v1369 = vadd.f32 %v1361, 1.0
      %v1370 = vadd.f32 %v1362, 1.0
      %v1371 = vmul.f32 %v1363, 0.5
      %v1372 = vmul.f32 %v1364, 0.5
      %v1373 = vmul.f32 %v1365, 0.5
      %v1374 = vmul.f32 %v1366, 0.5
      %v1375 = vmul.f32 %v1367, 0.5
      %v1376 = vmul.f32 %v1368, 0.5
      %v1377 = vmul.f32 %v1369, 0.5
      %v1378 = vmul.f32 %v1370, 0.5
      %v1379 = vmul.f32 %v1285, %v1371
      %v1380 = vmul.f32 %v1288, %v1372
      %v1381 = vmul.f32 %v1293, %v1373
      %v1382 = vmul.f32 %v1296, %v1374
      %v1383 = vmul.f32 %v1301, %v1375
      %v1384 = vmul.f32 %v1304, %v1376
      %v1385 = vmul.f32 %v1309, %v1377
      %v1386 = vmul.f32 %v1312, %v1378
      %v1387 = vpack.c.bf16 %v1380, %v1379
      %v1388 = vpack.c.bf16 %v1382, %v1381
      %v1389 = vpack.c.bf16 %v1384, %v1383
      %v1390 = vpack.c.bf16 %v1386, %v1385
      %v1391 = vlaneseq
      %v1392 = vshrl.u32 %v1391, 7
      %v1393 = vsub.s32 7, %v1392
      %v1394 = vrot.slane %v440, %v1393
      %v1411 = vunpack.c.l.b16 %v705
      %v1412 = vunpack.c.l.b16 %v706
      %v1413 = vunpack.c.l.b16 %v707
      %v1414 = vunpack.c.l.b16 %v708
      %v1415 = vunpack.c.l.b16 %v709
      %v1416 = vunpack.c.l.b16 %v710
      %v1417 = vunpack.c.l.b16 %v711
      %v1418 = vunpack.c.l.b16 %v712
      %v1419 = vunpack.c.l.b16 %v713
      %v1420 = vunpack.c.l.b16 %v714
      %v1421 = vunpack.c.l.b16 %v715
      %v1422 = vunpack.c.l.b16 %v716
      %v1423 = vunpack.c.l.b16 %v717
      %v1424 = vunpack.c.l.b16 %v718
      %v1425 = vunpack.c.l.b16 %v719
      %v1426 = vunpack.c.l.b16 %v720
      %v1427 = vpack.c.b16 %v1412, %v1411
      %v1428 = vpack.c.b16 %v1414, %v1413
      %v1429 = vpack.c.b16 %v1416, %v1415
      %v1430 = vpack.c.b16 %v1418, %v1417
      %v1431 = vpack.c.b16 %v1420, %v1419
      %v1432 = vpack.c.b16 %v1422, %v1421
      %v1433 = vpack.c.b16 %v1424, %v1423
      %v1434 = vpack.c.b16 %v1426, %v1425
      %1443 = vmatprep.subr.bf16.mxu0 0
      %1444 = vmatpush1.bf16.msra.mxu0 %v1427
      %1445 = vmatprep.subr.bf16.mxu0 0
      %1446 = vmatpush1.bf16.msra.mxu0 %v1428
      %1447 = vmatprep.subr.bf16.mxu0 0
      %1448 = vmatpush1.bf16.msra.mxu0 %v1429
      %1449 = vmatprep.subr.bf16.mxu0 0
      %1450 = vmatpush1.bf16.msra.mxu0 %v1430
      %1451 = vmatprep.subr.bf16.mxu0 0
      %1452 = vmatpush1.bf16.msra.mxu0 %v1431
      %1453 = vmatprep.subr.bf16.mxu0 0
      %1454 = vmatpush1.bf16.msra.mxu0 %v1432
      %1455 = vmatprep.subr.bf16.mxu0 0
      %1456 = vmatpush1.bf16.msra.mxu0 %v1433
      %1457 = vmatprep.subr.bf16.mxu0 0
      %1458 = vmatpush1.bf16.msra.mxu0 %v1434
      %1459 = vmatprep.subr.bf16.mxu0 0
      %1460 = vmatpush1.bf16.msra.mxu0 0
      %1461 = vmatprep.subr.bf16.mxu0 0
      %1462 = vmatpush1.bf16.msra.mxu0 0
      %1463 = vmatprep.subr.bf16.mxu0 0
      %1464 = vmatpush1.bf16.msra.mxu0 0
      %1465 = vmatprep.subr.bf16.mxu0 0
      %1466 = vmatpush1.bf16.msra.mxu0 0
      %1467 = vmatprep.subr.bf16.mxu0 0
      %1468 = vmatpush1.bf16.msra.mxu0 0
      %1469 = vmatprep.subr.bf16.mxu0 0
      %1470 = vmatpush1.bf16.msra.mxu0 0
      %1471 = vmatprep.subr.bf16.mxu0 0
      %1472 = vmatpush1.bf16.msra.mxu0 0
      %1473 = vmatprep.subr.bf16.mxu0 0
      %1474 = vmatpush1.bf16.msra.mxu0 0
      %1475 = vmatprep.mubr.bf16.mxu0 0
      %1476 = vmatmul.mubr.bf16.gmra.mrb[0].mxu0 %v1387
      %v1477 = vpop.f32.mrb[0].mxu0
      %v1478 = vadd.f32 %v1394, %v1477
      %v1479 = vpop.f32.mrb[0].mxu0
      %v1480 = vpop.f32.mrb[0].mxu0
      %v1481 = vadd.f32 %v1394, %v1480
      %v1482 = vpop.f32.mrb[0].mxu0
      %1483 = vmatprep.mubr.bf16.mxu0 0
      %1484 = vmatmul.mubr.bf16.gmra.mrb[0].mxu0 %v1388
      %v1485 = vpop.f32.mrb[0].mxu0
      %v1486 = vadd.f32 %v1394, %v1485
      %v1487 = vpop.f32.mrb[0].mxu0
      %v1488 = vpop.f32.mrb[0].mxu0
      %v1489 = vadd.f32 %v1394, %v1488
      %v1490 = vpop.f32.mrb[0].mxu0
      %1491 = vmatprep.mubr.bf16.mxu0 0
      %1492 = vmatmul.mubr.bf16.gmra.mrb[0].mxu0 %v1389
      %v1493 = vpop.f32.mrb[0].mxu0
      %v1494 = vadd.f32 %v1394, %v1493
      %v1495 = vpop.f32.mrb[0].mxu0
      %v1496 = vpop.f32.mrb[0].mxu0
      %v1497 = vadd.f32 %v1394, %v1496
      %v1498 = vpop.f32.mrb[0].mxu0
      %1499 = vmatprep.mubr.bf16.mxu0 0
      %1500 = vmatmul.mubr.bf16.gmra.mrb[0].mxu0 %v1390
      %v1501 = vpop.f32.mrb[0].mxu0
      %v1502 = vadd.f32 %v1394, %v1501
      %v1503 = vpop.f32.mrb[0].mxu0
      %v1504 = vpop.f32.mrb[0].mxu0
      %v1505 = vadd.f32 %v1394, %v1504
      %v1506 = vpop.f32.mrb[0].mxu0
      %1507 = vdwg.mxu0
      %v1508 = vlaneseq
      %v1509 = vshrl.u32 %v1508, 7
      %v1510 = vsub.s32 6, %v1509
      %v1511 = vrot.slane %v440, %v1510
      %v1512 = vmul.f32 %v1511, %v1478
      %v1513 = vmul.f32 %v1511, %v1481
      %v1514 = vmul.f32 %v1511, %v1486
      %v1515 = vmul.f32 %v1511, %v1489
      %v1516 = vmul.f32 %v1511, %v1494
      %v1517 = vmul.f32 %v1511, %v1497
      %v1518 = vmul.f32 %v1511, %v1502
      %v1519 = vmul.f32 %v1511, %v1505
      %v1520 = vadd.f32 %v1096, %v1512
      %v1521 = vadd.f32 %v1097, %v1513
      %v1522 = vadd.f32 %v1098, %v1514
      %v1523 = vadd.f32 %v1099, %v1515
      %v1524 = vadd.f32 %v1100, %v1516
      %v1525 = vadd.f32 %v1101, %v1517
      %v1526 = vadd.f32 %v1102, %v1518
      %v1527 = vadd.f32 %v1103, %v1519
      %v1528 = vpack.c.bf16 %v1521, %v1520
      %v1529 = vpack.c.bf16 %v1523, %v1522
      %v1530 = vpack.c.bf16 %v1525, %v1524
      %v1531 = vpack.c.bf16 %v1527, %v1526
      %v1532 = vld [vmem:[%s6] sm:$0xf]
      %v1533 = vld [vmem:[%s6 + $0x4] sm:$0xf]
      %v1534 = vld [vmem:[%s6 + $0x8] sm:$0xf]
      %v1535 = vld [vmem:[%s6 + $0xc] sm:$0xf]
      %v1536 = vld [vmem:[%s6 + $0x10] sm:$0xf]
      %v1537 = vld [vmem:[%s6 + $0x14] sm:$0xf]
      %v1538 = vld [vmem:[%s6 + $0x18] sm:$0xf]
      %v1539 = vld [vmem:[%s6 + $0x1c] sm:$0xf]
      %v1540 = vld [vmem:[%s6 + $0x20] sm:$0xf]
      %v1541 = vld [vmem:[%s6 + $0x24] sm:$0xf]
      %v1542 = vld [vmem:[%s6 + $0x28] sm:$0xf]
      %v1543 = vld [vmem:[%s6 + $0x2c] sm:$0xf]
      %v1544 = vld [vmem:[%s6 + $0x30] sm:$0xf]
      %v1545 = vld [vmem:[%s6 + $0x34] sm:$0xf]
      %v1546 = vld [vmem:[%s6 + $0x38] sm:$0xf]
      %v1547 = vld [vmem:[%s6 + $0x3c] sm:$0xf]
      %v1548 = vld [vmem:[%s6 + $0x40] sm:$0xf]
      %v1549 = vld [vmem:[%s6 + $0x44] sm:$0xf]
      %v1568 = vunpack.c.l.b16 %v1532
      %v1569 = vunpack.c.l.b16 %v1533
      %v1570 = vunpack.c.l.b16 %v1534
      %v1571 = vunpack.c.l.b16 %v1535
      %v1572 = vunpack.c.l.b16 %v1536
      %v1573 = vunpack.c.l.b16 %v1537
      %v1574 = vunpack.c.l.b16 %v1538
      %v1575 = vunpack.c.l.b16 %v1539
      %v1576 = vunpack.c.l.b16 %v1540
      %v1577 = vunpack.c.l.b16 %v1541
      %v1578 = vunpack.c.l.b16 %v1542
      %v1579 = vunpack.c.l.b16 %v1543
      %v1580 = vunpack.c.l.b16 %v1544
      %v1581 = vunpack.c.l.b16 %v1545
      %v1582 = vunpack.c.l.b16 %v1546
      %v1583 = vunpack.c.l.b16 %v1547
      %v1584 = vunpack.c.l.b16 %v1548
      %v1585 = vunpack.c.l.b16 %v1549
      %v1586 = vpack.c.b16 %v1569, %v1568
      %v1587 = vpack.c.b16 %v1571, %v1570
      %v1588 = vpack.c.b16 %v1573, %v1572
      %v1589 = vpack.c.b16 %v1575, %v1574
      %v1590 = vpack.c.b16 %v1577, %v1576
      %v1591 = vpack.c.b16 %v1579, %v1578
      %v1592 = vpack.c.b16 %v1581, %v1580
      %v1593 = vpack.c.b16 %v1583, %v1582
      %v1594 = vpack.c.b16 %v1585, %v1584
      %vm1595 = vcmask 523264
      %v1597 = vsel %vm1595, %v1586, 0
      %v1600 = vsel %vm1595, %v1587, 0
      %v1603 = vsel %vm1595, %v1588, 0
      %v1606 = vsel %vm1595, %v1589, 0
      %v1609 = vsel %vm1595, %v1590, 0
      %v1612 = vsel %vm1595, %v1591, 0
      %v1615 = vsel %vm1595, %v1592, 0
      %v1618 = vsel %vm1595, %v1593, 0
      %v1621 = vsel %vm1595, %v1594, 0
      %1623 = vmatprep.subr.bf16.mxu0 0
      %1624 = vmatpush1.bf16.msra.mxu0 %v1528
      %1625 = vmatprep.subr.bf16.mxu0 0
      %1626 = vmatpush1.bf16.msra.mxu0 %v1529
      %1627 = vmatprep.subr.bf16.mxu0 0
      %1628 = vmatpush1.bf16.msra.mxu0 %v1530
      %1629 = vmatprep.subr.bf16.mxu0 0
      %1630 = vmatpush1.bf16.msra.mxu0 %v1531
      %1631 = vmatprep.subr.bf16.mxu0 0
      %1632 = vmatpush1.bf16.msra.mxu0 0
      %1633 = vmatprep.subr.bf16.mxu0 0
      %1634 = vmatpush1.bf16.msra.mxu0 0
      %1635 = vmatprep.subr.bf16.mxu0 0
      %1636 = vmatpush1.bf16.msra.mxu0 0
      %1637 = vmatprep.subr.bf16.mxu0 0
      %1638 = vmatpush1.bf16.msra.mxu0 0
      %1639 = vmatprep.subr.bf16.mxu0 0
      %1640 = vmatpush1.bf16.msra.mxu0 0
      %1641 = vmatprep.subr.bf16.mxu0 0
      %1642 = vmatpush1.bf16.msra.mxu0 0
      %1643 = vmatprep.subr.bf16.mxu0 0
      %1644 = vmatpush1.bf16.msra.mxu0 0
      %1645 = vmatprep.subr.bf16.mxu0 0
      %1646 = vmatpush1.bf16.msra.mxu0 0
      %1647 = vmatprep.subr.bf16.mxu0 0
      %1648 = vmatpush1.bf16.msra.mxu0 0
      %1649 = vmatprep.subr.bf16.mxu0 0
      %1650 = vmatpush1.bf16.msra.mxu0 0
      %1651 = vmatprep.subr.bf16.mxu0 0
      %1652 = vmatpush1.bf16.msra.mxu0 0
      %1653 = vmatprep.subr.bf16.mxu0 0
      %1654 = vmatpush1.bf16.msra.mxu0 0
      %1655 = vmatprep.mubr.bf16.mxu0 0
      %1656 = vmatmul.mubr.bf16.gmra.mrb[0].mxu0 %v1597
      %v1657 = vpop.f32.mrb[0].mxu0
      %v1658 = vadd.f32 0.0, %v1657
      %v1659 = vpop.f32.mrb[0].mxu0
      %v1660 = vpop.f32.mrb[0].mxu0
      %v1661 = vadd.f32 0.0, %v1660
      %v1662 = vpop.f32.mrb[0].mxu0
      %1663 = vmatprep.mubr.bf16.mxu0 0
      %1664 = vmatmul.mubr.bf16.gmra.mrb[0].mxu0 %v1600
      %v1665 = vpop.f32.mrb[0].mxu0
      %v1666 = vadd.f32 0.0, %v1665
      %v1667 = vpop.f32.mrb[0].mxu0
      %v1668 = vpop.f32.mrb[0].mxu0
      %v1669 = vadd.f32 0.0, %v1668
      %v1670 = vpop.f32.mrb[0].mxu0
      %1671 = vmatprep.mubr.bf16.mxu0 0
      %1672 = vmatmul.mubr.bf16.gmra.mrb[0].mxu0 %v1603
      %v1673 = vpop.f32.mrb[0].mxu0
      %v1674 = vadd.f32 0.0, %v1673
      %v1675 = vpop.f32.mrb[0].mxu0
      %v1676 = vpop.f32.mrb[0].mxu0
      %v1677 = vadd.f32 0.0, %v1676
      %v1678 = vpop.f32.mrb[0].mxu0
      %1679 = vmatprep.mubr.bf16.mxu0 0
      %1680 = vmatmul.mubr.bf16.gmra.mrb[0].mxu0 %v1606
      %v1681 = vpop.f32.mrb[0].mxu0
      %v1682 = vadd.f32 0.0, %v1681
      %v1683 = vpop.f32.mrb[0].mxu0
      %v1684 = vpop.f32.mrb[0].mxu0
      %v1685 = vadd.f32 0.0, %v1684
      %v1686 = vpop.f32.mrb[0].mxu0
      %1687 = vmatprep.mubr.bf16.mxu0 0
      %1688 = vmatmul.mubr.bf16.gmra.mrb[0].mxu0 %v1609
      %v1689 = vpop.f32.mrb[0].mxu0
      %v1690 = vadd.f32 0.0, %v1689
      %v1691 = vpop.f32.mrb[0].mxu0
      %v1692 = vpop.f32.mrb[0].mxu0
      %v1693 = vadd.f32 0.0, %v1692
      %v1694 = vpop.f32.mrb[0].mxu0
      %1695 = vmatprep.mubr.bf16.mxu0 0
      %1696 = vmatmul.mubr.bf16.gmra.mrb[0].mxu0 %v1612
      %v1697 = vpop.f32.mrb[0].mxu0
      %v1698 = vadd.f32 0.0, %v1697
      %v1699 = vpop.f32.mrb[0].mxu0
      %v1700 = vpop.f32.mrb[0].mxu0
      %v1701 = vadd.f32 0.0, %v1700
      %v1702 = vpop.f32.mrb[0].mxu0
      %1703 = vmatprep.mubr.bf16.mxu0 0
      %1704 = vmatmul.mubr.bf16.gmra.mrb[0].mxu0 %v1615
      %v1705 = vpop.f32.mrb[0].mxu0
      %v1706 = vadd.f32 0.0, %v1705
      %v1707 = vpop.f32.mrb[0].mxu0
      %v1708 = vpop.f32.mrb[0].mxu0
      %v1709 = vadd.f32 0.0, %v1708
      %v1710 = vpop.f32.mrb[0].mxu0
      %1711 = vmatprep.mubr.bf16.mxu0 0
      %1712 = vmatmul.mubr.bf16.gmra.mrb[0].mxu0 %v1618
      %v1713 = vpop.f32.mrb[0].mxu0
      %v1714 = vadd.f32 0.0, %v1713
      %v1715 = vpop.f32.mrb[0].mxu0
      %v1716 = vpop.f32.mrb[0].mxu0
      %v1717 = vadd.f32 0.0, %v1716
      %v1718 = vpop.f32.mrb[0].mxu0
      %1719 = vmatprep.mubr.bf16.mxu0 0
      %1720 = vmatmul.mubr.bf16.gmra.mrb[0].mxu0 %v1621
      %v1721 = vpop.f32.mrb[0].mxu0
      %v1722 = vadd.f32 0.0, %v1721
      %v1723 = vpop.f32.mrb[0].mxu0
      %v1724 = vpop.f32.mrb[0].mxu0
      %v1725 = vadd.f32 0.0, %v1724
      %v1726 = vpop.f32.mrb[0].mxu0
      %1727 = vdwg.mxu0
      %v1728 = vld [vmem:[%s7] sm:$0xf]
      %v1729 = vld [vmem:[%s7 + $0x4] sm:$0xf]
      %v1730 = vld [vmem:[%s7 + $0x8] sm:$0xf]
      %v1731 = vld [vmem:[%s7 + $0xc] sm:$0xf]
      %v1732 = vld [vmem:[%s7 + $0x10] sm:$0xf]
      %v1733 = vld [vmem:[%s7 + $0x14] sm:$0xf]
      %v1734 = vld [vmem:[%s7 + $0x18] sm:$0xf]
      %v1735 = vld [vmem:[%s7 + $0x1c] sm:$0xf]
      %v1736 = vld [vmem:[%s7 + $0x20] sm:$0xf]
      %v1737 = vld [vmem:[%s7 + $0x24] sm:$0xf]
      %v1738 = vld [vmem:[%s7 + $0x28] sm:$0xf]
      %v1739 = vld [vmem:[%s7 + $0x2c] sm:$0xf]
      %v1740 = vld [vmem:[%s7 + $0x30] sm:$0xf]
      %v1741 = vld [vmem:[%s7 + $0x34] sm:$0xf]
      %v1742 = vld [vmem:[%s7 + $0x38] sm:$0xf]
      %v1743 = vld [vmem:[%s7 + $0x3c] sm:$0xf]
      %v1744 = vld [vmem:[%s7 + $0x40] sm:$0xf]
      %v1745 = vld [vmem:[%s7 + $0x44] sm:$0xf]
      %v1746 = vld [vmem:[%s7 + $0x48] sm:$0xf]
      %v1747 = vld [vmem:[%s7 + $0x4c] sm:$0xf]
      %v1748 = vld [vmem:[%s7 + $0x50] sm:$0xf]
      %v1749 = vld [vmem:[%s7 + $0x54] sm:$0xf]
      %v1750 = vld [vmem:[%s7 + $0x58] sm:$0xf]
      %v1751 = vld [vmem:[%s7 + $0x5c] sm:$0xf]
      %v1752 = vld [vmem:[%s7 + $0x60] sm:$0xf]
      %v1753 = vld [vmem:[%s7 + $0x64] sm:$0xf]
      %v1754 = vld [vmem:[%s7 + $0x68] sm:$0xf]
      %v1755 = vld [vmem:[%s7 + $0x6c] sm:$0xf]
      %v1756 = vld [vmem:[%s7 + $0x70] sm:$0xf]
      %v1757 = vld [vmem:[%s7 + $0x74] sm:$0xf]
      %v1758 = vld [vmem:[%s7 + $0x78] sm:$0xf]
      %v1759 = vld [vmem:[%s7 + $0x7c] sm:$0xf]
      %v1760 = vld [vmem:[%s7 + $0x80] sm:$0xf]
      %v1761 = vld [vmem:[%s7 + $0x84] sm:$0xf]
      %v1762 = vld [vmem:[%s7 + $0x88] sm:$0xf]
      %v1763 = vld [vmem:[%s7 + $0x8c] sm:$0xf]
      %v1764 = vpack.c.bf16 %v1661, %v1658
      %v1765 = vpack.c.bf16 %v1669, %v1666
      %v1770 = vunpack.c.l.b16 %v1732
      %v1771 = vunpack.c.l.b16 %v1733
      %v1772 = vunpack.c.l.b16 %v1734
      %v1773 = vunpack.c.l.b16 %v1735
      %v1774 = vpack.c.b16 %v1771, %v1770
      %v1775 = vpack.c.b16 %v1773, %v1772
      %vm1778 = vcmask 261120
      %v1780 = vsel %vm1778, %v1765, 0
      %1782 = vmatprep.subr.bf16.mxu0 0
      %1783 = vmatpush1.bf16.msra.mxu0 %v1774
      %1784 = vmatprep.subr.bf16.mxu0 0
      %1785 = vmatpush1.bf16.msra.mxu0 %v1775
      %1786 = vmatprep.subr.bf16.mxu0 0
      %1787 = vmatpush1.bf16.msra.mxu0 0
      %1788 = vmatprep.subr.bf16.mxu0 0
      %1789 = vmatpush1.bf16.msra.mxu0 0
      %1790 = vmatprep.subr.bf16.mxu0 0
      %1791 = vmatpush1.bf16.msra.mxu0 0
      %1792 = vmatprep.subr.bf16.mxu0 0
      %1793 = vmatpush1.bf16.msra.mxu0 0
      %1794 = vmatprep.subr.bf16.mxu0 0
      %1795 = vmatpush1.bf16.msra.mxu0 0
      %1796 = vmatprep.subr.bf16.mxu0 0
      %1797 = vmatpush1.bf16.msra.mxu0 0
      %1798 = vmatprep.subr.bf16.mxu0 0
      %1799 = vmatpush1.bf16.msra.mxu0 0
      %1800 = vmatprep.subr.bf16.mxu0 0
      %1801 = vmatpush1.bf16.msra.mxu0 0
      %1802 = vmatprep.subr.bf16.mxu0 0
      %1803 = vmatpush1.bf16.msra.mxu0 0
      %1804 = vmatprep.subr.bf16.mxu0 0
      %1805 = vmatpush1.bf16.msra.mxu0 0
      %1806 = vmatprep.subr.bf16.mxu0 0
      %1807 = vmatpush1.bf16.msra.mxu0 0
      %1808 = vmatprep.subr.bf16.mxu0 0
      %1809 = vmatpush1.bf16.msra.mxu0 0
      %1810 = vmatprep.subr.bf16.mxu0 0
      %1811 = vmatpush1.bf16.msra.mxu0 0
      %1812 = vmatprep.subr.bf16.mxu0 0
      %1813 = vmatpush1.bf16.msra.mxu0 0
      %1814 = vmatprep.mubr.bf16.mxu0 0
      %1815 = vmatmul.mubr.bf16.gmra.mrb[0].mxu0 %v1780
      %v1816 = vpop.f32.mrb[0].mxu0
      %v1817 = vadd.f32 0.0, %v1816
      %v1818 = vpop.f32.mrb[0].mxu0
      %v1819 = vpop.f32.mrb[0].mxu0
      %v1820 = vadd.f32 0.0, %v1819
      %v1821 = vpop.f32.mrb[0].mxu0
      %1822 = vdwg.mxu0
      %v1827 = vunpack.c.l.b16 %v1728
      %v1828 = vunpack.c.l.b16 %v1729
      %v1829 = vunpack.c.l.b16 %v1730
      %v1830 = vunpack.c.l.b16 %v1731
      %v1831 = vpack.c.b16 %v1828, %v1827
      %v1832 = vpack.c.b16 %v1830, %v1829
      %v1836 = vsel %vm1778, %v1764, 0
      %1838 = vmatprep.subr.bf16.mxu0 0
      %1839 = vmatpush1.bf16.msra.mxu0 %v1831
      %1840 = vmatprep.subr.bf16.mxu0 0
      %1841 = vmatpush1.bf16.msra.mxu0 %v1832
      %1842 = vmatprep.subr.bf16.mxu0 0
      %1843 = vmatpush1.bf16.msra.mxu0 0
      %1844 = vmatprep.subr.bf16.mxu0 0
      %1845 = vmatpush1.bf16.msra.mxu0 0
      %1846 = vmatprep.subr.bf16.mxu0 0
      %1847 = vmatpush1.bf16.msra.mxu0 0
      %1848 = vmatprep.subr.bf16.mxu0 0
      %1849 = vmatpush1.bf16.msra.mxu0 0
      %1850 = vmatprep.subr.bf16.mxu0 0
      %1851 = vmatpush1.bf16.msra.mxu0 0
      %1852 = vmatprep.subr.bf16.mxu0 0
      %1853 = vmatpush1.bf16.msra.mxu0 0
      %1854 = vmatprep.subr.bf16.mxu0 0
      %1855 = vmatpush1.bf16.msra.mxu0 0
      %1856 = vmatprep.subr.bf16.mxu0 0
      %1857 = vmatpush1.bf16.msra.mxu0 0
      %1858 = vmatprep.subr.bf16.mxu0 0
      %1859 = vmatpush1.bf16.msra.mxu0 0
      %1860 = vmatprep.subr.bf16.mxu0 0
      %1861 = vmatpush1.bf16.msra.mxu0 0
      %1862 = vmatprep.subr.bf16.mxu0 0
      %1863 = vmatpush1.bf16.msra.mxu0 0
      %1864 = vmatprep.subr.bf16.mxu0 0
      %1865 = vmatpush1.bf16.msra.mxu0 0
      %1866 = vmatprep.subr.bf16.mxu0 0
      %1867 = vmatpush1.bf16.msra.mxu0 0
      %1868 = vmatprep.subr.bf16.mxu0 0
      %1869 = vmatpush1.bf16.msra.mxu0 0
      %1870 = vmatprep.mubr.bf16.mxu0 0
      %1871 = vmatmul.mubr.bf16.gmra.mrb[0].mxu0 %v1836
      %v1872 = vpop.f32.mrb[0].mxu0
      %v1873 = vadd.f32 %v1817, %v1872
      %v1874 = vpop.f32.mrb[0].mxu0
      %v1875 = vpop.f32.mrb[0].mxu0
      %v1876 = vadd.f32 %v1820, %v1875
      %v1877 = vpop.f32.mrb[0].mxu0
      %1878 = vdwg.mxu0
      %v1879 = vpack.c.bf16 %v1677, %v1674
      %v1884 = vunpack.c.l.b16 %v1736
      %v1885 = vunpack.c.l.b16 %v1737
      %v1886 = vunpack.c.l.b16 %v1738
      %v1887 = vunpack.c.l.b16 %v1739
      %v1888 = vpack.c.b16 %v1885, %v1884
      %v1889 = vpack.c.b16 %v1887, %v1886
      %v1893 = vsel %vm1778, %v1879, 0
      %1895 = vmatprep.subr.bf16.mxu0 0
      %1896 = vmatpush1.bf16.msra.mxu0 %v1888
      %1897 = vmatprep.subr.bf16.mxu0 0
      %1898 = vmatpush1.bf16.msra.mxu0 %v1889
      %1899 = vmatprep.subr.bf16.mxu0 0
      %1900 = vmatpush1.bf16.msra.mxu0 0
      %1901 = vmatprep.subr.bf16.mxu0 0
      %1902 = vmatpush1.bf16.msra.mxu0 0
      %1903 = vmatprep.subr.bf16.mxu0 0
      %1904 = vmatpush1.bf16.msra.mxu0 0
      %1905 = vmatprep.subr.bf16.mxu0 0
      %1906 = vmatpush1.bf16.msra.mxu0 0
      %1907 = vmatprep.subr.bf16.mxu0 0
      %1908 = vmatpush1.bf16.msra.mxu0 0
      %1909 = vmatprep.subr.bf16.mxu0 0
      %1910 = vmatpush1.bf16.msra.mxu0 0
      %1911 = vmatprep.subr.bf16.mxu0 0
      %1912 = vmatpush1.bf16.msra.mxu0 0
      %1913 = vmatprep.subr.bf16.mxu0 0
      %1914 = vmatpush1.bf16.msra.mxu0 0
      %1915 = vmatprep.subr.bf16.mxu0 0
      %1916 = vmatpush1.bf16.msra.mxu0 0
      %1917 = vmatprep.subr.bf16.mxu0 0
      %1918 = vmatpush1.bf16.msra.mxu0 0
      %1919 = vmatprep.subr.bf16.mxu0 0
      %1920 = vmatpush1.bf16.msra.mxu0 0
      %1921 = vmatprep.subr.bf16.mxu0 0
      %1922 = vmatpush1.bf16.msra.mxu0 0
      %1923 = vmatprep.subr.bf16.mxu0 0
      %1924 = vmatpush1.bf16.msra.mxu0 0
      %1925 = vmatprep.subr.bf16.mxu0 0
      %1926 = vmatpush1.bf16.msra.mxu0 0
      %1927 = vmatprep.mubr.bf16.mxu0 0
      %1928 = vmatmul.mubr.bf16.gmra.mrb[0].mxu0 %v1893
      %v1929 = vpop.f32.mrb[0].mxu0
      %v1930 = vadd.f32 0.0, %v1929
      %v1931 = vpop.f32.mrb[0].mxu0
      %v1932 = vpop.f32.mrb[0].mxu0
      %v1933 = vadd.f32 0.0, %v1932
      %v1934 = vpop.f32.mrb[0].mxu0
      %1935 = vdwg.mxu0
      %v1936 = vadd.f32 %v1873, %v1930
      %v1937 = vadd.f32 %v1876, %v1933
      %v1938 = vpack.c.bf16 %v1685, %v1682
      %v1943 = vunpack.c.l.b16 %v1740
      %v1944 = vunpack.c.l.b16 %v1741
      %v1945 = vunpack.c.l.b16 %v1742
      %v1946 = vunpack.c.l.b16 %v1743
      %v1947 = vpack.c.b16 %v1944, %v1943
      %v1948 = vpack.c.b16 %v1946, %v1945
      %v1952 = vsel %vm1778, %v1938, 0
      %1954 = vmatprep.subr.bf16.mxu0 0
      %1955 = vmatpush1.bf16.msra.mxu0 %v1947
      %1956 = vmatprep.subr.bf16.mxu0 0
      %1957 = vmatpush1.bf16.msra.mxu0 %v1948
      %1958 = vmatprep.subr.bf16.mxu0 0
      %1959 = vmatpush1.bf16.msra.mxu0 0
      %1960 = vmatprep.subr.bf16.mxu0 0
      %1961 = vmatpush1.bf16.msra.mxu0 0
      %1962 = vmatprep.subr.bf16.mxu0 0
      %1963 = vmatpush1.bf16.msra.mxu0 0
      %1964 = vmatprep.subr.bf16.mxu0 0
      %1965 = vmatpush1.bf16.msra.mxu0 0
      %1966 = vmatprep.subr.bf16.mxu0 0
      %1967 = vmatpush1.bf16.msra.mxu0 0
      %1968 = vmatprep.subr.bf16.mxu0 0
      %1969 = vmatpush1.bf16.msra.mxu0 0
      %1970 = vmatprep.subr.bf16.mxu0 0
      %1971 = vmatpush1.bf16.msra.mxu0 0
      %1972 = vmatprep.subr.bf16.mxu0 0
      %1973 = vmatpush1.bf16.msra.mxu0 0
      %1974 = vmatprep.subr.bf16.mxu0 0
      %1975 = vmatpush1.bf16.msra.mxu0 0
      %1976 = vmatprep.subr.bf16.mxu0 0
      %1977 = vmatpush1.bf16.msra.mxu0 0
      %1978 = vmatprep.subr.bf16.mxu0 0
      %1979 = vmatpush1.bf16.msra.mxu0 0
      %1980 = vmatprep.subr.bf16.mxu0 0
      %1981 = vmatpush1.bf16.msra.mxu0 0
      %1982 = vmatprep.subr.bf16.mxu0 0
      %1983 = vmatpush1.bf16.msra.mxu0 0
      %1984 = vmatprep.subr.bf16.mxu0 0
      %1985 = vmatpush1.bf16.msra.mxu0 0
      %1986 = vmatprep.mubr.bf16.mxu0 0
      %1987 = vmatmul.mubr.bf16.gmra.mrb[0].mxu0 %v1952
      %v1988 = vpop.f32.mrb[0].mxu0
      %v1989 = vadd.f32 0.0, %v1988
      %v1990 = vpop.f32.mrb[0].mxu0
      %v1991 = vpop.f32.mrb[0].mxu0
      %v1992 = vadd.f32 0.0, %v1991
      %v1993 = vpop.f32.mrb[0].mxu0
      %1994 = vdwg.mxu0
      %v1995 = vadd.f32 %v1936, %v1989
      %v1996 = vadd.f32 %v1937, %v1992
      %v1997 = vpack.c.bf16 %v1693, %v1690
      %v2002 = vunpack.c.l.b16 %v1744
      %v2003 = vunpack.c.l.b16 %v1745
      %v2004 = vunpack.c.l.b16 %v1746
      %v2005 = vunpack.c.l.b16 %v1747
      %v2006 = vpack.c.b16 %v2003, %v2002
      %v2007 = vpack.c.b16 %v2005, %v2004
      %v2011 = vsel %vm1778, %v1997, 0
      %2013 = vmatprep.subr.bf16.mxu0 0
      %2014 = vmatpush1.bf16.msra.mxu0 %v2006
      %2015 = vmatprep.subr.bf16.mxu0 0
      %2016 = vmatpush1.bf16.msra.mxu0 %v2007
      %2017 = vmatprep.subr.bf16.mxu0 0
      %2018 = vmatpush1.bf16.msra.mxu0 0
      %2019 = vmatprep.subr.bf16.mxu0 0
      %2020 = vmatpush1.bf16.msra.mxu0 0
      %2021 = vmatprep.subr.bf16.mxu0 0
      %2022 = vmatpush1.bf16.msra.mxu0 0
      %2023 = vmatprep.subr.bf16.mxu0 0
      %2024 = vmatpush1.bf16.msra.mxu0 0
      %2025 = vmatprep.subr.bf16.mxu0 0
      %2026 = vmatpush1.bf16.msra.mxu0 0
      %2027 = vmatprep.subr.bf16.mxu0 0
      %2028 = vmatpush1.bf16.msra.mxu0 0
      %2029 = vmatprep.subr.bf16.mxu0 0
      %2030 = vmatpush1.bf16.msra.mxu0 0
      %2031 = vmatprep.subr.bf16.mxu0 0
      %2032 = vmatpush1.bf16.msra.mxu0 0
      %2033 = vmatprep.subr.bf16.mxu0 0
      %2034 = vmatpush1.bf16.msra.mxu0 0
      %2035 = vmatprep.subr.bf16.mxu0 0
      %2036 = vmatpush1.bf16.msra.mxu0 0
      %2037 = vmatprep.subr.bf16.mxu0 0
      %2038 = vmatpush1.bf16.msra.mxu0 0
      %2039 = vmatprep.subr.bf16.mxu0 0
      %2040 = vmatpush1.bf16.msra.mxu0 0
      %2041 = vmatprep.subr.bf16.mxu0 0
      %2042 = vmatpush1.bf16.msra.mxu0 0
      %2043 = vmatprep.subr.bf16.mxu0 0
      %2044 = vmatpush1.bf16.msra.mxu0 0
      %2045 = vmatprep.mubr.bf16.mxu0 0
      %2046 = vmatmul.mubr.bf16.gmra.mrb[0].mxu0 %v2011
      %v2047 = vpop.f32.mrb[0].mxu0
      %v2048 = vadd.f32 0.0, %v2047
      %v2049 = vpop.f32.mrb[0].mxu0
      %v2050 = vpop.f32.mrb[0].mxu0
      %v2051 = vadd.f32 0.0, %v2050
      %v2052 = vpop.f32.mrb[0].mxu0
      %2053 = vdwg.mxu0
      %v2054 = vadd.f32 %v1995, %v2048
      %v2055 = vadd.f32 %v1996, %v2051
      %v2056 = vpack.c.bf16 %v1701, %v1698
      %v2061 = vunpack.c.l.b16 %v1748
      %v2062 = vunpack.c.l.b16 %v1749
      %v2063 = vunpack.c.l.b16 %v1750
      %v2064 = vunpack.c.l.b16 %v1751
      %v2065 = vpack.c.b16 %v2062, %v2061
      %v2066 = vpack.c.b16 %v2064, %v2063
      %v2070 = vsel %vm1778, %v2056, 0
      %2072 = vmatprep.subr.bf16.mxu0 0
      %2073 = vmatpush1.bf16.msra.mxu0 %v2065
      %2074 = vmatprep.subr.bf16.mxu0 0
      %2075 = vmatpush1.bf16.msra.mxu0 %v2066
      %2076 = vmatprep.subr.bf16.mxu0 0
      %2077 = vmatpush1.bf16.msra.mxu0 0
      %2078 = vmatprep.subr.bf16.mxu0 0
      %2079 = vmatpush1.bf16.msra.mxu0 0
      %2080 = vmatprep.subr.bf16.mxu0 0
      %2081 = vmatpush1.bf16.msra.mxu0 0
      %2082 = vmatprep.subr.bf16.mxu0 0
      %2083 = vmatpush1.bf16.msra.mxu0 0
      %2084 = vmatprep.subr.bf16.mxu0 0
      %2085 = vmatpush1.bf16.msra.mxu0 0
      %2086 = vmatprep.subr.bf16.mxu0 0
      %2087 = vmatpush1.bf16.msra.mxu0 0
      %2088 = vmatprep.subr.bf16.mxu0 0
      %2089 = vmatpush1.bf16.msra.mxu0 0
      %2090 = vmatprep.subr.bf16.mxu0 0
      %2091 = vmatpush1.bf16.msra.mxu0 0
      %2092 = vmatprep.subr.bf16.mxu0 0
      %2093 = vmatpush1.bf16.msra.mxu0 0
      %2094 = vmatprep.subr.bf16.mxu0 0
      %2095 = vmatpush1.bf16.msra.mxu0 0
      %2096 = vmatprep.subr.bf16.mxu0 0
      %2097 = vmatpush1.bf16.msra.mxu0 0
      %2098 = vmatprep.subr.bf16.mxu0 0
      %2099 = vmatpush1.bf16.msra.mxu0 0
      %2100 = vmatprep.subr.bf16.mxu0 0
      %2101 = vmatpush1.bf16.msra.mxu0 0
      %2102 = vmatprep.subr.bf16.mxu0 0
      %2103 = vmatpush1.bf16.msra.mxu0 0
      %2104 = vmatprep.mubr.bf16.mxu0 0
      %2105 = vmatmul.mubr.bf16.gmra.mrb[0].mxu0 %v2070
      %v2106 = vpop.f32.mrb[0].mxu0
      %v2107 = vadd.f32 0.0, %v2106
      %v2108 = vpop.f32.mrb[0].mxu0
      %v2109 = vpop.f32.mrb[0].mxu0
      %v2110 = vadd.f32 0.0, %v2109
      %v2111 = vpop.f32.mrb[0].mxu0
      %2112 = vdwg.mxu0
      %v2113 = vadd.f32 %v2054, %v2107
      %v2114 = vadd.f32 %v2055, %v2110
      %v2115 = vpack.c.bf16 %v1709, %v1706
      %v2120 = vunpack.c.l.b16 %v1752
      %v2121 = vunpack.c.l.b16 %v1753
      %v2122 = vunpack.c.l.b16 %v1754
      %v2123 = vunpack.c.l.b16 %v1755
      %v2124 = vpack.c.b16 %v2121, %v2120
      %v2125 = vpack.c.b16 %v2123, %v2122
      %v2129 = vsel %vm1778, %v2115, 0
      %2131 = vmatprep.subr.bf16.mxu0 0
      %2132 = vmatpush1.bf16.msra.mxu0 %v2124
      %2133 = vmatprep.subr.bf16.mxu0 0
      %2134 = vmatpush1.bf16.msra.mxu0 %v2125
      %2135 = vmatprep.subr.bf16.mxu0 0
      %2136 = vmatpush1.bf16.msra.mxu0 0
      %2137 = vmatprep.subr.bf16.mxu0 0
      %2138 = vmatpush1.bf16.msra.mxu0 0
      %2139 = vmatprep.subr.bf16.mxu0 0
      %2140 = vmatpush1.bf16.msra.mxu0 0
      %2141 = vmatprep.subr.bf16.mxu0 0
      %2142 = vmatpush1.bf16.msra.mxu0 0
      %2143 = vmatprep.subr.bf16.mxu0 0
      %2144 = vmatpush1.bf16.msra.mxu0 0
      %2145 = vmatprep.subr.bf16.mxu0 0
      %2146 = vmatpush1.bf16.msra.mxu0 0
      %2147 = vmatprep.subr.bf16.mxu0 0
      %2148 = vmatpush1.bf16.msra.mxu0 0
      %2149 = vmatprep.subr.bf16.mxu0 0
      %2150 = vmatpush1.bf16.msra.mxu0 0
      %2151 = vmatprep.subr.bf16.mxu0 0
      %2152 = vmatpush1.bf16.msra.mxu0 0
      %2153 = vmatprep.subr.bf16.mxu0 0
      %2154 = vmatpush1.bf16.msra.mxu0 0
      %2155 = vmatprep.subr.bf16.mxu0 0
      %2156 = vmatpush1.bf16.msra.mxu0 0
      %2157 = vmatprep.subr.bf16.mxu0 0
      %2158 = vmatpush1.bf16.msra.mxu0 0
      %2159 = vmatprep.subr.bf16.mxu0 0
      %2160 = vmatpush1.bf16.msra.mxu0 0
      %2161 = vmatprep.subr.bf16.mxu0 0
      %2162 = vmatpush1.bf16.msra.mxu0 0
      %2163 = vmatprep.mubr.bf16.mxu0 0
      %2164 = vmatmul.mubr.bf16.gmra.mrb[0].mxu0 %v2129
      %v2165 = vpop.f32.mrb[0].mxu0
      %v2166 = vadd.f32 0.0, %v2165
      %v2167 = vpop.f32.mrb[0].mxu0
      %v2168 = vpop.f32.mrb[0].mxu0
      %v2169 = vadd.f32 0.0, %v2168
      %v2170 = vpop.f32.mrb[0].mxu0
      %2171 = vdwg.mxu0
      %v2172 = vadd.f32 %v2113, %v2166
      %v2173 = vadd.f32 %v2114, %v2169
      %v2174 = vpack.c.bf16 %v1717, %v1714
      %v2179 = vunpack.c.l.b16 %v1756
      %v2180 = vunpack.c.l.b16 %v1757
      %v2181 = vunpack.c.l.b16 %v1758
      %v2182 = vunpack.c.l.b16 %v1759
      %v2183 = vpack.c.b16 %v2180, %v2179
      %v2184 = vpack.c.b16 %v2182, %v2181
      %v2188 = vsel %vm1778, %v2174, 0
      %2190 = vmatprep.subr.bf16.mxu0 0
      %2191 = vmatpush1.bf16.msra.mxu0 %v2183
      %2192 = vmatprep.subr.bf16.mxu0 0
      %2193 = vmatpush1.bf16.msra.mxu0 %v2184
      %2194 = vmatprep.subr.bf16.mxu0 0
      %2195 = vmatpush1.bf16.msra.mxu0 0
      %2196 = vmatprep.subr.bf16.mxu0 0
      %2197 = vmatpush1.bf16.msra.mxu0 0
      %2198 = vmatprep.subr.bf16.mxu0 0
      %2199 = vmatpush1.bf16.msra.mxu0 0
      %2200 = vmatprep.subr.bf16.mxu0 0
      %2201 = vmatpush1.bf16.msra.mxu0 0
      %2202 = vmatprep.subr.bf16.mxu0 0
      %2203 = vmatpush1.bf16.msra.mxu0 0
      %2204 = vmatprep.subr.bf16.mxu0 0
      %2205 = vmatpush1.bf16.msra.mxu0 0
      %2206 = vmatprep.subr.bf16.mxu0 0
      %2207 = vmatpush1.bf16.msra.mxu0 0
      %2208 = vmatprep.subr.bf16.mxu0 0
      %2209 = vmatpush1.bf16.msra.mxu0 0
      %2210 = vmatprep.subr.bf16.mxu0 0
      %2211 = vmatpush1.bf16.msra.mxu0 0
      %2212 = vmatprep.subr.bf16.mxu0 0
      %2213 = vmatpush1.bf16.msra.mxu0 0
      %2214 = vmatprep.subr.bf16.mxu0 0
      %2215 = vmatpush1.bf16.msra.mxu0 0
      %2216 = vmatprep.subr.bf16.mxu0 0
      %2217 = vmatpush1.bf16.msra.mxu0 0
      %2218 = vmatprep.subr.bf16.mxu0 0
      %2219 = vmatpush1.bf16.msra.mxu0 0
      %2220 = vmatprep.subr.bf16.mxu0 0
      %2221 = vmatpush1.bf16.msra.mxu0 0
      %2222 = vmatprep.mubr.bf16.mxu0 0
      %2223 = vmatmul.mubr.bf16.gmra.mrb[0].mxu0 %v2188
      %v2224 = vpop.f32.mrb[0].mxu0
      %v2225 = vadd.f32 0.0, %v2224
      %v2226 = vpop.f32.mrb[0].mxu0
      %v2227 = vpop.f32.mrb[0].mxu0
      %v2228 = vadd.f32 0.0, %v2227
      %v2229 = vpop.f32.mrb[0].mxu0
      %2230 = vdwg.mxu0
      %v2231 = vadd.f32 %v2172, %v2225
      %v2232 = vadd.f32 %v2173, %v2228
      %v2233 = vpack.c.bf16 %v1725, %v1722
      %v2238 = vunpack.c.l.b16 %v1760
      %v2239 = vunpack.c.l.b16 %v1761
      %v2240 = vunpack.c.l.b16 %v1762
      %v2241 = vunpack.c.l.b16 %v1763
      %v2242 = vpack.c.b16 %v2239, %v2238
      %v2243 = vpack.c.b16 %v2241, %v2240
      %v2247 = vsel %vm1778, %v2233, 0
      %2249 = vmatprep.subr.bf16.mxu0 0
      %2250 = vmatpush1.bf16.msra.mxu0 %v2242
      %2251 = vmatprep.subr.bf16.mxu0 0
      %2252 = vmatpush1.bf16.msra.mxu0 %v2243
      %2253 = vmatprep.subr.bf16.mxu0 0
      %2254 = vmatpush1.bf16.msra.mxu0 0
      %2255 = vmatprep.subr.bf16.mxu0 0
      %2256 = vmatpush1.bf16.msra.mxu0 0
      %2257 = vmatprep.subr.bf16.mxu0 0
      %2258 = vmatpush1.bf16.msra.mxu0 0
      %2259 = vmatprep.subr.bf16.mxu0 0
      %2260 = vmatpush1.bf16.msra.mxu0 0
      %2261 = vmatprep.subr.bf16.mxu0 0
      %2262 = vmatpush1.bf16.msra.mxu0 0
      %2263 = vmatprep.subr.bf16.mxu0 0
      %2264 = vmatpush1.bf16.msra.mxu0 0
      %2265 = vmatprep.subr.bf16.mxu0 0
      %2266 = vmatpush1.bf16.msra.mxu0 0
      %2267 = vmatprep.subr.bf16.mxu0 0
      %2268 = vmatpush1.bf16.msra.mxu0 0
      %2269 = vmatprep.subr.bf16.mxu0 0
      %2270 = vmatpush1.bf16.msra.mxu0 0
      %2271 = vmatprep.subr.bf16.mxu0 0
      %2272 = vmatpush1.bf16.msra.mxu0 0
      %2273 = vmatprep.subr.bf16.mxu0 0
      %2274 = vmatpush1.bf16.msra.mxu0 0
      %2275 = vmatprep.subr.bf16.mxu0 0
      %2276 = vmatpush1.bf16.msra.mxu0 0
      %2277 = vmatprep.subr.bf16.mxu0 0
      %2278 = vmatpush1.bf16.msra.mxu0 0
      %2279 = vmatprep.subr.bf16.mxu0 0
      %2280 = vmatpush1.bf16.msra.mxu0 0
      %2281 = vmatprep.mubr.bf16.mxu0 0
      %2282 = vmatmul.mubr.bf16.gmra.mrb[0].mxu0 %v2247
      %v2283 = vpop.f32.mrb[0].mxu0
      %v2284 = vadd.f32 0.0, %v2283
      %v2285 = vpop.f32.mrb[0].mxu0
      %v2286 = vpop.f32.mrb[0].mxu0
      %v2287 = vadd.f32 0.0, %v2286
      %v2288 = vpop.f32.mrb[0].mxu0
      %2289 = vdwg.mxu0
      %v2290 = vadd.f32 %v2231, %v2284
      %v2291 = vadd.f32 %v2232, %v2287
      %v2292 = vlaneseq
      %v2293 = vshrl.u32 %v2292, 7
      %v2294 = vsub.s32 0, %v2293
      %v2295 = vrot.slane %v441, %v2294
      %v2296 = vadd.f32 %v2290, %v2295
      %v2297 = vadd.f32 %v2291, %v2295
      %v2298 = vld [vmem:[%s9] sm:$0xff]
      %v2299 = vld [vmem:[%s9 + $0x8] sm:$0xff]
      %v2300 = vld [vmem:[%s9 + $0x10] sm:$0xff]
      %v2301 = vld [vmem:[%s9 + $0x18] sm:$0xff]
      %v2302 = vld [vmem:[%s9 + $0x20] sm:$0xff]
      %v2303 = vld [vmem:[%s9 + $0x28] sm:$0xff]
      %v2304 = vld [vmem:[%s9 + $0x30] sm:$0xff]
      %v2305 = vld [vmem:[%s9 + $0x38] sm:$0xff]
      %v2306 = vld [vmem:[%s9 + $0x40] sm:$0xff]
      %v2307 = vld [vmem:[%s9 + $0x48] sm:$0xff]
      %v2308 = vld [vmem:[%s9 + $0x50] sm:$0xff]
      %v2309 = vld [vmem:[%s9 + $0x58] sm:$0xff]
      %v2310 = vld [vmem:[%s9 + $0x60] sm:$0xff]
      %v2311 = vld [vmem:[%s9 + $0x68] sm:$0xff]
      %v2312 = vld [vmem:[%s9 + $0x70] sm:$0xff]
      %v2313 = vld [vmem:[%s9 + $0x78] sm:$0xff]
      %v2314 = vld [vmem:[%s10] sm:$0x3]
      %v2315 = vld [vmem:[%s11] sm:$0xf]
      %v2316 = vld [vmem:[%s11 + $0x4] sm:$0xf]
      %v2317 = vld [vmem:[%s11 + $0x8] sm:$0xf]
      %v2318 = vld [vmem:[%s11 + $0xc] sm:$0xf]
      %v2319 = vld [vmem:[%s11 + $0x10] sm:$0xf]
      %v2320 = vld [vmem:[%s11 + $0x14] sm:$0xf]
      %v2321 = vld [vmem:[%s11 + $0x18] sm:$0xf]
      %v2322 = vld [vmem:[%s11 + $0x1c] sm:$0xf]
      %v2323 = vld [vmem:[%s11 + $0x20] sm:$0xf]
      %v2324 = vld [vmem:[%s11 + $0x24] sm:$0xf]
      %v2325 = vld [vmem:[%s11 + $0x28] sm:$0xf]
      %v2326 = vld [vmem:[%s11 + $0x2c] sm:$0xf]
      %v2327 = vld [vmem:[%s11 + $0x30] sm:$0xf]
      %v2328 = vld [vmem:[%s11 + $0x34] sm:$0xf]
      %v2329 = vld [vmem:[%s11 + $0x38] sm:$0xf]
      %v2330 = vld [vmem:[%s11 + $0x3c] sm:$0xf]
      %v2331 = vld [vmem:[%s11 + $0x40] sm:$0xf]
      %v2332 = vld [vmem:[%s11 + $0x44] sm:$0xf]
      %v2333 = vld [vmem:[%s11 + $0x48] sm:$0xf]
      %v2334 = vld [vmem:[%s11 + $0x4c] sm:$0xf]
      %v2335 = vld [vmem:[%s11 + $0x50] sm:$0xf]
      %v2336 = vld [vmem:[%s11 + $0x54] sm:$0xf]
      %v2337 = vld [vmem:[%s11 + $0x58] sm:$0xf]
      %v2338 = vld [vmem:[%s11 + $0x5c] sm:$0xf]
      %v2339 = vld [vmem:[%s11 + $0x60] sm:$0xf]
      %v2340 = vld [vmem:[%s11 + $0x64] sm:$0xf]
      %v2341 = vld [vmem:[%s11 + $0x68] sm:$0xf]
      %v2342 = vld [vmem:[%s11 + $0x6c] sm:$0xf]
      %v2343 = vld [vmem:[%s11 + $0x70] sm:$0xf]
      %v2344 = vld [vmem:[%s11 + $0x74] sm:$0xf]
      %v2345 = vld [vmem:[%s11 + $0x78] sm:$0xf]
      %v2346 = vld [vmem:[%s11 + $0x7c] sm:$0xf]
      %v2347 = vadd.f32 %v2296, %v2297
      %2348 = vadd.xlane.f32.xlu0 %v2347
      %v2349 = vpop.xlane.xlu0 %2348
      %v2350 = vrot.slane %v2349, 4
      %v2351 = vadd.f32 %v2349, %v2350
      %v2352 = vrot.slane %v2351, 2
      %v2353 = vadd.f32 %v2351, %v2352
      %v2354 = vrot.slane %v2353, 1
      %v2355 = vadd.f32 %v2353, %v2354
      %s2356 = vtos %v2355
      %v2357 = vstv %s2356
      %v2358 = vmul.f32 %v2357, 0.0009765625
      %v2359 = vmul.f32 %v2296, %v2296
      %v2360 = vmul.f32 %v2297, %v2297
      %v2361 = vadd.f32 %v2359, %v2360
      %2362 = vadd.xlane.f32.xlu0 %v2361
      %v2363 = vpop.xlane.xlu0 %2362
      %v2364 = vrot.slane %v2363, 4
      %v2365 = vadd.f32 %v2363, %v2364
      %v2366 = vrot.slane %v2365, 2
      %v2367 = vadd.f32 %v2365, %v2366
      %v2368 = vrot.slane %v2367, 1
      %v2369 = vadd.f32 %v2367, %v2368
      %s2370 = vtos %v2369
      %v2371 = vstv %s2370
      %v2372 = vmul.f32 %v2371, 0.0009765625
      %v2373 = vmul.f32 %v2358, %v2358
      %v2374 = vsub.f32 %v2372, %v2373
      %v2375 = vsub.f32 %v2296, %v2358
      %v2376 = vsub.f32 %v2297, %v2358
      %v2377 = vadd.f32 %v2374, 1e-05
      %v2378 = vrsqrt.pop %v2377
      %v2379 = vmul.f32 %v2375, %v2378
      %v2380 = vmul.f32 %v2376, %v2378
      %v2381 = vlaneseq
      %v2382 = vshrl.u32 %v2381, 7
      %v2383 = vsub.s32 1, %v2382
      %v2384 = vrot.slane %v441, %v2383
      %v2385 = vmul.f32 %v2379, %v2384
      %v2386 = vmul.f32 %v2380, %v2384
      %v2387 = vlaneseq
      %v2388 = vshrl.u32 %v2387, 7
      %v2389 = vsub.s32 2, %v2388
      %v2390 = vrot.slane %v441, %v2389
      %v2391 = vadd.f32 %v2385, %v2390
      %v2392 = vadd.f32 %v2386, %v2390
      %2393 = vst [vmem:[#allocation2] sm:$0xff] 0.0
      %2394 = vst [vmem:[#allocation2 + $0x8] sm:$0xff] 0.0
      %2395 = vst [vmem:[#allocation2 + $0x10] sm:$0xff] 0.0
      %2396 = vst [vmem:[#allocation2 + $0x18] sm:$0xff] 0.0
      %2397 = vst [vmem:[#allocation2 + $0x20] sm:$0xff] 0.0
      %2398 = vst [vmem:[#allocation2 + $0x28] sm:$0xff] 0.0
      %2399 = vst [vmem:[#allocation2 + $0x30] sm:$0xff] 0.0
      %2400 = vst [vmem:[#allocation2 + $0x38] sm:$0xff] 0.0
      %2401 = vst [vmem:[#allocation2 + $0x40] sm:$0xff] 0.0
      %2402 = vst [vmem:[#allocation2 + $0x48] sm:$0xff] 0.0
      %2403 = vst [vmem:[#allocation2 + $0x4] sm:$0xff] %v2391
      %2404 = vst [vmem:[#allocation2 + $0xc] sm:$0xff] %v2392
      %v2405 = vld [vmem:[#allocation2] sm:$0xff]
      %v2406 = vld [vmem:[#allocation2 + $0x8] sm:$0xff]
      %v2407 = vadd.f32 %v2391, %v2405
      %v2408 = vadd.f32 %v2392, %v2406
      %v2409 = vld [vmem:[#allocation2 + $0x10] sm:$0xff]
      %v2410 = vadd.f32 %v2407, %v2406
      %v2411 = vadd.f32 %v2408, %v2409
      %2412 = vst [vmem:[#allocation2 + $0x4] sm:$0xff] %v2410
      %2413 = vst [vmem:[#allocation2 + $0xc] sm:$0xff] %v2411
      %v2414 = vld [vmem:[#allocation2 + $0x3] sm:$0xff]
      %v2415 = vld [vmem:[#allocation2 + $0xb] sm:$0xff]
      %v2416 = vld [vmem:[#allocation2 + $0x5] sm:$0xff]
      %v2417 = vld [vmem:[#allocation2 + $0xd] sm:$0xff]
      %v2418 = vand.u32 %v884, 3
      %v2419 = vand.u32 %v885, 3
      %vm2420 = vcmp.gt.s32.totalorder %v2418, 0
      %vm2421 = vcmp.gt.s32.totalorder %v2419, 0
      %v2422 = vsel %vm2420, %v2414, 0.0
      %v2423 = vsel %vm2421, %v2415, 0.0
      %v2424 = vadd.f32 %v2410, %v2422
      %v2425 = vadd.f32 %v2411, %v2423
      %vm2426 = vcmp.lt.s32.totalorder %v2418, 3
      %vm2427 = vcmp.lt.s32.totalorder %v2419, 3
      %v2428 = vsel %vm2426, %v2416, 0.0
      %v2429 = vsel %vm2427, %v2417, 0.0
      %v2430 = vadd.f32 %v2424, %v2428
      %v2431 = vadd.f32 %v2425, %v2429
      %vm2432 = vcmp.lt.s32.totalorder %v884, 4
      %vm2433 = vcmp.lt.s32.totalorder %v885, 4
      %v2434 = vsel %vm2432, 1, 0
      %v2435 = vsel %vm2433, 1, 0
      %v2436 = vsub.s32 3, %v2434
      %v2437 = vsub.s32 3, %v2435
      %vm2438 = vcmp.ge.s32.totalorder %v884, 12
      %vm2439 = vcmp.ge.s32.totalorder %v885, 12
      %v2440 = vsel %vm2438, 1, 0
      %v2441 = vsel %vm2439, 1, 0
      %v2442 = vsub.s32 %v2436, %v2440
      %v2443 = vsub.s32 %v2437, %v2441
      %vm2444 = vcmp.eq.s32.totalorder %v2418, 0
      %vm2445 = vcmp.eq.s32.totalorder %v2419, 0
      %v2446 = vsel %vm2444, 1, 0
      %v2447 = vsel %vm2445, 1, 0
      %v2448 = vsub.s32 3, %v2446
      %v2449 = vsub.s32 3, %v2447
      %vm2450 = vcmp.eq.s32.totalorder %v2418, 3
      %vm2451 = vcmp.eq.s32.totalorder %v2419, 3
      %v2452 = vsel %vm2450, 1, 0
      %v2453 = vsel %vm2451, 1, 0
      %v2454 = vsub.s32 %v2448, %v2452
      %v2455 = vsub.s32 %v2449, %v2453
      %v2456 = vmul.u32 %v2442, %v2454
      %v2457 = vmul.u32 %v2443, %v2455
      %v2458 = vcvt.s32.f32 %v2456
      %v2459 = vcvt.s32.f32 %v2457
      %v2460 = vrcp.pop %v2458
      %v2461 = vmul.f32 %v2430, %v2460
      %v2462 = vrcp.pop %v2459
      %v2463 = vmul.f32 %v2431, %v2462
      %v2464 = vsub.f32 %v2461, %v2391
      %v2465 = vsub.f32 %v2463, %v2392
      %v2466 = vlaneseq
      %v2467 = vshrl.u32 %v2466, 7
      %v2468 = vsub.s32 3, %v2467
      %v2469 = vrot.slane %v441, %v2468
      %v2470 = vmul.f32 %v2469, %v2464
      %v2471 = vmul.f32 %v2469, %v2465
      %v2472 = vadd.f32 %v2296, %v2470
      %v2473 = vadd.f32 %v2297, %v2471
      %v2474 = vadd.f32 %v2472, %v2473
      %2475 = vadd.xlane.f32.xlu0 %v2474
      %v2476 = vpop.xlane.xlu0 %2475
      %v2477 = vrot.slane %v2476, 4
      %v2478 = vadd.f32 %v2476, %v2477
      %v2479 = vrot.slane %v2478, 2
      %v2480 = vadd.f32 %v2478, %v2479
      %v2481 = vrot.slane %v2480, 1
      %v2482 = vadd.f32 %v2480, %v2481
      %s2483 = vtos %v2482
      %v2484 = vstv %s2483
      %v2485 = vmul.f32 %v2484, 0.0009765625
      %v2486 = vmul.f32 %v2472, %v2472
      %v2487 = vmul.f32 %v2473, %v2473
      %v2488 = vadd.f32 %v2486, %v2487
      %2489 = vadd.xlane.f32.xlu0 %v2488
      %v2490 = vpop.xlane.xlu0 %2489
      %v2491 = vrot.slane %v2490, 4
      %v2492 = vadd.f32 %v2490, %v2491
      %v2493 = vrot.slane %v2492, 2
      %v2494 = vadd.f32 %v2492, %v2493
      %v2495 = vrot.slane %v2494, 1
      %v2496 = vadd.f32 %v2494, %v2495
      %s2497 = vtos %v2496
      %v2498 = vstv %s2497
      %v2499 = vmul.f32 %v2498, 0.0009765625
      %v2500 = vmul.f32 %v2485, %v2485
      %v2501 = vsub.f32 %v2499, %v2500
      %v2502 = vsub.f32 %v2472, %v2485
      %v2503 = vsub.f32 %v2473, %v2485
      %v2504 = vadd.f32 %v2501, 1e-05
      %v2505 = vrsqrt.pop %v2504
      %v2506 = vmul.f32 %v2502, %v2505
      %v2507 = vmul.f32 %v2503, %v2505
      %v2508 = vlaneseq
      %v2509 = vshrl.u32 %v2508, 7
      %v2510 = vsub.s32 4, %v2509
      %v2511 = vrot.slane %v441, %v2510
      %v2512 = vmul.f32 %v2506, %v2511
      %v2513 = vmul.f32 %v2507, %v2511
      %v2514 = vlaneseq
      %v2515 = vshrl.u32 %v2514, 7
      %v2516 = vsub.s32 5, %v2515
      %v2517 = vrot.slane %v441, %v2516
      %v2518 = vadd.f32 %v2512, %v2517
      %v2519 = vadd.f32 %v2513, %v2517
      %v2520 = vpack.c.bf16 %v2519, %v2518
      %v2522 = vlaneseq
      %v2523 = vshrl.u32 %v2522, 7
      %v2524 = vsub.s32 0, %v2523
      %v2525 = vrot.slane %v2314, %v2524
      %v2526 = vlaneseq
      %v2527 = vshrl.u32 %v2526, 7
      %v2528 = vsub.s32 1, %v2527
      %v2529 = vrot.slane %v2314, %v2528
      %v2548 = vunpack.c.l.b16 %v2298
      %v2549 = vunpack.c.h.b16 %v2298
      %v2550 = vunpack.c.l.b16 %v2299
      %v2551 = vunpack.c.h.b16 %v2299
      %v2552 = vunpack.c.l.b16 %v2300
      %v2553 = vunpack.c.h.b16 %v2300
      %v2554 = vunpack.c.l.b16 %v2301
      %v2555 = vunpack.c.h.b16 %v2301
      %v2556 = vunpack.c.l.b16 %v2302
      %v2557 = vunpack.c.h.b16 %v2302
      %v2558 = vunpack.c.l.b16 %v2303
      %v2559 = vunpack.c.h.b16 %v2303
      %v2560 = vunpack.c.l.b16 %v2304
      %v2561 = vunpack.c.h.b16 %v2304
      %v2562 = vunpack.c.l.b16 %v2305
      %v2563 = vunpack.c.h.b16 %v2305
      %v2564 = vunpack.c.l.b16 %v2306
      %v2565 = vunpack.c.h.b16 %v2306
      %v2566 = vunpack.c.l.b16 %v2307
      %v2567 = vunpack.c.h.b16 %v2307
      %v2568 = vunpack.c.l.b16 %v2308
      %v2569 = vunpack.c.h.b16 %v2308
      %v2570 = vunpack.c.l.b16 %v2309
      %v2571 = vunpack.c.h.b16 %v2309
      %v2572 = vunpack.c.l.b16 %v2310
      %v2573 = vunpack.c.h.b16 %v2310
      %v2574 = vunpack.c.l.b16 %v2311
      %v2575 = vunpack.c.h.b16 %v2311
      %v2576 = vunpack.c.l.b16 %v2312
      %v2577 = vunpack.c.h.b16 %v2312
      %v2578 = vunpack.c.l.b16 %v2313
      %v2579 = vunpack.c.h.b16 %v2313
      %v2580 = vpack.c.b16 %v2550, %v2548
      %v2581 = vpack.c.b16 %v2551, %v2549
      %v2582 = vpack.c.b16 %v2554, %v2552
      %v2583 = vpack.c.b16 %v2555, %v2553
      %v2584 = vpack.c.b16 %v2558, %v2556
      %v2585 = vpack.c.b16 %v2559, %v2557
      %v2586 = vpack.c.b16 %v2562, %v2560
      %v2587 = vpack.c.b16 %v2563, %v2561
      %v2588 = vpack.c.b16 %v2566, %v2564
      %v2589 = vpack.c.b16 %v2567, %v2565
      %v2590 = vpack.c.b16 %v2570, %v2568
      %v2591 = vpack.c.b16 %v2571, %v2569
      %v2592 = vpack.c.b16 %v2574, %v2572
      %v2593 = vpack.c.b16 %v2575, %v2573
      %v2594 = vpack.c.b16 %v2578, %v2576
      %v2595 = vpack.c.b16 %v2579, %v2577
      %2612 = vmatprep.subr.bf16.mxu0 %v2581
      %2613 = vmatpush1.bf16.msra.mxu0 %v2580
      %2614 = vmatprep.subr.bf16.mxu0 %v2583
      %2615 = vmatpush1.bf16.msra.mxu0 %v2582
      %2616 = vmatprep.subr.bf16.mxu0 %v2585
      %2617 = vmatpush1.bf16.msra.mxu0 %v2584
      %2618 = vmatprep.subr.bf16.mxu0 %v2587
      %2619 = vmatpush1.bf16.msra.mxu0 %v2586
      %2620 = vmatprep.subr.bf16.mxu0 %v2589
      %2621 = vmatpush1.bf16.msra.mxu0 %v2588
      %2622 = vmatprep.subr.bf16.mxu0 %v2591
      %2623 = vmatpush1.bf16.msra.mxu0 %v2590
      %2624 = vmatprep.subr.bf16.mxu0 %v2593
      %2625 = vmatpush1.bf16.msra.mxu0 %v2592
      %2626 = vmatprep.subr.bf16.mxu0 %v2595
      %2627 = vmatpush1.bf16.msra.mxu0 %v2594
      %2628 = vmatprep.subr.bf16.mxu0 0
      %2629 = vmatpush1.bf16.msra.mxu0 0
      %2630 = vmatprep.subr.bf16.mxu0 0
      %2631 = vmatpush1.bf16.msra.mxu0 0
      %2632 = vmatprep.subr.bf16.mxu0 0
      %2633 = vmatpush1.bf16.msra.mxu0 0
      %2634 = vmatprep.subr.bf16.mxu0 0
      %2635 = vmatpush1.bf16.msra.mxu0 0
      %2636 = vmatprep.subr.bf16.mxu0 0
      %2637 = vmatpush1.bf16.msra.mxu0 0
      %2638 = vmatprep.subr.bf16.mxu0 0
      %2639 = vmatpush1.bf16.msra.mxu0 0
      %2640 = vmatprep.subr.bf16.mxu0 0
      %2641 = vmatpush1.bf16.msra.mxu0 0
      %2642 = vmatprep.subr.bf16.mxu0 0
      %2643 = vmatpush1.bf16.msra.mxu0 0
      %2644 = vmatprep.mubr.bf16.mxu0 0
      %2645 = vmatmul.mubr.bf16.gmra.mrb[0].mxu0 %v2520
      %v2646 = vpop.f32.mrb[0].mxu0
      %v2647 = vadd.f32 %v2525, %v2646
      %v2648 = vpop.f32.mrb[0].mxu0
      %v2649 = vadd.f32 %v2529, %v2648
      %v2650 = vpop.f32.mrb[0].mxu0
      %v2651 = vadd.f32 %v2525, %v2650
      %v2652 = vpop.f32.mrb[0].mxu0
      %v2653 = vadd.f32 %v2529, %v2652
      %2654 = vdwg.mxu0
      %v2655 = vmul.f32 %v2647, %v2647
      %v2656 = vmul.f32 %v2649, %v2649
      %v2657 = vmul.f32 %v2651, %v2651
      %v2658 = vmul.f32 %v2653, %v2653
      %v2659 = vmul.f32 %v2647, %v2655
      %v2660 = vmul.f32 %v2649, %v2656
      %v2661 = vmul.f32 %v2651, %v2657
      %v2662 = vmul.f32 %v2653, %v2658
      %v2663 = vmul.f32 %v2659, 0.044715
      %v2664 = vmul.f32 %v2660, 0.044715
      %v2665 = vmul.f32 %v2661, 0.044715
      %v2666 = vmul.f32 %v2662, 0.044715
      %v2667 = vadd.f32 %v2647, %v2663
      %v2668 = vadd.f32 %v2649, %v2664
      %v2669 = vadd.f32 %v2651, %v2665
      %v2670 = vadd.f32 %v2653, %v2666
      %v2671 = vmul.f32 %v2667, 0.7978846
      %v2672 = vmul.f32 %v2668, 0.7978846
      %v2673 = vmul.f32 %v2669, 0.7978846
      %v2674 = vmul.f32 %v2670, 0.7978846
      %v2675 = vtanh.pop %v2671
      %v2676 = vtanh.pop %v2672
      %v2677 = vtanh.pop %v2673
      %v2678 = vtanh.pop %v2674
      %v2679 = vadd.f32 %v2675, 1.0
      %v2680 = vadd.f32 %v2676, 1.0
      %v2681 = vadd.f32 %v2677, 1.0
      %v2682 = vadd.f32 %v2678, 1.0
      %v2683 = vmul.f32 %v2679, 0.5
      %v2684 = vmul.f32 %v2680, 0.5
      %v2685 = vmul.f32 %v2681, 0.5
      %v2686 = vmul.f32 %v2682, 0.5
      %v2687 = vmul.f32 %v2647, %v2683
      %v2688 = vmul.f32 %v2649, %v2684
      %v2689 = vmul.f32 %v2651, %v2685
      %v2690 = vmul.f32 %v2653, %v2686
      %v2691 = vpack.c.bf16 %v2689, %v2687
      %v2692 = vpack.c.bf16 %v2690, %v2688
      %v2693 = vlaneseq
      %v2694 = vshrl.u32 %v2693, 7
      %v2695 = vsub.s32 7, %v2694
      %v2696 = vrot.slane %v441, %v2695
      %v2729 = vunpack.c.l.b16 %v2315
      %v2730 = vunpack.c.l.b16 %v2316
      %v2731 = vunpack.c.l.b16 %v2317
      %v2732 = vunpack.c.l.b16 %v2318
      %v2733 = vunpack.c.l.b16 %v2319
      %v2734 = vunpack.c.l.b16 %v2320
      %v2735 = vunpack.c.l.b16 %v2321
      %v2736 = vunpack.c.l.b16 %v2322
      %v2737 = vunpack.c.l.b16 %v2323
      %v2738 = vunpack.c.l.b16 %v2324
      %v2739 = vunpack.c.l.b16 %v2325
      %v2740 = vunpack.c.l.b16 %v2326
      %v2741 = vunpack.c.l.b16 %v2327
      %v2742 = vunpack.c.l.b16 %v2328
      %v2743 = vunpack.c.l.b16 %v2329
      %v2744 = vunpack.c.l.b16 %v2330
      %v2745 = vunpack.c.l.b16 %v2331
      %v2746 = vunpack.c.l.b16 %v2332
      %v2747 = vunpack.c.l.b16 %v2333
      %v2748 = vunpack.c.l.b16 %v2334
      %v2749 = vunpack.c.l.b16 %v2335
      %v2750 = vunpack.c.l.b16 %v2336
      %v2751 = vunpack.c.l.b16 %v2337
      %v2752 = vunpack.c.l.b16 %v2338
      %v2753 = vunpack.c.l.b16 %v2339
      %v2754 = vunpack.c.l.b16 %v2340
      %v2755 = vunpack.c.l.b16 %v2341
      %v2756 = vunpack.c.l.b16 %v2342
      %v2757 = vunpack.c.l.b16 %v2343
      %v2758 = vunpack.c.l.b16 %v2344
      %v2759 = vunpack.c.l.b16 %v2345
      %v2760 = vunpack.c.l.b16 %v2346
      %v2761 = vpack.c.b16 %v2730, %v2729
      %v2762 = vpack.c.b16 %v2732, %v2731
      %v2763 = vpack.c.b16 %v2734, %v2733
      %v2764 = vpack.c.b16 %v2736, %v2735
      %v2765 = vpack.c.b16 %v2738, %v2737
      %v2766 = vpack.c.b16 %v2740, %v2739
      %v2767 = vpack.c.b16 %v2742, %v2741
      %v2768 = vpack.c.b16 %v2744, %v2743
      %v2769 = vpack.c.b16 %v2746, %v2745
      %v2770 = vpack.c.b16 %v2748, %v2747
      %v2771 = vpack.c.b16 %v2750, %v2749
      %v2772 = vpack.c.b16 %v2752, %v2751
      %v2773 = vpack.c.b16 %v2754, %v2753
      %v2774 = vpack.c.b16 %v2756, %v2755
      %v2775 = vpack.c.b16 %v2758, %v2757
      %v2776 = vpack.c.b16 %v2760, %v2759
      %2793 = vmatprep.subr.bf16.mxu0 0
      %2794 = vmatpush1.bf16.msra.mxu0 %v2761
      %2795 = vmatprep.subr.bf16.mxu0 0
      %2796 = vmatpush1.bf16.msra.mxu0 %v2762
      %2797 = vmatprep.subr.bf16.mxu0 0
      %2798 = vmatpush1.bf16.msra.mxu0 %v2763
      %2799 = vmatprep.subr.bf16.mxu0 0
      %2800 = vmatpush1.bf16.msra.mxu0 %v2764
      %2801 = vmatprep.subr.bf16.mxu0 0
      %2802 = vmatpush1.bf16.msra.mxu0 %v2765
      %2803 = vmatprep.subr.bf16.mxu0 0
      %2804 = vmatpush1.bf16.msra.mxu0 %v2766
      %2805 = vmatprep.subr.bf16.mxu0 0
      %2806 = vmatpush1.bf16.msra.mxu0 %v2767
      %2807 = vmatprep.subr.bf16.mxu0 0
      %2808 = vmatpush1.bf16.msra.mxu0 %v2768
      %2809 = vmatprep.subr.bf16.mxu0 0
      %2810 = vmatpush1.bf16.msra.mxu0 %v2769
      %2811 = vmatprep.subr.bf16.mxu0 0
      %2812 = vmatpush1.bf16.msra.mxu0 %v2770
      %2813 = vmatprep.subr.bf16.mxu0 0
      %2814 = vmatpush1.bf16.msra.mxu0 %v2771
      %2815 = vmatprep.subr.bf16.mxu0 0
      %2816 = vmatpush1.bf16.msra.mxu0 %v2772
      %2817 = vmatprep.subr.bf16.mxu0 0
      %2818 = vmatpush1.bf16.msra.mxu0 %v2773
      %2819 = vmatprep.subr.bf16.mxu0 0
      %2820 = vmatpush1.bf16.msra.mxu0 %v2774
      %2821 = vmatprep.subr.bf16.mxu0 0
      %2822 = vmatpush1.bf16.msra.mxu0 %v2775
      %2823 = vmatprep.subr.bf16.mxu0 0
      %2824 = vmatpush1.bf16.msra.mxu0 %v2776
      %2825 = vmatprep.mubr.bf16.mxu0 %v2692
      %2826 = vmatmul.mubr.bf16.gmra.mrb[0].mxu0 %v2691
      %v2827 = vpop.f32.mrb[0].mxu0
      %v2828 = vadd.f32 %v2696, %v2827
      %v2829 = vpop.f32.mrb[0].mxu0
      %v2830 = vpop.f32.mrb[0].mxu0
      %v2831 = vadd.f32 %v2696, %v2830
      %v2832 = vpop.f32.mrb[0].mxu0
      %2833 = vdwg.mxu0
      %v2834 = vlaneseq
      %v2835 = vshrl.u32 %v2834, 7
      %v2836 = vsub.s32 6, %v2835
      %v2837 = vrot.slane %v441, %v2836
      %v2838 = vmul.f32 %v2837, %v2828
      %v2839 = vmul.f32 %v2837, %v2831
      %v2840 = vadd.f32 %v2472, %v2838
      %v2841 = vadd.f32 %v2473, %v2839
      %v2842 = vadd.f32 %v2840, %v2841
      %2843 = vadd.xlane.f32.xlu0 %v2842
      %v2844 = vpop.xlane.xlu0 %2843
      %v2845 = vrot.slane %v2844, 4
      %v2846 = vadd.f32 %v2844, %v2845
      %v2847 = vrot.slane %v2846, 2
      %v2848 = vadd.f32 %v2846, %v2847
      %v2849 = vrot.slane %v2848, 1
      %v2850 = vadd.f32 %v2848, %v2849
      %s2851 = vtos %v2850
      %v2852 = vstv %s2851
      %v2853 = vmul.f32 %v2852, 0.0009765625
      %v2854 = vmul.f32 %v2840, %v2840
      %v2855 = vmul.f32 %v2841, %v2841
      %v2856 = vadd.f32 %v2854, %v2855
      %2857 = vadd.xlane.f32.xlu0 %v2856
      %v2858 = vpop.xlane.xlu0 %2857
      %v2859 = vrot.slane %v2858, 4
      %v2860 = vadd.f32 %v2858, %v2859
      %v2861 = vrot.slane %v2860, 2
      %v2862 = vadd.f32 %v2860, %v2861
      %v2863 = vrot.slane %v2862, 1
      %v2864 = vadd.f32 %v2862, %v2863
      %s2865 = vtos %v2864
      %v2866 = vstv %s2865
      %v2867 = vmul.f32 %v2866, 0.0009765625
      %v2868 = vmul.f32 %v2853, %v2853
      %v2869 = vsub.f32 %v2867, %v2868
      %v2870 = vsub.f32 %v2840, %v2853
      %v2871 = vsub.f32 %v2841, %v2853
      %v2872 = vadd.f32 %v2869, 1e-05
      %v2873 = vrsqrt.pop %v2872
      %v2874 = vmul.f32 %v2870, %v2873
      %v2875 = vmul.f32 %v2871, %v2873
      %v2876 = vlaneseq
      %v2877 = vshrl.u32 %v2876, 7
      %v2878 = vsub.s32 0, %v2877
      %v2879 = vrot.slane %v442, %v2878
      %v2880 = vmul.f32 %v2874, %v2879
      %v2881 = vmul.f32 %v2875, %v2879
      %v2882 = vlaneseq
      %v2883 = vshrl.u32 %v2882, 7
      %v2884 = vsub.s32 1, %v2883
      %v2885 = vrot.slane %v442, %v2884
      %v2886 = vadd.f32 %v2880, %v2885
      %v2887 = vadd.f32 %v2881, %v2885
      %v2888 = vadd.f32 %v2886, %v2887
      %v2889 = vrot.slane %v2888, 4
      %v2890 = vadd.f32 %v2888, %v2889
      %v2891 = vrot.slane %v2890, 2
      %v2892 = vadd.f32 %v2890, %v2891
      %v2893 = vrot.slane %v2892, 1
      %v2894 = vadd.f32 %v2892, %v2893
      %v2895 = vrcp.pop 16.0
      %v2896 = vmul.f32 %v2894, %v2895
      %v2897 = vpack.c.bf16 %v2896, %v2896
      %v2898 = vld [vmem:[%s12] sm:$0xf]
      %v2899 = vld [vmem:[%s12 + $0x4] sm:$0xf]
      %v2900 = vld [vmem:[%s12 + $0x8] sm:$0xf]
      %v2901 = vld [vmem:[%s12 + $0xc] sm:$0xf]
      %v2902 = vld [vmem:[%s12 + $0x10] sm:$0xf]
      %v2903 = vld [vmem:[%s12 + $0x14] sm:$0xf]
      %v2904 = vld [vmem:[%s12 + $0x18] sm:$0xf]
      %v2905 = vld [vmem:[%s12 + $0x1c] sm:$0xf]
      %v2906 = vld [vmem:[%s12 + $0x20] sm:$0xf]
      %v2907 = vld [vmem:[%s12 + $0x24] sm:$0xf]
      %v2908 = vld [vmem:[%s12 + $0x28] sm:$0xf]
      %v2909 = vld [vmem:[%s12 + $0x2c] sm:$0xf]
      %v2910 = vld [vmem:[%s12 + $0x30] sm:$0xf]
      %v2911 = vld [vmem:[%s12 + $0x34] sm:$0xf]
      %v2912 = vld [vmem:[%s12 + $0x38] sm:$0xf]
      %v2913 = vld [vmem:[%s12 + $0x3c] sm:$0xf]
      %v2930 = vunpack.c.l.b16 %v2898
      %v2931 = vunpack.c.l.b16 %v2899
      %v2932 = vunpack.c.l.b16 %v2900
      %v2933 = vunpack.c.l.b16 %v2901
      %v2934 = vunpack.c.l.b16 %v2902
      %v2935 = vunpack.c.l.b16 %v2903
      %v2936 = vunpack.c.l.b16 %v2904
      %v2937 = vunpack.c.l.b16 %v2905
      %v2938 = vunpack.c.l.b16 %v2906
      %v2939 = vunpack.c.l.b16 %v2907
      %v2940 = vunpack.c.l.b16 %v2908
      %v2941 = vunpack.c.l.b16 %v2909
      %v2942 = vunpack.c.l.b16 %v2910
      %v2943 = vunpack.c.l.b16 %v2911
      %v2944 = vunpack.c.l.b16 %v2912
      %v2945 = vunpack.c.l.b16 %v2913
      %v2946 = vpack.c.b16 %v2931, %v2930
      %v2947 = vpack.c.b16 %v2933, %v2932
      %v2948 = vpack.c.b16 %v2935, %v2934
      %v2949 = vpack.c.b16 %v2937, %v2936
      %v2950 = vpack.c.b16 %v2939, %v2938
      %v2951 = vpack.c.b16 %v2941, %v2940
      %v2952 = vpack.c.b16 %v2943, %v2942
      %v2953 = vpack.c.b16 %v2945, %v2944
      %v2963 = vrot.slane %v442, 2
      %2965 = vmatprep.subr.bf16.mxu0 0
      %2966 = vmatpush1.bf16.msra.mxu0 %v2946
      %2967 = vmatprep.subr.bf16.mxu0 0
      %2968 = vmatpush1.bf16.msra.mxu0 %v2947
      %2969 = vmatprep.subr.bf16.mxu0 0
      %2970 = vmatpush1.bf16.msra.mxu0 %v2948
      %2971 = vmatprep.subr.bf16.mxu0 0
      %2972 = vmatpush1.bf16.msra.mxu0 %v2949
      %2973 = vmatprep.subr.bf16.mxu0 0
      %2974 = vmatpush1.bf16.msra.mxu0 %v2950
      %2975 = vmatprep.subr.bf16.mxu0 0
      %2976 = vmatpush1.bf16.msra.mxu0 %v2951
      %2977 = vmatprep.subr.bf16.mxu0 0
      %2978 = vmatpush1.bf16.msra.mxu0 %v2952
      %2979 = vmatprep.subr.bf16.mxu0 0
      %2980 = vmatpush1.bf16.msra.mxu0 %v2953
      %2981 = vmatprep.subr.bf16.mxu0 0
      %2982 = vmatpush1.bf16.msra.mxu0 0
      %2983 = vmatprep.subr.bf16.mxu0 0
      %2984 = vmatpush1.bf16.msra.mxu0 0
      %2985 = vmatprep.subr.bf16.mxu0 0
      %2986 = vmatpush1.bf16.msra.mxu0 0
      %2987 = vmatprep.subr.bf16.mxu0 0
      %2988 = vmatpush1.bf16.msra.mxu0 0
      %2989 = vmatprep.subr.bf16.mxu0 0
      %2990 = vmatpush1.bf16.msra.mxu0 0
      %2991 = vmatprep.subr.bf16.mxu0 0
      %2992 = vmatpush1.bf16.msra.mxu0 0
      %2993 = vmatprep.subr.bf16.mxu0 0
      %2994 = vmatpush1.bf16.msra.mxu0 0
      %2995 = vmatprep.subr.bf16.mxu0 0
      %2996 = vmatpush1.bf16.msra.mxu0 0
      %2997 = vmatprep.mubr.bf16.mxu0 0
      %2998 = vmatmul.mubr.bf16.gmra.mrb[0].mxu0 %v2897
      %v2999 = vpop.f32.mrb[0].mxu0
      %v3000 = vadd.f32 %v2963, %v2999
      %v3001 = vpop.f32.mrb[0].mxu0
      %v3002 = vpop.f32.mrb[0].mxu0
      %v3003 = vpop.f32.mrb[0].mxu0
      %3004 = vdwg.mxu0
      %v3005 = vlaneseq
      %v3006 = vshrl.u32 %v3005, 7
      %v3007 = vsub.s32 0, %v3006
      %v3008 = vrot.slane %v3000, %v3007
      %3009 = vst [vmem:[%s438] sm:$0xff] %v3008
      %p3010 = scmp.lt.s32.totalorder %s24, 1
      %s3011 = scalar_select %p3010, %s24, 1
      %s3012 = smul.addr %s3011, 8
      %s3013 = scalar_lea.vmem %s13, %s3012
      // Predicated region
      $region73: #{poolformer_forward.1} parent=71 // pred_check
        %p3014 = pneg %p320
      $region74: #{poolformer_forward.1} parent=71 // pred_check_branch
        %3016 = sbr.rel (%p3014) target = $region76
      $region75: #{poolformer_forward.1} parent=71 // pred_region
        _
      $region76: #{poolformer_forward.1} parent=71 // pred_fallthru
        _
    $region72: #{poolformer_forward.1} parent=5 // pred_fallthru
      _
    %p3017 = scmp.le.s32.totalorder 2, %s19
    // Predicated region
    $region77: #{poolformer_forward.1} parent=5 // pred_check
      %p3018 = pneg %p3017
    $region78: #{poolformer_forward.1} parent=5 // pred_check_branch
      %3020 = sbr.rel (%p3018) target = $region80
    $region79: #{poolformer_forward.1} parent=5 // pred_region
      %s3021 = ssub.s32 %s19, 2
      // Predicated region
      $region81: #{poolformer_forward.1} parent=79 // pred_check
        %p3022 = pneg %p326
      $region82: #{poolformer_forward.1} parent=79 // pred_check_branch
        %3024 = sbr.rel (%p3022) target = $region84
      $region83: #{poolformer_forward.1} parent=79 // pred_region
        %p3025 = scmp.lt.s32.totalorder %s25, 1
        %s3026 = scalar_select %p3025, %s25, 1
        %s3027 = smul.addr %s3026, 8
        %s3028 = scalar_lea.vmem %s13, %s3027
      $region84: #{poolformer_forward.1} parent=79 // pred_fallthru
        _
    $region80: #{poolformer_forward.1} parent=5 // pred_fallthru
      _
  $region6: #{poolformer_forward.1} parent=0 // loop_footer
    %s23 = sadd.s32 1, %s19
  $region7: #{poolformer_forward.1} parent=0 // loop_footer_branch
    %18 = sbr.rel target = $region3
  $region8: #{poolformer_forward.1} parent=0 // loop_exit
    _

</llo_original>
